<compile_context>
chip_gen: v5e
topology: v5e:2x2
jax: 0.10.0
libtpu: 0.0.40
codegen_flags: <defaults>
</compile_context>

<pallas_src>
import jax
import jax.numpy as jnp
from jax.experimental import pallas as pl
from jax.experimental.pallas import tpu as pltpu

BN_EPS = 1e-5
HIDDEN = 128
KSIZE = 5
NUM_CLASSES = 10
NUM_CHANNELS = 3
IMG = 16

OH1 = IMG - KSIZE + 1               # 12  (conv1 valid output)
PH1 = OH1 // 2                      # 6   (after 2x2 max-pool)
OH2 = PH1 - KSIZE + 1               # 2   (conv2 valid output)
K1 = KSIZE * KSIZE * NUM_CHANNELS   # 75  (conv1 contraction)
K1_PAD = 128                        # pad conv1 contraction to a full lane tile
FC_HIDDEN = 200
FC_PAD = 256                        # padded MLP hidden width
OUT_PAD = 128                       # padded logits width (lane-dense store)


# ---------------------------------------------------------------------------
# The single fused Pallas kernel
# ---------------------------------------------------------------------------

def mconvnet3_kernel(p1_ref, w1_ref, g1_ref, be1_ref,
                     w2_hbm, g2_ref, be2_ref,
                     fw1_hbm, fb1_ref, fw2_hbm, fb2_ref,
                     o_ref,
                     w2_vmem, fw1_vmem, fw2_vmem, qpad_ref, sem):
    # ---- start the big weight DMAs immediately so they overlap conv1 work ----
    w2_cp = pltpu.make_async_copy(w2_hbm, w2_vmem, sem.at[0])
    w2_cp.start()
    fw1_cp = pltpu.make_async_copy(fw1_hbm, fw1_vmem, sem.at[1])
    fw1_cp.start()
    fw2_cp = pltpu.make_async_copy(fw2_hbm, fw2_vmem, sem.at[2])
    fw2_cp.start()

    n = p1_ref.shape[0] // (4 * PH1 * PH1)    # batch
    p_rows = n * PH1 * PH1                    # pooled rows (n, ph, pw) = 72
    qpad_rows = qpad_ref.shape[0]

    # ---- conv1 as one patch matmul (bf16 MXU, f32 acc) + BN(batch stats) + ReLU.
    #      Conv bias omitted: cancelled exactly by the batch-stat BN below.    ----
    y1 = jnp.dot(p1_ref[...], w1_ref[...], preferred_element_type=jnp.float32)
    inv_m1 = 1.0 / y1.shape[0]
    mean1 = jnp.sum(y1, axis=0, keepdims=True) * inv_m1
    c1 = y1 - mean1                                           # centered (two-pass var)
    var1 = jnp.sum(c1 * c1, axis=0, keepdims=True) * inv_m1
    y1 = jnp.maximum(c1 * jax.lax.rsqrt(var1 + BN_EPS) * g1_ref[...] + be1_ref[...],
                     0.0)

    # ---- 2x2 max-pool: patch rows were pre-ordered (pool_dy, pool_dx, n, ph, pw),
    #      so the pool is a max over 4 contiguous row blocks of p_rows each.   ----
    q = jnp.maximum(jnp.maximum(y1[0 * p_rows:1 * p_rows], y1[1 * p_rows:2 * p_rows]),
                    jnp.maximum(y1[2 * p_rows:3 * p_rows], y1[3 * p_rows:4 * p_rows]))
    # One full, aligned bf16 store of the (zero-padded) pooled map: single cast,
    # no masked partial stores.  Rows are ordered (n, ph, pw).
    qpad_ref[...] = jnp.concatenate(
        [q.astype(jnp.bfloat16),
         jnp.zeros((qpad_rows - p_rows, HIDDEN), jnp.bfloat16)], axis=0)

    # ---- conv2: 5 tap-row-fused matmuls, K = KSIZE*HIDDEN = 640 each.
    #      LHS(ki) = lane-concat of the 5 kj-shifted (72,128) bf16 slices;
    #      RHS(ki) = (640,128) weight slab DMA'd into VMEM above.             ----
    w2_cp.wait()
    acc = jnp.zeros((p_rows, HIDDEN), jnp.float32)
    for ki in range(KSIZE):
        lhs = jnp.concatenate(
            [qpad_ref[ki * PH1 + kj: ki * PH1 + kj + p_rows, :]
             for kj in range(KSIZE)], axis=1)                  # (72, 640) bf16
        acc = acc + jnp.dot(lhs, w2_vmem[ki],
                            preferred_element_type=jnp.float32)

    # Keep only the valid conv2 rows (b, oh2, ow2), oh2/ow2 in [0, OH2):
    # pure register slicing + concat, no VMEM round trip.
    y2 = jnp.concatenate(
        [acc[b * PH1 * PH1 + oh * PH1: b * PH1 * PH1 + oh * PH1 + OH2, :]
         for b in range(n) for oh in range(OH2)], axis=0)      # (n*4, 128)

    # ---- conv2 BN(batch stats over N*2*2) + ReLU (bias again omitted) ----
    inv_m2 = 1.0 / y2.shape[0]
    mean2 = jnp.sum(y2, axis=0, keepdims=True) * inv_m2
    c2 = y2 - mean2
    var2 = jnp.sum(c2 * c2, axis=0, keepdims=True) * inv_m2
    y2 = jnp.maximum(c2 * jax.lax.rsqrt(var2 + BN_EPS) * g2_ref[...] + be2_ref[...],
                     0.0)

    # ---- 2x2 max-pool over the 2x2 conv2 map; AdaptiveAvgPool2d(1) on a 1x1
    #      map is the identity.  Pad rows so all later stores are unmasked.   ----
    per_sample = OH2 * OH2
    feat = jnp.concatenate(
        [jnp.max(y2[b * per_sample:(b + 1) * per_sample, :], axis=0, keepdims=True)
         for b in range(n)], axis=0)                           # (n, 128)
    feat = jnp.concatenate(
        [feat, jnp.zeros((o_ref.shape[0] - n, HIDDEN), jnp.float32)], axis=0)

    # ---- final MLP: Linear(128,200) -> ReLU -> Linear(200,10), padded lane-dense ----
    fw1_cp.wait()
    h = jnp.dot(feat.astype(jnp.bfloat16), fw1_vmem[...],
                preferred_element_type=jnp.float32) + fb1_ref[...]
    h = jnp.maximum(h, 0.0)
    fw2_cp.wait()
    o_ref[...] = jnp.dot(h.astype(jnp.bfloat16), fw2_vmem[...],
                         preferred_element_type=jnp.float32) + fb2_ref[...]


# ---------------------------------------------------------------------------
# Wrapper: XLA glue (input layout + conv1 im2col) + the single pallas_call
# ---------------------------------------------------------------------------

def _vmem_spec(shape):
    nd = len(shape)
    return pl.BlockSpec(shape, lambda i, _nd=nd: (0,) * _nd)


def im2col_pool_ordered(x):
    """x: (N,H,W,C) NHWC -> conv1 patches (4*N*(OH/2)*(OW/2), 75).

    Rows are ordered (pool_dy, pool_dx, n, ph, pw) so the 2x2 max-pool becomes
    a max over 4 contiguous row blocks inside the fused kernel.  Patch feature
    ordering is (kh, kw, Cin), matching the flattened (KH,KW,Cin,Cout) weight.
    """
    N, H, W, C = x.shape
    oh, ow = H - KSIZE + 1, W - KSIZE + 1
    cols = []
    for i in range(KSIZE):
        for j in range(KSIZE):
            cols.append(x[:, i:i + oh, j:j + ow, :])
    p = jnp.stack(cols, axis=3).reshape(N, oh, ow, KSIZE * KSIZE * C)
    p = p.reshape(N, oh // 2, 2, ow // 2, 2, KSIZE * KSIZE * C)   # (n,ph,dy,pw,dx,K)
    p = jnp.transpose(p, (2, 4, 0, 1, 3, 5))                       # (dy,dx,n,ph,pw,K)
    return p.reshape(4 * N * (oh // 2) * (ow // 2), KSIZE * KSIZE * C)


@jax.jit
def mconvnet3_forward(x_nchw, params):
    x = jnp.transpose(x_nchw, (0, 2, 3, 1)).astype(jnp.float32)    # NCHW -> NHWC
    n = x.shape[0]

    p1 = im2col_pool_ordered(x)                                    # (4*n*36, 75)
    p1 = jnp.pad(p1, ((0, 0), (0, K1_PAD - p1.shape[1]))).astype(jnp.bfloat16)

    p_rows = n * PH1 * PH1
    max_shift = (KSIZE - 1) * PH1 + (KSIZE - 1)                    # 28
    qpad_rows = -(-(p_rows + max_shift) // 16) * 16                # 112 (bf16 tile)
    out_rows = max(8, -(-n // 8) * 8)                              # unmasked full store

    args = (p1, params["w1"], params["g1"], params["be1"],
            params["w2"], params["g2"], params["be2"],
            params["fw1"], params["fb1"], params["fw2"], params["fb2"])

    in_specs = [
        _vmem_spec(p1.shape),                    # conv1 patches
        _vmem_spec(params["w1"].shape),          # conv1 weight
        _vmem_spec(params["g1"].shape),
        _vmem_spec(params["be1"].shape),
        pl.BlockSpec(memory_space=pl.ANY),       # w2 (HBM; DMA'd in-kernel, overlapped)
        _vmem_spec(params["g2"].shape),
        _vmem_spec(params["be2"].shape),
        pl.BlockSpec(memory_space=pl.ANY),       # fw1 (HBM; overlapped DMA)
        _vmem_spec(params["fb1"].shape),
        pl.BlockSpec(memory_space=pl.ANY),       # fw2 (HBM; overlapped DMA)
        _vmem_spec(params["fb2"].shape),
    ]

    out = pl.pallas_call(
        mconvnet3_kernel,
        out_shape=jax.ShapeDtypeStruct((out_rows, OUT_PAD), jnp.float32),
        grid=(1,),
        in_specs=in_specs,
        out_specs=_vmem_spec((out_rows, OUT_PAD)),
        scratch_shapes=[
            pltpu.VMEM((KSIZE, KSIZE * HIDDEN, HIDDEN), jnp.bfloat16),  # w2 slab
            pltpu.VMEM((HIDDEN, FC_PAD), jnp.bfloat16),                 # fw1
            pltpu.VMEM((FC_PAD, OUT_PAD), jnp.bfloat16),                # fw2
            pltpu.VMEM((qpad_rows, HIDDEN), jnp.bfloat16),              # pooled conv1 map
            pltpu.SemaphoreType.DMA((3,)),                              # weight-DMA sems
        ],
        compiler_params=pltpu.CompilerParams(
            dimension_semantics=("arbitrary",)),
    )(*args)
    return out[:n, :NUM_CLASSES]


# ---------------------------------------------------------------------------
# Parameters (raw PyTorch-layout f32 params + kernel-format conversion)
# ---------------------------------------------------------------------------

def init_raw_params(key):
    ks = jax.random.split(key, 8)
    return {
        "conv1_w": jax.random.normal(ks[0], (HIDDEN, NUM_CHANNELS, KSIZE, KSIZE),
                                     jnp.float32) * 0.05,
        "conv1_b": jax.random.normal(ks[1], (HIDDEN,), jnp.float32) * 0.01,
        "bn1_g": jnp.ones((HIDDEN,), jnp.float32),
        "bn1_b": jnp.zeros((HIDDEN,), jnp.float32),
        "conv2_w": jax.random.normal(ks[2], (HIDDEN, HIDDEN, KSIZE, KSIZE),
                                     jnp.float32) * 0.02,
        "conv2_b": jax.random.normal(ks[3], (HIDDEN,), jnp.float32) * 0.01,
        "bn2_g": jnp.ones((HIDDEN,), jnp.float32),
        "bn2_b": jnp.zeros((HIDDEN,), jnp.float32),
        "fc1_w": jax.random.normal(ks[4], (FC_HIDDEN, HIDDEN), jnp.float32) * 0.05,
        "fc1_b": jax.random.normal(ks[5], (FC_HIDDEN,), jnp.float32) * 0.01,
        "fc2_w": jax.random.normal(ks[6], (NUM_CLASSES, FC_HIDDEN), jnp.float32) * 0.05,
        "fc2_b": jax.random.normal(ks[7], (NUM_CLASSES,), jnp.float32) * 0.01,
    }


def prepare_kernel_params(raw):
    # conv1 weight: (Cout,Cin,KH,KW) -> (KH,KW,Cin,Cout) flattened, padded to K=128.
    w1 = jnp.transpose(raw["conv1_w"], (2, 3, 1, 0)).reshape(K1, HIDDEN)
    w1 = jnp.pad(w1, ((0, K1_PAD - K1), (0, 0)))                       # (128, 128)
    # conv2 weight: (Cout,Cin,KH,KW) -> (KH, KW, Cin, Cout) -> (KH, KW*Cin, Cout)
    # so w2[ki][kj*128 + ci, co] matches the lane-concatenated conv2 LHS blocks.
    w2 = jnp.transpose(raw["conv2_w"], (2, 3, 1, 0)).reshape(
        KSIZE, KSIZE * HIDDEN, HIDDEN)                                  # (5, 640, 128)
    # FC weights stored (in,out); hidden padded 200->256, logits padded 10->128.
    fw1 = jnp.pad(raw["fc1_w"].T, ((0, 0), (0, FC_PAD - FC_HIDDEN)))   # (128, 256)
    fb1 = jnp.pad(raw["fc1_b"], (0, FC_PAD - FC_HIDDEN)).reshape(1, FC_PAD)
    fw2 = jnp.pad(raw["fc2_w"].T, ((0, FC_PAD - FC_HIDDEN),
                                   (0, OUT_PAD - NUM_CLASSES)))        # (256, 128)
    fb2 = jnp.pad(raw["fc2_b"], (0, OUT_PAD - NUM_CLASSES)).reshape(1, OUT_PAD)
    # NOTE: conv1_b / conv2_b are intentionally NOT passed to the kernel: they are
    # exactly cancelled by the train-mode batch-statistics BatchNorm that follows.
    return {
        "w1": w1.astype(jnp.bfloat16),
        "g1": raw["bn1_g"].reshape(1, HIDDEN),
        "be1": raw["bn1_b"].reshape(1, HIDDEN),
        "w2": w2.astype(jnp.bfloat16),
        "g2": raw["bn2_g"].reshape(1, HIDDEN),
        "be2": raw["bn2_b"].reshape(1, HIDDEN),
        "fw1": fw1.astype(jnp.bfloat16),
        "fb1": fb1,
        "fw2": fw2.astype(jnp.bfloat16),
        "fb2": fb2,
    }


# ---------------------------------------------------------------------------
# Pure-JAX f32 reference (mirrors the PyTorch module, train-mode BatchNorm)
# ---------------------------------------------------------------------------

def reference_forward(x_nchw, raw):
    x = x_nchw.astype(jnp.float32)

    def conv_bn_relu_pool(x, w, b, g, beta):
        y = jax.lax.conv_general_dilated(
            x, w, window_strides=(1, 1), padding="VALID",
            dimension_numbers=("NCHW", "OIHW", "NCHW"))
        y = y + b[None, :, None, None]
        mean = jnp.mean(y, axis=(0, 2, 3), keepdims=True)
        var = jnp.mean((y - mean) ** 2, axis=(0, 2, 3), keepdims=True)
        y = ((y - mean) * jax.lax.rsqrt(var + BN_EPS) * g[None, :, None, None]
             + beta[None, :, None, None])
        y = jnp.maximum(y, 0.0)
        n, c, h, w_ = y.shape
        y = y[:, :, :h // 2 * 2, :w_ // 2 * 2].reshape(n, c, h // 2, 2, w_ // 2, 2)
        return y.max(axis=(3, 5))

    y = conv_bn_relu_pool(x, raw["conv1_w"], raw["conv1_b"], raw["bn1_g"], raw["bn1_b"])
    y = conv_bn_relu_pool(y, raw["conv2_w"], raw["conv2_b"], raw["bn2_g"], raw["bn2_b"])
    feat = jnp.mean(y, axis=(2, 3))                     # AdaptiveAvgPool2d(1)+squeeze
    h = jnp.maximum(feat @ raw["fc1_w"].T + raw["fc1_b"], 0.0)
    return h @ raw["fc2_w"].T + raw["fc2_b"]


if __name__ == "__main__":
    key = jax.random.PRNGKey(0)
    k_x, k_p = jax.random.split(key)
    # Input in PyTorch NCHW layout: batch=2, channels=3, spatial=16.
    x = jax.random.normal(k_x, (2, NUM_CHANNELS, IMG, IMG), jnp.float32)
    raw = init_raw_params(k_p)
    params = prepare_kernel_params(raw)

    logits = mconvnet3_forward(x, params)
    logits = jax.block_until_ready(logits)
    assert logits.shape == (2, NUM_CLASSES), logits.shape
    assert bool(jnp.all(jnp.isfinite(logits)))

    # Loose check vs. the f32 reference (kernel uses bf16 matmul operands).
    ref = reference_forward(x, raw)
    err = float(jnp.max(jnp.abs(logits - ref)))
    scale = float(jnp.max(jnp.abs(ref))) + 1e-6
    assert err <= 0.1 * scale + 0.1, (err, scale)

    print("KERNEL_OK")
</pallas_src>

<mosaic_0001>
module attributes {stable_mosaic.version = 11 : i64} {
  func.func @mconvnet3_kernel(%arg0: i32, %arg1: memref<288x128xbf16, #tpu.memory_space<vmem>>, %arg2: memref<128x128xbf16, #tpu.memory_space<vmem>>, %arg3: memref<1x128xf32, #tpu.memory_space<vmem>>, %arg4: memref<1x128xf32, #tpu.memory_space<vmem>>, %arg5: memref<5x640x128xbf16, #tpu.memory_space<any>>, %arg6: memref<1x128xf32, #tpu.memory_space<vmem>>, %arg7: memref<1x128xf32, #tpu.memory_space<vmem>>, %arg8: memref<128x256xbf16, #tpu.memory_space<any>>, %arg9: memref<1x256xf32, #tpu.memory_space<vmem>>, %arg10: memref<256x128xbf16, #tpu.memory_space<any>>, %arg11: memref<1x128xf32, #tpu.memory_space<vmem>>, %arg12: memref<8x128xf32, #tpu.memory_space<vmem>>, %arg13: memref<5x640x128xbf16, #tpu.memory_space<vmem>>, %arg14: memref<128x256xbf16, #tpu.memory_space<vmem>>, %arg15: memref<256x128xbf16, #tpu.memory_space<vmem>>, %arg16: memref<112x128xbf16, #tpu.memory_space<vmem>>, %arg17: memref<3x!tpu.dma_semaphore, #tpu.memory_space<semaphore_mem>>) attributes {dimension_semantics = [#tpu.dimension_semantics<arbitrary>], iteration_bounds = array<i64: 1>, scalar_prefetch = 0 : i64, scratch_operands = 5 : i64, tpu.core_type = #tpu.core_type<tc>, window_params = [{pipeline_mode = #tpu.pipeline_mode<synchronous>, transform_indices = @transform_0, window_bounds = array<i64: 288, 128>}, {pipeline_mode = #tpu.pipeline_mode<synchronous>, transform_indices = @transform_1, window_bounds = array<i64: 128, 128>}, {pipeline_mode = #tpu.pipeline_mode<synchronous>, transform_indices = @transform_2, window_bounds = array<i64: 1, 128>}, {pipeline_mode = #tpu.pipeline_mode<synchronous>, transform_indices = @transform_3, window_bounds = array<i64: 1, 128>}, {}, {pipeline_mode = #tpu.pipeline_mode<synchronous>, transform_indices = @transform_5, window_bounds = array<i64: 1, 128>}, {pipeline_mode = #tpu.pipeline_mode<synchronous>, transform_indices = @transform_6, window_bounds = array<i64: 1, 128>}, {}, {pipeline_mode = #tpu.pipeline_mode<synchronous>, transform_indices = @transform_8, window_bounds = array<i64: 1, 256>}, {}, {pipeline_mode = #tpu.pipeline_mode<synchronous>, transform_indices = @transform_10, window_bounds = array<i64: 1, 128>}, {pipeline_mode = #tpu.pipeline_mode<synchronous>, transform_indices = @transform_11, window_bounds = array<i64: 8, 128>}]} {
    %c0_i32 = arith.constant 0 : i32
    %0 = tpu.memref_slice %arg17[%c0_i32] : memref<3x!tpu.dma_semaphore, #tpu.memory_space<semaphore_mem>> -> memref<1x!tpu.dma_semaphore, #tpu.memory_space<semaphore_mem>>
    %1 = tpu.memref_squeeze %0 : memref<1x!tpu.dma_semaphore, #tpu.memory_space<semaphore_mem>> -> memref<!tpu.dma_semaphore, #tpu.memory_space<semaphore_mem>>
    tpu.enqueue_dma source(%arg5 : memref<5x640x128xbf16, #tpu.memory_space<any>>) target(%arg13 : memref<5x640x128xbf16, #tpu.memory_space<vmem>>) target_semaphore(%1 : memref<!tpu.dma_semaphore, #tpu.memory_space<semaphore_mem>>)
    %c1_i32 = arith.constant 1 : i32
    %2 = tpu.memref_slice %arg17[%c1_i32] : memref<3x!tpu.dma_semaphore, #tpu.memory_space<semaphore_mem>> -> memref<1x!tpu.dma_semaphore, #tpu.memory_space<semaphore_mem>>
    %3 = tpu.memref_squeeze %2 : memref<1x!tpu.dma_semaphore, #tpu.memory_space<semaphore_mem>> -> memref<!tpu.dma_semaphore, #tpu.memory_space<semaphore_mem>>
    tpu.enqueue_dma source(%arg8 : memref<128x256xbf16, #tpu.memory_space<any>>) target(%arg14 : memref<128x256xbf16, #tpu.memory_space<vmem>>) target_semaphore(%3 : memref<!tpu.dma_semaphore, #tpu.memory_space<semaphore_mem>>)
    %c2_i32 = arith.constant 2 : i32
    %4 = tpu.memref_slice %arg17[%c2_i32] : memref<3x!tpu.dma_semaphore, #tpu.memory_space<semaphore_mem>> -> memref<1x!tpu.dma_semaphore, #tpu.memory_space<semaphore_mem>>
    %5 = tpu.memref_squeeze %4 : memref<1x!tpu.dma_semaphore, #tpu.memory_space<semaphore_mem>> -> memref<!tpu.dma_semaphore, #tpu.memory_space<semaphore_mem>>
    tpu.enqueue_dma source(%arg10 : memref<256x128xbf16, #tpu.memory_space<any>>) target(%arg15 : memref<256x128xbf16, #tpu.memory_space<vmem>>) target_semaphore(%5 : memref<!tpu.dma_semaphore, #tpu.memory_space<semaphore_mem>>)
    %c0 = arith.constant 0 : index
    %c0_0 = arith.constant 0 : index
    %6 = vector.load %arg1[%c0, %c0_0] : memref<288x128xbf16, #tpu.memory_space<vmem>>, vector<288x128xbf16>
    %c0_1 = arith.constant 0 : index
    %c0_2 = arith.constant 0 : index
    %7 = vector.load %arg2[%c0_1, %c0_2] : memref<128x128xbf16, #tpu.memory_space<vmem>>, vector<128x128xbf16>
    %cst = arith.constant dense<0.000000e+00> : vector<288x128xf32>
    %8 = tpu.matmul %6, %7, %cst {dimension_numbers = #tpu.dot_dimension_numbers<[1], [0], [0], [1], [0, 0, 1, 1], [], []>} : vector<288x128xbf16>, vector<128x128xbf16>, vector<288x128xf32> -> vector<288x128xf32>
    %cst_3 = arith.constant dense<0.000000e+00> : vector<128xf32>
    %9 = vector.multi_reduction <add>, %8, %cst_3 [0] : vector<288x128xf32> to vector<128xf32>
    %10 = vector.shape_cast %9 : vector<128xf32> to vector<1x128xf32>
    %cst_4 = arith.constant 0.00347222225 : f32
    %11 = vector.broadcast %cst_4 : f32 to vector<1x128xf32>
    %12 = arith.mulf %10, %11 : vector<1x128xf32>
    %13 = vector.broadcast %12 : vector<1x128xf32> to vector<288x128xf32>
    %14 = arith.subf %8, %13 : vector<288x128xf32>
    %15 = arith.mulf %14, %14 : vector<288x128xf32>
    %cst_5 = arith.constant dense<0.000000e+00> : vector<128xf32>
    %16 = vector.multi_reduction <add>, %15, %cst_5 [0] : vector<288x128xf32> to vector<128xf32>
    %17 = vector.shape_cast %16 : vector<128xf32> to vector<1x128xf32>
    %cst_6 = arith.constant 0.00347222225 : f32
    %18 = vector.broadcast %cst_6 : f32 to vector<1x128xf32>
    %19 = arith.mulf %17, %18 : vector<1x128xf32>
    %cst_7 = arith.constant 9.99999974E-6 : f32
    %20 = vector.broadcast %cst_7 : f32 to vector<1x128xf32>
    %21 = arith.addf %19, %20 : vector<1x128xf32>
    %22 = math.rsqrt %21 : vector<1x128xf32>
    %23 = vector.broadcast %22 : vector<1x128xf32> to vector<288x128xf32>
    %24 = arith.mulf %14, %23 : vector<288x128xf32>
    %c0_8 = arith.constant 0 : index
    %c0_9 = arith.constant 0 : index
    %25 = vector.load %arg3[%c0_8, %c0_9] : memref<1x128xf32, #tpu.memory_space<vmem>>, vector<1x128xf32>
    %26 = vector.broadcast %25 : vector<1x128xf32> to vector<288x128xf32>
    %27 = arith.mulf %24, %26 : vector<288x128xf32>
    %c0_10 = arith.constant 0 : index
    %c0_11 = arith.constant 0 : index
    %28 = vector.load %arg4[%c0_10, %c0_11] : memref<1x128xf32, #tpu.memory_space<vmem>>, vector<1x128xf32>
    %29 = vector.broadcast %28 : vector<1x128xf32> to vector<288x128xf32>
    %30 = arith.addf %27, %29 : vector<288x128xf32>
    %cst_12 = arith.constant 0.000000e+00 : f32
    %31 = vector.broadcast %cst_12 : f32 to vector<288x128xf32>
    %32 = arith.maximumf %30, %31 : vector<288x128xf32>
    %33 = vector.extract_strided_slice %32 {offsets = [0, 0], sizes = [72, 128], strides = [1, 1]} : vector<288x128xf32> to vector<72x128xf32>
    %34 = vector.extract_strided_slice %32 {offsets = [72, 0], sizes = [72, 128], strides = [1, 1]} : vector<288x128xf32> to vector<72x128xf32>
    %35 = arith.maximumf %33, %34 : vector<72x128xf32>
    %36 = vector.extract_strided_slice %32 {offsets = [144, 0], sizes = [72, 128], strides = [1, 1]} : vector<288x128xf32> to vector<72x128xf32>
    %37 = vector.extract_strided_slice %32 {offsets = [216, 0], sizes = [72, 128], strides = [1, 1]} : vector<288x128xf32> to vector<72x128xf32>
    %38 = arith.maximumf %36, %37 : vector<72x128xf32>
    %39 = arith.maximumf %35, %38 : vector<72x128xf32>
    %40 = arith.truncf %39 : vector<72x128xf32> to vector<72x128xbf16>
    %cst_13 = arith.constant 0.000000e+00 : bf16
    %41 = vector.broadcast %cst_13 : bf16 to vector<40x128xbf16>
    %42 = tpu.concatenate %40, %41 in 0 : vector<72x128xbf16>, vector<40x128xbf16> -> vector<112x128xbf16>
    %c0_14 = arith.constant 0 : index
    %c0_15 = arith.constant 0 : index
    %43 = vector.load %arg16[%c0_14, %c0_15] : memref<112x128xbf16, #tpu.memory_space<vmem>>, vector<112x128xbf16>
    tpu.vector_store %arg16[%c0_14, %c0_15], %42 {strides = array<i32>} : memref<112x128xbf16, #tpu.memory_space<vmem>>, vector<112x128xbf16>,
    %c0_i32_16 = arith.constant 0 : i32
    %44 = tpu.memref_slice %arg17[%c0_i32_16] : memref<3x!tpu.dma_semaphore, #tpu.memory_space<semaphore_mem>> -> memref<1x!tpu.dma_semaphore, #tpu.memory_space<semaphore_mem>>
    %45 = tpu.memref_squeeze %44 : memref<1x!tpu.dma_semaphore, #tpu.memory_space<semaphore_mem>> -> memref<!tpu.dma_semaphore, #tpu.memory_space<semaphore_mem>>
    tpu.wait_dma2 semaphore(%45 : memref<!tpu.dma_semaphore, #tpu.memory_space<semaphore_mem>>) src(%arg5 : memref<5x640x128xbf16, #tpu.memory_space<any>>) dst(%arg13 : memref<5x640x128xbf16, #tpu.memory_space<vmem>>)
    %cst_17 = arith.constant 0.000000e+00 : f32
    %46 = vector.broadcast %cst_17 : f32 to vector<72x128xf32>
    %c0_18 = arith.constant 0 : index
    %c0_19 = arith.constant 0 : index
    %47 = vector.load %arg16[%c0_18, %c0_19] : memref<112x128xbf16, #tpu.memory_space<vmem>>, vector<72x128xbf16>
    %c1 = arith.constant 1 : index
    %c0_20 = arith.constant 0 : index
    %48 = vector.load %arg16[%c1, %c0_20] : memref<112x128xbf16, #tpu.memory_space<vmem>>, vector<72x128xbf16>
    %c2 = arith.constant 2 : index
    %c0_21 = arith.constant 0 : index
    %49 = vector.load %arg16[%c2, %c0_21] : memref<112x128xbf16, #tpu.memory_space<vmem>>, vector<72x128xbf16>
    %c3 = arith.constant 3 : index
    %c0_22 = arith.constant 0 : index
    %50 = vector.load %arg16[%c3, %c0_22] : memref<112x128xbf16, #tpu.memory_space<vmem>>, vector<72x128xbf16>
    %c4 = arith.constant 4 : index
    %c0_23 = arith.constant 0 : index
    %51 = vector.load %arg16[%c4, %c0_23] : memref<112x128xbf16, #tpu.memory_space<vmem>>, vector<72x128xbf16>
    %52 = tpu.concatenate %47, %48, %49, %50, %51 in 1 : vector<72x128xbf16>, vector<72x128xbf16>, vector<72x128xbf16>, vector<72x128xbf16>, vector<72x128xbf16> -> vector<72x640xbf16>
    %c0_24 = arith.constant 0 : index
    %c0_25 = arith.constant 0 : index
    %c0_26 = arith.constant 0 : index
    %53 = vector.load %arg13[%c0_24, %c0_25, %c0_26] : memref<5x640x128xbf16, #tpu.memory_space<vmem>>, vector<1x640x128xbf16>
    %54 = vector.shape_cast %53 : vector<1x640x128xbf16> to vector<640x128xbf16>
    %cst_27 = arith.constant dense<0.000000e+00> : vector<72x128xf32>
    %55 = tpu.matmul %52, %54, %cst_27 {dimension_numbers = #tpu.dot_dimension_numbers<[1], [0], [0], [1], [0, 0, 1, 1], [], []>} : vector<72x640xbf16>, vector<640x128xbf16>, vector<72x128xf32> -> vector<72x128xf32>
    %56 = arith.addf %46, %55 : vector<72x128xf32>
    %c6 = arith.constant 6 : index
    %c0_28 = arith.constant 0 : index
    %57 = vector.load %arg16[%c6, %c0_28] : memref<112x128xbf16, #tpu.memory_space<vmem>>, vector<72x128xbf16>
    %c7 = arith.constant 7 : index
    %c0_29 = arith.constant 0 : index
    %58 = vector.load %arg16[%c7, %c0_29] : memref<112x128xbf16, #tpu.memory_space<vmem>>, vector<72x128xbf16>
    %c8 = arith.constant 8 : index
    %c0_30 = arith.constant 0 : index
    %59 = vector.load %arg16[%c8, %c0_30] : memref<112x128xbf16, #tpu.memory_space<vmem>>, vector<72x128xbf16>
    %c9 = arith.constant 9 : index
    %c0_31 = arith.constant 0 : index
    %60 = vector.load %arg16[%c9, %c0_31] : memref<112x128xbf16, #tpu.memory_space<vmem>>, vector<72x128xbf16>
    %c10 = arith.constant 10 : index
    %c0_32 = arith.constant 0 : index
    %61 = vector.load %arg16[%c10, %c0_32] : memref<112x128xbf16, #tpu.memory_space<vmem>>, vector<72x128xbf16>
    %62 = tpu.concatenate %57, %58, %59, %60, %61 in 1 : vector<72x128xbf16>, vector<72x128xbf16>, vector<72x128xbf16>, vector<72x128xbf16>, vector<72x128xbf16> -> vector<72x640xbf16>
    %c1_33 = arith.constant 1 : index
    %c0_34 = arith.constant 0 : index
    %c0_35 = arith.constant 0 : index
    %63 = vector.load %arg13[%c1_33, %c0_34, %c0_35] : memref<5x640x128xbf16, #tpu.memory_space<vmem>>, vector<1x640x128xbf16>
    %64 = vector.shape_cast %63 : vector<1x640x128xbf16> to vector<640x128xbf16>
    %cst_36 = arith.constant dense<0.000000e+00> : vector<72x128xf32>
    %65 = tpu.matmul %62, %64, %cst_36 {dimension_numbers = #tpu.dot_dimension_numbers<[1], [0], [0], [1], [0, 0, 1, 1], [], []>} : vector<72x640xbf16>, vector<640x128xbf16>, vector<72x128xf32> -> vector<72x128xf32>
    %66 = arith.addf %56, %65 : vector<72x128xf32>
    %c12 = arith.constant 12 : index
    %c0_37 = arith.constant 0 : index
    %67 = vector.load %arg16[%c12, %c0_37] : memref<112x128xbf16, #tpu.memory_space<vmem>>, vector<72x128xbf16>
    %c13 = arith.constant 13 : index
    %c0_38 = arith.constant 0 : index
    %68 = vector.load %arg16[%c13, %c0_38] : memref<112x128xbf16, #tpu.memory_space<vmem>>, vector<72x128xbf16>
    %c14 = arith.constant 14 : index
    %c0_39 = arith.constant 0 : index
    %69 = vector.load %arg16[%c14, %c0_39] : memref<112x128xbf16, #tpu.memory_space<vmem>>, vector<72x128xbf16>
    %c15 = arith.constant 15 : index
    %c0_40 = arith.constant 0 : index
    %70 = vector.load %arg16[%c15, %c0_40] : memref<112x128xbf16, #tpu.memory_space<vmem>>, vector<72x128xbf16>
    %c16 = arith.constant 16 : index
    %c0_41 = arith.constant 0 : index
    %71 = vector.load %arg16[%c16, %c0_41] : memref<112x128xbf16, #tpu.memory_space<vmem>>, vector<72x128xbf16>
    %72 = tpu.concatenate %67, %68, %69, %70, %71 in 1 : vector<72x128xbf16>, vector<72x128xbf16>, vector<72x128xbf16>, vector<72x128xbf16>, vector<72x128xbf16> -> vector<72x640xbf16>
    %c2_42 = arith.constant 2 : index
    %c0_43 = arith.constant 0 : index
    %c0_44 = arith.constant 0 : index
    %73 = vector.load %arg13[%c2_42, %c0_43, %c0_44] : memref<5x640x128xbf16, #tpu.memory_space<vmem>>, vector<1x640x128xbf16>
    %74 = vector.shape_cast %73 : vector<1x640x128xbf16> to vector<640x128xbf16>
    %cst_45 = arith.constant dense<0.000000e+00> : vector<72x128xf32>
    %75 = tpu.matmul %72, %74, %cst_45 {dimension_numbers = #tpu.dot_dimension_numbers<[1], [0], [0], [1], [0, 0, 1, 1], [], []>} : vector<72x640xbf16>, vector<640x128xbf16>, vector<72x128xf32> -> vector<72x128xf32>
    %76 = arith.addf %66, %75 : vector<72x128xf32>
    %c18 = arith.constant 18 : index
    %c0_46 = arith.constant 0 : index
    %77 = vector.load %arg16[%c18, %c0_46] : memref<112x128xbf16, #tpu.memory_space<vmem>>, vector<72x128xbf16>
    %c19 = arith.constant 19 : index
    %c0_47 = arith.constant 0 : index
    %78 = vector.load %arg16[%c19, %c0_47] : memref<112x128xbf16, #tpu.memory_space<vmem>>, vector<72x128xbf16>
    %c20 = arith.constant 20 : index
    %c0_48 = arith.constant 0 : index
    %79 = vector.load %arg16[%c20, %c0_48] : memref<112x128xbf16, #tpu.memory_space<vmem>>, vector<72x128xbf16>
    %c21 = arith.constant 21 : index
    %c0_49 = arith.constant 0 : index
    %80 = vector.load %arg16[%c21, %c0_49] : memref<112x128xbf16, #tpu.memory_space<vmem>>, vector<72x128xbf16>
    %c22 = arith.constant 22 : index
    %c0_50 = arith.constant 0 : index
    %81 = vector.load %arg16[%c22, %c0_50] : memref<112x128xbf16, #tpu.memory_space<vmem>>, vector<72x128xbf16>
    %82 = tpu.concatenate %77, %78, %79, %80, %81 in 1 : vector<72x128xbf16>, vector<72x128xbf16>, vector<72x128xbf16>, vector<72x128xbf16>, vector<72x128xbf16> -> vector<72x640xbf16>
    %c3_51 = arith.constant 3 : index
    %c0_52 = arith.constant 0 : index
    %c0_53 = arith.constant 0 : index
    %83 = vector.load %arg13[%c3_51, %c0_52, %c0_53] : memref<5x640x128xbf16, #tpu.memory_space<vmem>>, vector<1x640x128xbf16>
    %84 = vector.shape_cast %83 : vector<1x640x128xbf16> to vector<640x128xbf16>
    %cst_54 = arith.constant dense<0.000000e+00> : vector<72x128xf32>
    %85 = tpu.matmul %82, %84, %cst_54 {dimension_numbers = #tpu.dot_dimension_numbers<[1], [0], [0], [1], [0, 0, 1, 1], [], []>} : vector<72x640xbf16>, vector<640x128xbf16>, vector<72x128xf32> -> vector<72x128xf32>
    %86 = arith.addf %76, %85 : vector<72x128xf32>
    %c24 = arith.constant 24 : index
    %c0_55 = arith.constant 0 : index
    %87 = vector.load %arg16[%c24, %c0_55] : memref<112x128xbf16, #tpu.memory_space<vmem>>, vector<72x128xbf16>
    %c25 = arith.constant 25 : index
    %c0_56 = arith.constant 0 : index
    %88 = vector.load %arg16[%c25, %c0_56] : memref<112x128xbf16, #tpu.memory_space<vmem>>, vector<72x128xbf16>
    %c26 = arith.constant 26 : index
    %c0_57 = arith.constant 0 : index
    %89 = vector.load %arg16[%c26, %c0_57] : memref<112x128xbf16, #tpu.memory_space<vmem>>, vector<72x128xbf16>
    %c27 = arith.constant 27 : index
    %c0_58 = arith.constant 0 : index
    %90 = vector.load %arg16[%c27, %c0_58] : memref<112x128xbf16, #tpu.memory_space<vmem>>, vector<72x128xbf16>
    %c28 = arith.constant 28 : index
    %c0_59 = arith.constant 0 : index
    %91 = vector.load %arg16[%c28, %c0_59] : memref<112x128xbf16, #tpu.memory_space<vmem>>, vector<72x128xbf16>
    %92 = tpu.concatenate %87, %88, %89, %90, %91 in 1 : vector<72x128xbf16>, vector<72x128xbf16>, vector<72x128xbf16>, vector<72x128xbf16>, vector<72x128xbf16> -> vector<72x640xbf16>
    %c4_60 = arith.constant 4 : index
    %c0_61 = arith.constant 0 : index
    %c0_62 = arith.constant 0 : index
    %93 = vector.load %arg13[%c4_60, %c0_61, %c0_62] : memref<5x640x128xbf16, #tpu.memory_space<vmem>>, vector<1x640x128xbf16>
    %94 = vector.shape_cast %93 : vector<1x640x128xbf16> to vector<640x128xbf16>
    %cst_63 = arith.constant dense<0.000000e+00> : vector<72x128xf32>
    %95 = tpu.matmul %92, %94, %cst_63 {dimension_numbers = #tpu.dot_dimension_numbers<[1], [0], [0], [1], [0, 0, 1, 1], [], []>} : vector<72x640xbf16>, vector<640x128xbf16>, vector<72x128xf32> -> vector<72x128xf32>
    %96 = arith.addf %86, %95 : vector<72x128xf32>
    %97 = vector.extract_strided_slice %96 {offsets = [0, 0], sizes = [2, 128], strides = [1, 1]} : vector<72x128xf32> to vector<2x128xf32>
    %98 = vector.extract_strided_slice %96 {offsets = [6, 0], sizes = [2, 128], strides = [1, 1]} : vector<72x128xf32> to vector<2x128xf32>
    %99 = vector.extract_strided_slice %96 {offsets = [36, 0], sizes = [2, 128], strides = [1, 1]} : vector<72x128xf32> to vector<2x128xf32>
    %100 = vector.extract_strided_slice %96 {offsets = [42, 0], sizes = [2, 128], strides = [1, 1]} : vector<72x128xf32> to vector<2x128xf32>
    %101 = tpu.concatenate %97, %98, %99, %100 in 0 : vector<2x128xf32>, vector<2x128xf32>, vector<2x128xf32>, vector<2x128xf32> -> vector<8x128xf32>
    %cst_64 = arith.constant dense<0.000000e+00> : vector<128xf32>
    %102 = vector.multi_reduction <add>, %101, %cst_64 [0] : vector<8x128xf32> to vector<128xf32>
    %103 = vector.shape_cast %102 : vector<128xf32> to vector<1x128xf32>
    %cst_65 = arith.constant 1.250000e-01 : f32
    %104 = vector.broadcast %cst_65 : f32 to vector<1x128xf32>
    %105 = arith.mulf %103, %104 : vector<1x128xf32>
    %106 = vector.broadcast %105 : vector<1x128xf32> to vector<8x128xf32>
    %107 = arith.subf %101, %106 : vector<8x128xf32>
    %108 = arith.mulf %107, %107 : vector<8x128xf32>
    %cst_66 = arith.constant dense<0.000000e+00> : vector<128xf32>
    %109 = vector.multi_reduction <add>, %108, %cst_66 [0] : vector<8x128xf32> to vector<128xf32>
    %110 = vector.shape_cast %109 : vector<128xf32> to vector<1x128xf32>
    %cst_67 = arith.constant 1.250000e-01 : f32
    %111 = vector.broadcast %cst_67 : f32 to vector<1x128xf32>
    %112 = arith.mulf %110, %111 : vector<1x128xf32>
    %cst_68 = arith.constant 9.99999974E-6 : f32
    %113 = vector.broadcast %cst_68 : f32 to vector<1x128xf32>
    %114 = arith.addf %112, %113 : vector<1x128xf32>
    %115 = math.rsqrt %114 : vector<1x128xf32>
    %116 = vector.broadcast %115 : vector<1x128xf32> to vector<8x128xf32>
    %117 = arith.mulf %107, %116 : vector<8x128xf32>
    %c0_69 = arith.constant 0 : index
    %c0_70 = arith.constant 0 : index
    %118 = vector.load %arg6[%c0_69, %c0_70] : memref<1x128xf32, #tpu.memory_space<vmem>>, vector<1x128xf32>
    %119 = vector.broadcast %118 : vector<1x128xf32> to vector<8x128xf32>
    %120 = arith.mulf %117, %119 : vector<8x128xf32>
    %c0_71 = arith.constant 0 : index
    %c0_72 = arith.constant 0 : index
    %121 = vector.load %arg7[%c0_71, %c0_72] : memref<1x128xf32, #tpu.memory_space<vmem>>, vector<1x128xf32>
    %122 = vector.broadcast %121 : vector<1x128xf32> to vector<8x128xf32>
    %123 = arith.addf %120, %122 : vector<8x128xf32>
    %cst_73 = arith.constant 0.000000e+00 : f32
    %124 = vector.broadcast %cst_73 : f32 to vector<8x128xf32>
    %125 = arith.maximumf %123, %124 : vector<8x128xf32>
    %126 = vector.extract_strided_slice %125 {offsets = [0, 0], sizes = [4, 128], strides = [1, 1]} : vector<8x128xf32> to vector<4x128xf32>
    %cst_74 = arith.constant dense<0xFF800000> : vector<128xf32>
    %127 = vector.multi_reduction <maximumf>, %126, %cst_74 [0] : vector<4x128xf32> to vector<128xf32>
    %128 = vector.shape_cast %127 : vector<128xf32> to vector<1x128xf32>
    %129 = vector.extract_strided_slice %125 {offsets = [4, 0], sizes = [4, 128], strides = [1, 1]} : vector<8x128xf32> to vector<4x128xf32>
    %cst_75 = arith.constant dense<0xFF800000> : vector<128xf32>
    %130 = vector.multi_reduction <maximumf>, %129, %cst_75 [0] : vector<4x128xf32> to vector<128xf32>
    %131 = vector.shape_cast %130 : vector<128xf32> to vector<1x128xf32>
    %132 = tpu.concatenate %128, %131 in 0 : vector<1x128xf32>, vector<1x128xf32> -> vector<2x128xf32>
    %cst_76 = arith.constant 0.000000e+00 : f32
    %133 = vector.broadcast %cst_76 : f32 to vector<6x128xf32>
    %134 = tpu.concatenate %132, %133 in 0 : vector<2x128xf32>, vector<6x128xf32> -> vector<8x128xf32>
    %c1_i32_77 = arith.constant 1 : i32
    %135 = tpu.memref_slice %arg17[%c1_i32_77] : memref<3x!tpu.dma_semaphore, #tpu.memory_space<semaphore_mem>> -> memref<1x!tpu.dma_semaphore, #tpu.memory_space<semaphore_mem>>
    %136 = tpu.memref_squeeze %135 : memref<1x!tpu.dma_semaphore, #tpu.memory_space<semaphore_mem>> -> memref<!tpu.dma_semaphore, #tpu.memory_space<semaphore_mem>>
    tpu.wait_dma2 semaphore(%136 : memref<!tpu.dma_semaphore, #tpu.memory_space<semaphore_mem>>) src(%arg8 : memref<128x256xbf16, #tpu.memory_space<any>>) dst(%arg14 : memref<128x256xbf16, #tpu.memory_space<vmem>>)
    %137 = arith.truncf %134 : vector<8x128xf32> to vector<8x128xbf16>
    %c0_78 = arith.constant 0 : index
    %c0_79 = arith.constant 0 : index
    %138 = vector.load %arg14[%c0_78, %c0_79] : memref<128x256xbf16, #tpu.memory_space<vmem>>, vector<128x256xbf16>
    %cst_80 = arith.constant dense<0.000000e+00> : vector<8x256xf32>
    %139 = tpu.matmul %137, %138, %cst_80 {dimension_numbers = #tpu.dot_dimension_numbers<[1], [0], [0], [1], [0, 0, 1, 1], [], []>} : vector<8x128xbf16>, vector<128x256xbf16>, vector<8x256xf32> -> vector<8x256xf32>
    %c0_81 = arith.constant 0 : index
    %c0_82 = arith.constant 0 : index
    %140 = vector.load %arg9[%c0_81, %c0_82] : memref<1x256xf32, #tpu.memory_space<vmem>>, vector<1x256xf32>
    %141 = vector.broadcast %140 : vector<1x256xf32> to vector<8x256xf32>
    %142 = arith.addf %139, %141 : vector<8x256xf32>
    %cst_83 = arith.constant 0.000000e+00 : f32
    %143 = vector.broadcast %cst_83 : f32 to vector<8x256xf32>
    %144 = arith.maximumf %142, %143 : vector<8x256xf32>
    %c2_i32_84 = arith.constant 2 : i32
    %145 = tpu.memref_slice %arg17[%c2_i32_84] : memref<3x!tpu.dma_semaphore, #tpu.memory_space<semaphore_mem>> -> memref<1x!tpu.dma_semaphore, #tpu.memory_space<semaphore_mem>>
    %146 = tpu.memref_squeeze %145 : memref<1x!tpu.dma_semaphore, #tpu.memory_space<semaphore_mem>> -> memref<!tpu.dma_semaphore, #tpu.memory_space<semaphore_mem>>
    tpu.wait_dma2 semaphore(%146 : memref<!tpu.dma_semaphore, #tpu.memory_space<semaphore_mem>>) src(%arg10 : memref<256x128xbf16, #tpu.memory_space<any>>) dst(%arg15 : memref<256x128xbf16, #tpu.memory_space<vmem>>)
    %147 = arith.truncf %144 : vector<8x256xf32> to vector<8x256xbf16>
    %c0_85 = arith.constant 0 : index
    %c0_86 = arith.constant 0 : index
    %148 = vector.load %arg15[%c0_85, %c0_86] : memref<256x128xbf16, #tpu.memory_space<vmem>>, vector<256x128xbf16>
    %cst_87 = arith.constant dense<0.000000e+00> : vector<8x128xf32>
    %149 = tpu.matmul %147, %148, %cst_87 {dimension_numbers = #tpu.dot_dimension_numbers<[1], [0], [0], [1], [0, 0, 1, 1], [], []>} : vector<8x256xbf16>, vector<256x128xbf16>, vector<8x128xf32> -> vector<8x128xf32>
    %c0_88 = arith.constant 0 : index
    %c0_89 = arith.constant 0 : index
    %150 = vector.load %arg11[%c0_88, %c0_89] : memref<1x128xf32, #tpu.memory_space<vmem>>, vector<1x128xf32>
    %151 = vector.broadcast %150 : vector<1x128xf32> to vector<8x128xf32>
    %152 = arith.addf %149, %151 : vector<8x128xf32>
    %c0_90 = arith.constant 0 : index
    %c0_91 = arith.constant 0 : index
    %153 = vector.load %arg12[%c0_90, %c0_91] : memref<8x128xf32, #tpu.memory_space<vmem>>, vector<8x128xf32>
    tpu.vector_store %arg12[%c0_90, %c0_91], %152 {strides = array<i32>} : memref<8x128xf32, #tpu.memory_space<vmem>>, vector<8x128xf32>,
    return
  }
  func.func @transform_0(%arg0: i32) -> (i32, i32) {
    %c0_i32 = arith.constant 0 : i32
    %c0_i32_0 = arith.constant 0 : i32
    %c0_i32_1 = arith.constant 0 : i32
    return %c0_i32, %c0_i32_0 : i32, i32
  }
  func.func @transform_1(%arg0: i32) -> (i32, i32) {
    %c0_i32 = arith.constant 0 : i32
    %c0_i32_0 = arith.constant 0 : i32
    %c0_i32_1 = arith.constant 0 : i32
    return %c0_i32, %c0_i32_0 : i32, i32
  }
  func.func @transform_2(%arg0: i32) -> (i32, i32) {
    %c0_i32 = arith.constant 0 : i32
    %c0_i32_0 = arith.constant 0 : i32
    %c0_i32_1 = arith.constant 0 : i32
    return %c0_i32, %c0_i32_0 : i32, i32
  }
  func.func @transform_3(%arg0: i32) -> (i32, i32) {
    %c0_i32 = arith.constant 0 : i32
    %c0_i32_0 = arith.constant 0 : i32
    %c0_i32_1 = arith.constant 0 : i32
    return %c0_i32, %c0_i32_0 : i32, i32
  }
  func.func @transform_5(%arg0: i32) -> (i32, i32) {
    %c0_i32 = arith.constant 0 : i32
    %c0_i32_0 = arith.constant 0 : i32
    %c0_i32_1 = arith.constant 0 : i32
    return %c0_i32, %c0_i32_0 : i32, i32
  }
  func.func @transform_6(%arg0: i32) -> (i32, i32) {
    %c0_i32 = arith.constant 0 : i32
    %c0_i32_0 = arith.constant 0 : i32
    %c0_i32_1 = arith.constant 0 : i32
    return %c0_i32, %c0_i32_0 : i32, i32
  }
  func.func @transform_8(%arg0: i32) -> (i32, i32) {
    %c0_i32 = arith.constant 0 : i32
    %c0_i32_0 = arith.constant 0 : i32
    %c0_i32_1 = arith.constant 0 : i32
    return %c0_i32, %c0_i32_0 : i32, i32
  }
  func.func @transform_10(%arg0: i32) -> (i32, i32) {
    %c0_i32 = arith.constant 0 : i32
    %c0_i32_0 = arith.constant 0 : i32
    %c0_i32_1 = arith.constant 0 : i32
    return %c0_i32, %c0_i32_0 : i32, i32
  }
  func.func @transform_11(%arg0: i32) -> (i32, i32) {
    %c0_i32 = arith.constant 0 : i32
    %c0_i32_0 = arith.constant 0 : i32
    %c0_i32_1 = arith.constant 0 : i32
    return %c0_i32, %c0_i32_0 : i32, i32
  }
}

</mosaic_0001>

<llo_original>
// kernel: mconvnet3_forward.1
$region0: #{mconvnet3_forward.1}
  #allocation0 [shape = 'u32[]', space=smem, size = 0x4, offset = 0x4, fixed_abs, tag = 'smem constant byte address 0x4 - core index']
  #allocation1 [shape = 'u32[72,128]{1,0:T(1,128)}', space=vmem, size = 0x9000, scoped, tag = 'internal scratch']
  #allocation2 [shape = 'bf16[5,640,128]{2,1,0:T(8,128)(2,1)}', space=vmem, size = 0xc8000, scoped, tag = 'scratch operand']
  #allocation3 [shape = 'bf16[128,256]{1,0:T(8,128)(2,1)}', space=vmem, size = 0x10000, scoped, tag = 'scratch operand']
  #allocation4 [shape = 'bf16[256,128]{1,0:T(8,128)(2,1)}', space=vmem, size = 0x10000, scoped, tag = 'scratch operand']
  #allocation5 [shape = 'bf16[112,128]{1,0:T(8,128)(2,1)}', space=vmem, size = 0x7000, scoped, tag = 'scratch operand']
  #allocation6 [shape = 's32[3]{0}', space=sflag, size = 0xc, scoped, tag = 'scratch operand']
  #allocation7 [shape = 's32[]', space=sflag, size = 0x4, offset = 0, fixed_abs, tag = 'sflag constant byte address 0x0 - dummy sync flag']
  #allocation8 [shape = 's32[]', space=sflag, size = 0x4, offset = 0, fixed_abs, tag = 'sflag constant byte address 0x0 - dummy sync flag']
  #allocation9 [shape = 's32[]', space=sflag, size = 0x4, offset = 0, fixed_abs, tag = 'sflag constant byte address 0x0 - dummy sync flag']
  %s0 = inlined_call_operand.vmem [shape: bf16[288,128], index: 0, kind: input, shape index: {}]
  %s1 = inlined_call_operand.vmem [shape: bf16[128,128], index: 1, kind: input, shape index: {}]
  %s2 = inlined_call_operand.vmem [shape: f32[1,128], index: 2, kind: input, shape index: {}]
  %s3 = inlined_call_operand.vmem [shape: f32[1,128], index: 3, kind: input, shape index: {}]
  %s4 = inlined_call_operand.vmem [shape: bf16[5,640,128], index: 4, kind: input, shape index: {}]
  %s5 = inlined_call_operand.vmem [shape: f32[1,128], index: 5, kind: input, shape index: {}]
  %s6 = inlined_call_operand.vmem [shape: f32[1,128], index: 6, kind: input, shape index: {}]
  %s7 = inlined_call_operand.vmem [shape: bf16[128,256], index: 7, kind: input, shape index: {}]
  %s8 = inlined_call_operand.vmem [shape: f32[1,256], index: 8, kind: input, shape index: {}]
  %s9 = inlined_call_operand.vmem [shape: bf16[256,128], index: 9, kind: input, shape index: {}]
  %s10 = inlined_call_operand.vmem [shape: f32[1,128], index: 10, kind: input, shape index: {}]
  %s11 = inlined_call_operand.vmem [shape: f32[8,128], index: 11, kind: output, shape index: {}]
  %s12 = sld [smem:[#allocation0]]
  $region99: #{mconvnet3_forward.1} parent=0
    _
  %s14 = ssub.s32 1, %s12
  %s15 = scalar_select 0, %s14, %s12
  // Predicated region
  $region2: #{mconvnet3_forward.1} parent=0 // pred_check
    _
  $region3: #{mconvnet3_forward.1} parent=0 // pred_check_branch
    %17 = sbr.rel (0) target = $region5
  $region4: #{mconvnet3_forward.1} parent=0 // pred_region
    _
  $region5: #{mconvnet3_forward.1} parent=0 // pred_fallthru
    _
  // Predicated region
  $region6: #{mconvnet3_forward.1} parent=0 // pred_check
    _
  $region7: #{mconvnet3_forward.1} parent=0 // pred_check_branch
    %19 = sbr.rel (0) target = $region9
  $region8: #{mconvnet3_forward.1} parent=0 // pred_region
    _
  $region9: #{mconvnet3_forward.1} parent=0 // pred_fallthru
    _
  // Predicated region
  $region10: #{mconvnet3_forward.1} parent=0 // pred_check
    _
  $region11: #{mconvnet3_forward.1} parent=0 // pred_check_branch
    %21 = sbr.rel (0) target = $region13
  $region12: #{mconvnet3_forward.1} parent=0 // pred_region
    _
  $region13: #{mconvnet3_forward.1} parent=0 // pred_fallthru
    _
  // Predicated region
  $region14: #{mconvnet3_forward.1} parent=0 // pred_check
    _
  $region15: #{mconvnet3_forward.1} parent=0 // pred_check_branch
    %23 = sbr.rel (0) target = $region17
  $region16: #{mconvnet3_forward.1} parent=0 // pred_region
    _
  $region17: #{mconvnet3_forward.1} parent=0 // pred_fallthru
    _
  // Predicated region
  $region18: #{mconvnet3_forward.1} parent=0 // pred_check
    _
  $region19: #{mconvnet3_forward.1} parent=0 // pred_check_branch
    %25 = sbr.rel (0) target = $region21
  $region20: #{mconvnet3_forward.1} parent=0 // pred_region
    _
  $region21: #{mconvnet3_forward.1} parent=0 // pred_fallthru
    _
  // Predicated region
  $region22: #{mconvnet3_forward.1} parent=0 // pred_check
    _
  $region23: #{mconvnet3_forward.1} parent=0 // pred_check_branch
    %27 = sbr.rel (0) target = $region25
  $region24: #{mconvnet3_forward.1} parent=0 // pred_region
    _
  $region25: #{mconvnet3_forward.1} parent=0 // pred_fallthru
    _
  // Predicated region
  $region26: #{mconvnet3_forward.1} parent=0 // pred_check
    _
  $region27: #{mconvnet3_forward.1} parent=0 // pred_check_branch
    %29 = sbr.rel (0) target = $region29
  $region28: #{mconvnet3_forward.1} parent=0 // pred_region
    _
  $region29: #{mconvnet3_forward.1} parent=0 // pred_fallthru
    _
  // Predicated region
  $region30: #{mconvnet3_forward.1} parent=0 // pred_check
    _
  $region31: #{mconvnet3_forward.1} parent=0 // pred_check_branch
    %31 = sbr.rel (0) target = $region33
  $region32: #{mconvnet3_forward.1} parent=0 // pred_region
    _
  $region33: #{mconvnet3_forward.1} parent=0 // pred_fallthru
    _
  // Predicated region
  $region34: #{mconvnet3_forward.1} parent=0 // pred_check
    _
  $region35: #{mconvnet3_forward.1} parent=0 // pred_check_branch
    %34 = sbr.rel (0) target = $region37
  $region36: #{mconvnet3_forward.1} parent=0 // pred_region
    loop: start=0, step=1, limit=1
    $region38: #{mconvnet3_forward.1} parent=36 // loop_pre_header
      _
    $region39: #{mconvnet3_forward.1} parent=36 // loop_header
      %s36 = sphi 0, %s40
      %p37 = scmp.ge.s32.totalorder %s36, 1
      %s41 = sphi %s4, %s4
      %s42 = sphi [#allocation2], [#allocation2]
    $region40: #{mconvnet3_forward.1} parent=36 // loop_header_branch
      %39 = sbr.rel (%p37) target = $region44
    $region41: #{mconvnet3_forward.1} parent=36 // loop_body
      %v43 = vld [vmem:[%s41] sm:$0xff]
      %44 = vst [vmem:[%s42] sm:$0xff] %v43
      %v45 = vld [vmem:[%s41 + $0x8] sm:$0xff]
      %46 = vst [vmem:[%s42 + $0x8] sm:$0xff] %v45
      %v47 = vld [vmem:[%s41 + $0x10] sm:$0xff]
      %48 = vst [vmem:[%s42 + $0x10] sm:$0xff] %v47
      %v49 = vld [vmem:[%s41 + $0x18] sm:$0xff]
      %50 = vst [vmem:[%s42 + $0x18] sm:$0xff] %v49
      %v51 = vld [vmem:[%s41 + $0x20] sm:$0xff]
      %52 = vst [vmem:[%s42 + $0x20] sm:$0xff] %v51
      %v53 = vld [vmem:[%s41 + $0x28] sm:$0xff]
      %54 = vst [vmem:[%s42 + $0x28] sm:$0xff] %v53
      %v55 = vld [vmem:[%s41 + $0x30] sm:$0xff]
      %56 = vst [vmem:[%s42 + $0x30] sm:$0xff] %v55
      %v57 = vld [vmem:[%s41 + $0x38] sm:$0xff]
      %58 = vst [vmem:[%s42 + $0x38] sm:$0xff] %v57
      %v59 = vld [vmem:[%s41 + $0x40] sm:$0xff]
      %60 = vst [vmem:[%s42 + $0x40] sm:$0xff] %v59
      %v61 = vld [vmem:[%s41 + $0x48] sm:$0xff]
      %62 = vst [vmem:[%s42 + $0x48] sm:$0xff] %v61
      %v63 = vld [vmem:[%s41 + $0x50] sm:$0xff]
      %64 = vst [vmem:[%s42 + $0x50] sm:$0xff] %v63
      %v65 = vld [vmem:[%s41 + $0x58] sm:$0xff]
      %66 = vst [vmem:[%s42 + $0x58] sm:$0xff] %v65
      %v67 = vld [vmem:[%s41 + $0x60] sm:$0xff]
      %68 = vst [vmem:[%s42 + $0x60] sm:$0xff] %v67
      %v69 = vld [vmem:[%s41 + $0x68] sm:$0xff]
      %70 = vst [vmem:[%s42 + $0x68] sm:$0xff] %v69
      %v71 = vld [vmem:[%s41 + $0x70] sm:$0xff]
      %72 = vst [vmem:[%s42 + $0x70] sm:$0xff] %v71
      %v73 = vld [vmem:[%s41 + $0x78] sm:$0xff]
      %74 = vst [vmem:[%s42 + $0x78] sm:$0xff] %v73
      %v75 = vld [vmem:[%s41 + $0x80] sm:$0xff]
      %76 = vst [vmem:[%s42 + $0x80] sm:$0xff] %v75
      %v77 = vld [vmem:[%s41 + $0x88] sm:$0xff]
      %78 = vst [vmem:[%s42 + $0x88] sm:$0xff] %v77
      %v79 = vld [vmem:[%s41 + $0x90] sm:$0xff]
      %80 = vst [vmem:[%s42 + $0x90] sm:$0xff] %v79
      %v81 = vld [vmem:[%s41 + $0x98] sm:$0xff]
      %82 = vst [vmem:[%s42 + $0x98] sm:$0xff] %v81
      %v83 = vld [vmem:[%s41 + $0xa0] sm:$0xff]
      %84 = vst [vmem:[%s42 + $0xa0] sm:$0xff] %v83
      %v85 = vld [vmem:[%s41 + $0xa8] sm:$0xff]
      %86 = vst [vmem:[%s42 + $0xa8] sm:$0xff] %v85
      %v87 = vld [vmem:[%s41 + $0xb0] sm:$0xff]
      %88 = vst [vmem:[%s42 + $0xb0] sm:$0xff] %v87
      %v89 = vld [vmem:[%s41 + $0xb8] sm:$0xff]
      %90 = vst [vmem:[%s42 + $0xb8] sm:$0xff] %v89
      %v91 = vld [vmem:[%s41 + $0xc0] sm:$0xff]
      %92 = vst [vmem:[%s42 + $0xc0] sm:$0xff] %v91
      %v93 = vld [vmem:[%s41 + $0xc8] sm:$0xff]
      %94 = vst [vmem:[%s42 + $0xc8] sm:$0xff] %v93
      %v95 = vld [vmem:[%s41 + $0xd0] sm:$0xff]
      %96 = vst [vmem:[%s42 + $0xd0] sm:$0xff] %v95
      %v97 = vld [vmem:[%s41 + $0xd8] sm:$0xff]
      %98 = vst [vmem:[%s42 + $0xd8] sm:$0xff] %v97
      %v99 = vld [vmem:[%s41 + $0xe0] sm:$0xff]
      %100 = vst [vmem:[%s42 + $0xe0] sm:$0xff] %v99
      %v101 = vld [vmem:[%s41 + $0xe8] sm:$0xff]
      %102 = vst [vmem:[%s42 + $0xe8] sm:$0xff] %v101
      %v103 = vld [vmem:[%s41 + $0xf0] sm:$0xff]
      %104 = vst [vmem:[%s42 + $0xf0] sm:$0xff] %v103
      %v105 = vld [vmem:[%s41 + $0xf8] sm:$0xff]
      %106 = vst [vmem:[%s42 + $0xf8] sm:$0xff] %v105
      %v107 = vld [vmem:[%s41 + $0x100] sm:$0xff]
      %108 = vst [vmem:[%s42 + $0x100] sm:$0xff] %v107
      %v109 = vld [vmem:[%s41 + $0x108] sm:$0xff]
      %110 = vst [vmem:[%s42 + $0x108] sm:$0xff] %v109
      %v111 = vld [vmem:[%s41 + $0x110] sm:$0xff]
      %112 = vst [vmem:[%s42 + $0x110] sm:$0xff] %v111
      %v113 = vld [vmem:[%s41 + $0x118] sm:$0xff]
      %114 = vst [vmem:[%s42 + $0x118] sm:$0xff] %v113
      %v115 = vld [vmem:[%s41 + $0x120] sm:$0xff]
      %116 = vst [vmem:[%s42 + $0x120] sm:$0xff] %v115
      %v117 = vld [vmem:[%s41 + $0x128] sm:$0xff]
      %118 = vst [vmem:[%s42 + $0x128] sm:$0xff] %v117
      %v119 = vld [vmem:[%s41 + $0x130] sm:$0xff]
      %120 = vst [vmem:[%s42 + $0x130] sm:$0xff] %v119
      %v121 = vld [vmem:[%s41 + $0x138] sm:$0xff]
      %122 = vst [vmem:[%s42 + $0x138] sm:$0xff] %v121
      %v123 = vld [vmem:[%s41 + $0x140] sm:$0xff]
      %124 = vst [vmem:[%s42 + $0x140] sm:$0xff] %v123
      %v125 = vld [vmem:[%s41 + $0x148] sm:$0xff]
      %126 = vst [vmem:[%s42 + $0x148] sm:$0xff] %v125
      %v127 = vld [vmem:[%s41 + $0x150] sm:$0xff]
      %128 = vst [vmem:[%s42 + $0x150] sm:$0xff] %v127
      %v129 = vld [vmem:[%s41 + $0x158] sm:$0xff]
      %130 = vst [vmem:[%s42 + $0x158] sm:$0xff] %v129
      %v131 = vld [vmem:[%s41 + $0x160] sm:$0xff]
      %132 = vst [vmem:[%s42 + $0x160] sm:$0xff] %v131
      %v133 = vld [vmem:[%s41 + $0x168] sm:$0xff]
      %134 = vst [vmem:[%s42 + $0x168] sm:$0xff] %v133
      %v135 = vld [vmem:[%s41 + $0x170] sm:$0xff]
      %136 = vst [vmem:[%s42 + $0x170] sm:$0xff] %v135
      %v137 = vld [vmem:[%s41 + $0x178] sm:$0xff]
      %138 = vst [vmem:[%s42 + $0x178] sm:$0xff] %v137
      %v139 = vld [vmem:[%s41 + $0x180] sm:$0xff]
      %140 = vst [vmem:[%s42 + $0x180] sm:$0xff] %v139
      %v141 = vld [vmem:[%s41 + $0x188] sm:$0xff]
      %142 = vst [vmem:[%s42 + $0x188] sm:$0xff] %v141
      %v143 = vld [vmem:[%s41 + $0x190] sm:$0xff]
      %144 = vst [vmem:[%s42 + $0x190] sm:$0xff] %v143
      %v145 = vld [vmem:[%s41 + $0x198] sm:$0xff]
      %146 = vst [vmem:[%s42 + $0x198] sm:$0xff] %v145
      %v147 = vld [vmem:[%s41 + $0x1a0] sm:$0xff]
      %148 = vst [vmem:[%s42 + $0x1a0] sm:$0xff] %v147
      %v149 = vld [vmem:[%s41 + $0x1a8] sm:$0xff]
      %150 = vst [vmem:[%s42 + $0x1a8] sm:$0xff] %v149
      %v151 = vld [vmem:[%s41 + $0x1b0] sm:$0xff]
      %152 = vst [vmem:[%s42 + $0x1b0] sm:$0xff] %v151
      %v153 = vld [vmem:[%s41 + $0x1b8] sm:$0xff]
      %154 = vst [vmem:[%s42 + $0x1b8] sm:$0xff] %v153
      %v155 = vld [vmem:[%s41 + $0x1c0] sm:$0xff]
      %156 = vst [vmem:[%s42 + $0x1c0] sm:$0xff] %v155
      %v157 = vld [vmem:[%s41 + $0x1c8] sm:$0xff]
      %158 = vst [vmem:[%s42 + $0x1c8] sm:$0xff] %v157
      %v159 = vld [vmem:[%s41 + $0x1d0] sm:$0xff]
      %160 = vst [vmem:[%s42 + $0x1d0] sm:$0xff] %v159
      %v161 = vld [vmem:[%s41 + $0x1d8] sm:$0xff]
      %162 = vst [vmem:[%s42 + $0x1d8] sm:$0xff] %v161
      %v163 = vld [vmem:[%s41 + $0x1e0] sm:$0xff]
      %164 = vst [vmem:[%s42 + $0x1e0] sm:$0xff] %v163
      %v165 = vld [vmem:[%s41 + $0x1e8] sm:$0xff]
      %166 = vst [vmem:[%s42 + $0x1e8] sm:$0xff] %v165
      %v167 = vld [vmem:[%s41 + $0x1f0] sm:$0xff]
      %168 = vst [vmem:[%s42 + $0x1f0] sm:$0xff] %v167
      %v169 = vld [vmem:[%s41 + $0x1f8] sm:$0xff]
      %170 = vst [vmem:[%s42 + $0x1f8] sm:$0xff] %v169
      %v171 = vld [vmem:[%s41 + $0x200] sm:$0xff]
      %172 = vst [vmem:[%s42 + $0x200] sm:$0xff] %v171
      %v173 = vld [vmem:[%s41 + $0x208] sm:$0xff]
      %174 = vst [vmem:[%s42 + $0x208] sm:$0xff] %v173
      %v175 = vld [vmem:[%s41 + $0x210] sm:$0xff]
      %176 = vst [vmem:[%s42 + $0x210] sm:$0xff] %v175
      %v177 = vld [vmem:[%s41 + $0x218] sm:$0xff]
      %178 = vst [vmem:[%s42 + $0x218] sm:$0xff] %v177
      %v179 = vld [vmem:[%s41 + $0x220] sm:$0xff]
      %180 = vst [vmem:[%s42 + $0x220] sm:$0xff] %v179
      %v181 = vld [vmem:[%s41 + $0x228] sm:$0xff]
      %182 = vst [vmem:[%s42 + $0x228] sm:$0xff] %v181
      %v183 = vld [vmem:[%s41 + $0x230] sm:$0xff]
      %184 = vst [vmem:[%s42 + $0x230] sm:$0xff] %v183
      %v185 = vld [vmem:[%s41 + $0x238] sm:$0xff]
      %186 = vst [vmem:[%s42 + $0x238] sm:$0xff] %v185
      %v187 = vld [vmem:[%s41 + $0x240] sm:$0xff]
      %188 = vst [vmem:[%s42 + $0x240] sm:$0xff] %v187
      %v189 = vld [vmem:[%s41 + $0x248] sm:$0xff]
      %190 = vst [vmem:[%s42 + $0x248] sm:$0xff] %v189
      %v191 = vld [vmem:[%s41 + $0x250] sm:$0xff]
      %192 = vst [vmem:[%s42 + $0x250] sm:$0xff] %v191
      %v193 = vld [vmem:[%s41 + $0x258] sm:$0xff]
      %194 = vst [vmem:[%s42 + $0x258] sm:$0xff] %v193
      %v195 = vld [vmem:[%s41 + $0x260] sm:$0xff]
      %196 = vst [vmem:[%s42 + $0x260] sm:$0xff] %v195
      %v197 = vld [vmem:[%s41 + $0x268] sm:$0xff]
      %198 = vst [vmem:[%s42 + $0x268] sm:$0xff] %v197
      %v199 = vld [vmem:[%s41 + $0x270] sm:$0xff]
      %200 = vst [vmem:[%s42 + $0x270] sm:$0xff] %v199
      %v201 = vld [vmem:[%s41 + $0x278] sm:$0xff]
      %202 = vst [vmem:[%s42 + $0x278] sm:$0xff] %v201
      %v203 = vld [vmem:[%s41 + $0x280] sm:$0xff]
      %204 = vst [vmem:[%s42 + $0x280] sm:$0xff] %v203
      %v205 = vld [vmem:[%s41 + $0x288] sm:$0xff]
      %206 = vst [vmem:[%s42 + $0x288] sm:$0xff] %v205
      %v207 = vld [vmem:[%s41 + $0x290] sm:$0xff]
      %208 = vst [vmem:[%s42 + $0x290] sm:$0xff] %v207
      %v209 = vld [vmem:[%s41 + $0x298] sm:$0xff]
      %210 = vst [vmem:[%s42 + $0x298] sm:$0xff] %v209
      %v211 = vld [vmem:[%s41 + $0x2a0] sm:$0xff]
      %212 = vst [vmem:[%s42 + $0x2a0] sm:$0xff] %v211
      %v213 = vld [vmem:[%s41 + $0x2a8] sm:$0xff]
      %214 = vst [vmem:[%s42 + $0x2a8] sm:$0xff] %v213
      %v215 = vld [vmem:[%s41 + $0x2b0] sm:$0xff]
      %216 = vst [vmem:[%s42 + $0x2b0] sm:$0xff] %v215
      %v217 = vld [vmem:[%s41 + $0x2b8] sm:$0xff]
      %218 = vst [vmem:[%s42 + $0x2b8] sm:$0xff] %v217
      %v219 = vld [vmem:[%s41 + $0x2c0] sm:$0xff]
      %220 = vst [vmem:[%s42 + $0x2c0] sm:$0xff] %v219
      %v221 = vld [vmem:[%s41 + $0x2c8] sm:$0xff]
      %222 = vst [vmem:[%s42 + $0x2c8] sm:$0xff] %v221
      %v223 = vld [vmem:[%s41 + $0x2d0] sm:$0xff]
      %224 = vst [vmem:[%s42 + $0x2d0] sm:$0xff] %v223
      %v225 = vld [vmem:[%s41 + $0x2d8] sm:$0xff]
      %226 = vst [vmem:[%s42 + $0x2d8] sm:$0xff] %v225
      %v227 = vld [vmem:[%s41 + $0x2e0] sm:$0xff]
      %228 = vst [vmem:[%s42 + $0x2e0] sm:$0xff] %v227
      %v229 = vld [vmem:[%s41 + $0x2e8] sm:$0xff]
      %230 = vst [vmem:[%s42 + $0x2e8] sm:$0xff] %v229
      %v231 = vld [vmem:[%s41 + $0x2f0] sm:$0xff]
      %232 = vst [vmem:[%s42 + $0x2f0] sm:$0xff] %v231
      %v233 = vld [vmem:[%s41 + $0x2f8] sm:$0xff]
      %234 = vst [vmem:[%s42 + $0x2f8] sm:$0xff] %v233
      %v235 = vld [vmem:[%s41 + $0x300] sm:$0xff]
      %236 = vst [vmem:[%s42 + $0x300] sm:$0xff] %v235
      %v237 = vld [vmem:[%s41 + $0x308] sm:$0xff]
      %238 = vst [vmem:[%s42 + $0x308] sm:$0xff] %v237
      %v239 = vld [vmem:[%s41 + $0x310] sm:$0xff]
      %240 = vst [vmem:[%s42 + $0x310] sm:$0xff] %v239
      %v241 = vld [vmem:[%s41 + $0x318] sm:$0xff]
      %242 = vst [vmem:[%s42 + $0x318] sm:$0xff] %v241
      %v243 = vld [vmem:[%s41 + $0x320] sm:$0xff]
      %244 = vst [vmem:[%s42 + $0x320] sm:$0xff] %v243
      %v245 = vld [vmem:[%s41 + $0x328] sm:$0xff]
      %246 = vst [vmem:[%s42 + $0x328] sm:$0xff] %v245
      %v247 = vld [vmem:[%s41 + $0x330] sm:$0xff]
      %248 = vst [vmem:[%s42 + $0x330] sm:$0xff] %v247
      %v249 = vld [vmem:[%s41 + $0x338] sm:$0xff]
      %250 = vst [vmem:[%s42 + $0x338] sm:$0xff] %v249
      %v251 = vld [vmem:[%s41 + $0x340] sm:$0xff]
      %252 = vst [vmem:[%s42 + $0x340] sm:$0xff] %v251
      %v253 = vld [vmem:[%s41 + $0x348] sm:$0xff]
      %254 = vst [vmem:[%s42 + $0x348] sm:$0xff] %v253
      %v255 = vld [vmem:[%s41 + $0x350] sm:$0xff]
      %256 = vst [vmem:[%s42 + $0x350] sm:$0xff] %v255
      %v257 = vld [vmem:[%s41 + $0x358] sm:$0xff]
      %258 = vst [vmem:[%s42 + $0x358] sm:$0xff] %v257
      %v259 = vld [vmem:[%s41 + $0x360] sm:$0xff]
      %260 = vst [vmem:[%s42 + $0x360] sm:$0xff] %v259
      %v261 = vld [vmem:[%s41 + $0x368] sm:$0xff]
      %262 = vst [vmem:[%s42 + $0x368] sm:$0xff] %v261
      %v263 = vld [vmem:[%s41 + $0x370] sm:$0xff]
      %264 = vst [vmem:[%s42 + $0x370] sm:$0xff] %v263
      %v265 = vld [vmem:[%s41 + $0x378] sm:$0xff]
      %266 = vst [vmem:[%s42 + $0x378] sm:$0xff] %v265
      %v267 = vld [vmem:[%s41 + $0x380] sm:$0xff]
      %268 = vst [vmem:[%s42 + $0x380] sm:$0xff] %v267
      %v269 = vld [vmem:[%s41 + $0x388] sm:$0xff]
      %270 = vst [vmem:[%s42 + $0x388] sm:$0xff] %v269
      %v271 = vld [vmem:[%s41 + $0x390] sm:$0xff]
      %272 = vst [vmem:[%s42 + $0x390] sm:$0xff] %v271
      %v273 = vld [vmem:[%s41 + $0x398] sm:$0xff]
      %274 = vst [vmem:[%s42 + $0x398] sm:$0xff] %v273
      %v275 = vld [vmem:[%s41 + $0x3a0] sm:$0xff]
      %276 = vst [vmem:[%s42 + $0x3a0] sm:$0xff] %v275
      %v277 = vld [vmem:[%s41 + $0x3a8] sm:$0xff]
      %278 = vst [vmem:[%s42 + $0x3a8] sm:$0xff] %v277
      %v279 = vld [vmem:[%s41 + $0x3b0] sm:$0xff]
      %280 = vst [vmem:[%s42 + $0x3b0] sm:$0xff] %v279
      %v281 = vld [vmem:[%s41 + $0x3b8] sm:$0xff]
      %282 = vst [vmem:[%s42 + $0x3b8] sm:$0xff] %v281
      %v283 = vld [vmem:[%s41 + $0x3c0] sm:$0xff]
      %284 = vst [vmem:[%s42 + $0x3c0] sm:$0xff] %v283
      %v285 = vld [vmem:[%s41 + $0x3c8] sm:$0xff]
      %286 = vst [vmem:[%s42 + $0x3c8] sm:$0xff] %v285
      %v287 = vld [vmem:[%s41 + $0x3d0] sm:$0xff]
      %288 = vst [vmem:[%s42 + $0x3d0] sm:$0xff] %v287
      %v289 = vld [vmem:[%s41 + $0x3d8] sm:$0xff]
      %290 = vst [vmem:[%s42 + $0x3d8] sm:$0xff] %v289
      %v291 = vld [vmem:[%s41 + $0x3e0] sm:$0xff]
      %292 = vst [vmem:[%s42 + $0x3e0] sm:$0xff] %v291
      %v293 = vld [vmem:[%s41 + $0x3e8] sm:$0xff]
      %294 = vst [vmem:[%s42 + $0x3e8] sm:$0xff] %v293
      %v295 = vld [vmem:[%s41 + $0x3f0] sm:$0xff]
      %296 = vst [vmem:[%s42 + $0x3f0] sm:$0xff] %v295
      %v297 = vld [vmem:[%s41 + $0x3f8] sm:$0xff]
      %298 = vst [vmem:[%s42 + $0x3f8] sm:$0xff] %v297
      %v299 = vld [vmem:[%s41 + $0x400] sm:$0xff]
      %300 = vst [vmem:[%s42 + $0x400] sm:$0xff] %v299
      %v301 = vld [vmem:[%s41 + $0x408] sm:$0xff]
      %302 = vst [vmem:[%s42 + $0x408] sm:$0xff] %v301
      %v303 = vld [vmem:[%s41 + $0x410] sm:$0xff]
      %304 = vst [vmem:[%s42 + $0x410] sm:$0xff] %v303
      %v305 = vld [vmem:[%s41 + $0x418] sm:$0xff]
      %306 = vst [vmem:[%s42 + $0x418] sm:$0xff] %v305
      %v307 = vld [vmem:[%s41 + $0x420] sm:$0xff]
      %308 = vst [vmem:[%s42 + $0x420] sm:$0xff] %v307
      %v309 = vld [vmem:[%s41 + $0x428] sm:$0xff]
      %310 = vst [vmem:[%s42 + $0x428] sm:$0xff] %v309
      %v311 = vld [vmem:[%s41 + $0x430] sm:$0xff]
      %312 = vst [vmem:[%s42 + $0x430] sm:$0xff] %v311
      %v313 = vld [vmem:[%s41 + $0x438] sm:$0xff]
      %314 = vst [vmem:[%s42 + $0x438] sm:$0xff] %v313
      %v315 = vld [vmem:[%s41 + $0x440] sm:$0xff]
      %316 = vst [vmem:[%s42 + $0x440] sm:$0xff] %v315
      %v317 = vld [vmem:[%s41 + $0x448] sm:$0xff]
      %318 = vst [vmem:[%s42 + $0x448] sm:$0xff] %v317
      %v319 = vld [vmem:[%s41 + $0x450] sm:$0xff]
      %320 = vst [vmem:[%s42 + $0x450] sm:$0xff] %v319
      %v321 = vld [vmem:[%s41 + $0x458] sm:$0xff]
      %322 = vst [vmem:[%s42 + $0x458] sm:$0xff] %v321
      %v323 = vld [vmem:[%s41 + $0x460] sm:$0xff]
      %324 = vst [vmem:[%s42 + $0x460] sm:$0xff] %v323
      %v325 = vld [vmem:[%s41 + $0x468] sm:$0xff]
      %326 = vst [vmem:[%s42 + $0x468] sm:$0xff] %v325
      %v327 = vld [vmem:[%s41 + $0x470] sm:$0xff]
      %328 = vst [vmem:[%s42 + $0x470] sm:$0xff] %v327
      %v329 = vld [vmem:[%s41 + $0x478] sm:$0xff]
      %330 = vst [vmem:[%s42 + $0x478] sm:$0xff] %v329
      %v331 = vld [vmem:[%s41 + $0x480] sm:$0xff]
      %332 = vst [vmem:[%s42 + $0x480] sm:$0xff] %v331
      %v333 = vld [vmem:[%s41 + $0x488] sm:$0xff]
      %334 = vst [vmem:[%s42 + $0x488] sm:$0xff] %v333
      %v335 = vld [vmem:[%s41 + $0x490] sm:$0xff]
      %336 = vst [vmem:[%s42 + $0x490] sm:$0xff] %v335
      %v337 = vld [vmem:[%s41 + $0x498] sm:$0xff]
      %338 = vst [vmem:[%s42 + $0x498] sm:$0xff] %v337
      %v339 = vld [vmem:[%s41 + $0x4a0] sm:$0xff]
      %340 = vst [vmem:[%s42 + $0x4a0] sm:$0xff] %v339
      %v341 = vld [vmem:[%s41 + $0x4a8] sm:$0xff]
      %342 = vst [vmem:[%s42 + $0x4a8] sm:$0xff] %v341
      %v343 = vld [vmem:[%s41 + $0x4b0] sm:$0xff]
      %344 = vst [vmem:[%s42 + $0x4b0] sm:$0xff] %v343
      %v345 = vld [vmem:[%s41 + $0x4b8] sm:$0xff]
      %346 = vst [vmem:[%s42 + $0x4b8] sm:$0xff] %v345
      %v347 = vld [vmem:[%s41 + $0x4c0] sm:$0xff]
      %348 = vst [vmem:[%s42 + $0x4c0] sm:$0xff] %v347
      %v349 = vld [vmem:[%s41 + $0x4c8] sm:$0xff]
      %350 = vst [vmem:[%s42 + $0x4c8] sm:$0xff] %v349
      %v351 = vld [vmem:[%s41 + $0x4d0] sm:$0xff]
      %352 = vst [vmem:[%s42 + $0x4d0] sm:$0xff] %v351
      %v353 = vld [vmem:[%s41 + $0x4d8] sm:$0xff]
      %354 = vst [vmem:[%s42 + $0x4d8] sm:$0xff] %v353
      %v355 = vld [vmem:[%s41 + $0x4e0] sm:$0xff]
      %356 = vst [vmem:[%s42 + $0x4e0] sm:$0xff] %v355
      %v357 = vld [vmem:[%s41 + $0x4e8] sm:$0xff]
      %358 = vst [vmem:[%s42 + $0x4e8] sm:$0xff] %v357
      %v359 = vld [vmem:[%s41 + $0x4f0] sm:$0xff]
      %360 = vst [vmem:[%s42 + $0x4f0] sm:$0xff] %v359
      %v361 = vld [vmem:[%s41 + $0x4f8] sm:$0xff]
      %362 = vst [vmem:[%s42 + $0x4f8] sm:$0xff] %v361
      %v363 = vld [vmem:[%s41 + $0x500] sm:$0xff]
      %364 = vst [vmem:[%s42 + $0x500] sm:$0xff] %v363
      %v365 = vld [vmem:[%s41 + $0x508] sm:$0xff]
      %366 = vst [vmem:[%s42 + $0x508] sm:$0xff] %v365
      %v367 = vld [vmem:[%s41 + $0x510] sm:$0xff]
      %368 = vst [vmem:[%s42 + $0x510] sm:$0xff] %v367
      %v369 = vld [vmem:[%s41 + $0x518] sm:$0xff]
      %370 = vst [vmem:[%s42 + $0x518] sm:$0xff] %v369
      %v371 = vld [vmem:[%s41 + $0x520] sm:$0xff]
      %372 = vst [vmem:[%s42 + $0x520] sm:$0xff] %v371
      %v373 = vld [vmem:[%s41 + $0x528] sm:$0xff]
      %374 = vst [vmem:[%s42 + $0x528] sm:$0xff] %v373
      %v375 = vld [vmem:[%s41 + $0x530] sm:$0xff]
      %376 = vst [vmem:[%s42 + $0x530] sm:$0xff] %v375
      %v377 = vld [vmem:[%s41 + $0x538] sm:$0xff]
      %378 = vst [vmem:[%s42 + $0x538] sm:$0xff] %v377
      %v379 = vld [vmem:[%s41 + $0x540] sm:$0xff]
      %380 = vst [vmem:[%s42 + $0x540] sm:$0xff] %v379
      %v381 = vld [vmem:[%s41 + $0x548] sm:$0xff]
      %382 = vst [vmem:[%s42 + $0x548] sm:$0xff] %v381
      %v383 = vld [vmem:[%s41 + $0x550] sm:$0xff]
      %384 = vst [vmem:[%s42 + $0x550] sm:$0xff] %v383
      %v385 = vld [vmem:[%s41 + $0x558] sm:$0xff]
      %386 = vst [vmem:[%s42 + $0x558] sm:$0xff] %v385
      %v387 = vld [vmem:[%s41 + $0x560] sm:$0xff]
      %388 = vst [vmem:[%s42 + $0x560] sm:$0xff] %v387
      %v389 = vld [vmem:[%s41 + $0x568] sm:$0xff]
      %390 = vst [vmem:[%s42 + $0x568] sm:$0xff] %v389
      %v391 = vld [vmem:[%s41 + $0x570] sm:$0xff]
      %392 = vst [vmem:[%s42 + $0x570] sm:$0xff] %v391
      %v393 = vld [vmem:[%s41 + $0x578] sm:$0xff]
      %394 = vst [vmem:[%s42 + $0x578] sm:$0xff] %v393
      %v395 = vld [vmem:[%s41 + $0x580] sm:$0xff]
      %396 = vst [vmem:[%s42 + $0x580] sm:$0xff] %v395
      %v397 = vld [vmem:[%s41 + $0x588] sm:$0xff]
      %398 = vst [vmem:[%s42 + $0x588] sm:$0xff] %v397
      %v399 = vld [vmem:[%s41 + $0x590] sm:$0xff]
      %400 = vst [vmem:[%s42 + $0x590] sm:$0xff] %v399
      %v401 = vld [vmem:[%s41 + $0x598] sm:$0xff]
      %402 = vst [vmem:[%s42 + $0x598] sm:$0xff] %v401
      %v403 = vld [vmem:[%s41 + $0x5a0] sm:$0xff]
      %404 = vst [vmem:[%s42 + $0x5a0] sm:$0xff] %v403
      %v405 = vld [vmem:[%s41 + $0x5a8] sm:$0xff]
      %406 = vst [vmem:[%s42 + $0x5a8] sm:$0xff] %v405
      %v407 = vld [vmem:[%s41 + $0x5b0] sm:$0xff]
      %408 = vst [vmem:[%s42 + $0x5b0] sm:$0xff] %v407
      %v409 = vld [vmem:[%s41 + $0x5b8] sm:$0xff]
      %410 = vst [vmem:[%s42 + $0x5b8] sm:$0xff] %v409
      %v411 = vld [vmem:[%s41 + $0x5c0] sm:$0xff]
      %412 = vst [vmem:[%s42 + $0x5c0] sm:$0xff] %v411
      %v413 = vld [vmem:[%s41 + $0x5c8] sm:$0xff]
      %414 = vst [vmem:[%s42 + $0x5c8] sm:$0xff] %v413
      %v415 = vld [vmem:[%s41 + $0x5d0] sm:$0xff]
      %416 = vst [vmem:[%s42 + $0x5d0] sm:$0xff] %v415
      %v417 = vld [vmem:[%s41 + $0x5d8] sm:$0xff]
      %418 = vst [vmem:[%s42 + $0x5d8] sm:$0xff] %v417
      %v419 = vld [vmem:[%s41 + $0x5e0] sm:$0xff]
      %420 = vst [vmem:[%s42 + $0x5e0] sm:$0xff] %v419
      %v421 = vld [vmem:[%s41 + $0x5e8] sm:$0xff]
      %422 = vst [vmem:[%s42 + $0x5e8] sm:$0xff] %v421
      %v423 = vld [vmem:[%s41 + $0x5f0] sm:$0xff]
      %424 = vst [vmem:[%s42 + $0x5f0] sm:$0xff] %v423
      %v425 = vld [vmem:[%s41 + $0x5f8] sm:$0xff]
      %426 = vst [vmem:[%s42 + $0x5f8] sm:$0xff] %v425
      %v427 = vld [vmem:[%s41 + $0x600] sm:$0xff]
      %428 = vst [vmem:[%s42 + $0x600] sm:$0xff] %v427
      %v429 = vld [vmem:[%s41 + $0x608] sm:$0xff]
      %430 = vst [vmem:[%s42 + $0x608] sm:$0xff] %v429
      %v431 = vld [vmem:[%s41 + $0x610] sm:$0xff]
      %432 = vst [vmem:[%s42 + $0x610] sm:$0xff] %v431
      %v433 = vld [vmem:[%s41 + $0x618] sm:$0xff]
      %434 = vst [vmem:[%s42 + $0x618] sm:$0xff] %v433
      %v435 = vld [vmem:[%s41 + $0x620] sm:$0xff]
      %436 = vst [vmem:[%s42 + $0x620] sm:$0xff] %v435
      %v437 = vld [vmem:[%s41 + $0x628] sm:$0xff]
      %438 = vst [vmem:[%s42 + $0x628] sm:$0xff] %v437
      %v439 = vld [vmem:[%s41 + $0x630] sm:$0xff]
      %440 = vst [vmem:[%s42 + $0x630] sm:$0xff] %v439
      %v441 = vld [vmem:[%s41 + $0x638] sm:$0xff]
      %442 = vst [vmem:[%s42 + $0x638] sm:$0xff] %v441
    $region42: #{mconvnet3_forward.1} parent=36 // loop_footer
      %s40 = sadd.s32 1, %s36
    $region43: #{mconvnet3_forward.1} parent=36 // loop_footer_branch
      %35 = sbr.rel target = $region39
    $region44: #{mconvnet3_forward.1} parent=36 // loop_exit
      _
  $region37: #{mconvnet3_forward.1} parent=0 // pred_fallthru
    _
  // Predicated region
  $region45: #{mconvnet3_forward.1} parent=0 // pred_check
    _
  $region46: #{mconvnet3_forward.1} parent=0 // pred_check_branch
    %444 = sbr.rel target = $region48
  $region47: #{mconvnet3_forward.1} parent=0 // pred_region
    _
  $region48: #{mconvnet3_forward.1} parent=0 // pred_fallthru
    _
  // Predicated region
  $region49: #{mconvnet3_forward.1} parent=0 // pred_check
    _
  $region50: #{mconvnet3_forward.1} parent=0 // pred_check_branch
    %447 = sbr.rel (0) target = $region52
  $region51: #{mconvnet3_forward.1} parent=0 // pred_region
    %448 = vsyncadd [#allocation6], 25600
  $region52: #{mconvnet3_forward.1} parent=0 // pred_fallthru
    _
  %s449 = scalar_lea.sflag [#allocation6], 1
  // Predicated region
  $region53: #{mconvnet3_forward.1} parent=0 // pred_check
    _
  $region54: #{mconvnet3_forward.1} parent=0 // pred_check_branch
    %451 = sbr.rel (0) target = $region56
  $region55: #{mconvnet3_forward.1} parent=0 // pred_region
    loop: start=0, step=1, limit=1
    $region57: #{mconvnet3_forward.1} parent=55 // loop_pre_header
      _
    $region58: #{mconvnet3_forward.1} parent=55 // loop_header
      %s453 = sphi 0, %s457
      %p454 = scmp.ge.s32.totalorder %s453, 1
      %s458 = sphi %s7, %s7
      %s459 = sphi [#allocation3], [#allocation3]
    $region59: #{mconvnet3_forward.1} parent=55 // loop_header_branch
      %456 = sbr.rel (%p454) target = $region63
    $region60: #{mconvnet3_forward.1} parent=55 // loop_body
      %v460 = vld [vmem:[%s458] sm:$0xff]
      %461 = vst [vmem:[%s459] sm:$0xff] %v460
      %v462 = vld [vmem:[%s458 + $0x8] sm:$0xff]
      %463 = vst [vmem:[%s459 + $0x8] sm:$0xff] %v462
      %v464 = vld [vmem:[%s458 + $0x10] sm:$0xff]
      %465 = vst [vmem:[%s459 + $0x10] sm:$0xff] %v464
      %v466 = vld [vmem:[%s458 + $0x18] sm:$0xff]
      %467 = vst [vmem:[%s459 + $0x18] sm:$0xff] %v466
      %v468 = vld [vmem:[%s458 + $0x20] sm:$0xff]
      %469 = vst [vmem:[%s459 + $0x20] sm:$0xff] %v468
      %v470 = vld [vmem:[%s458 + $0x28] sm:$0xff]
      %471 = vst [vmem:[%s459 + $0x28] sm:$0xff] %v470
      %v472 = vld [vmem:[%s458 + $0x30] sm:$0xff]
      %473 = vst [vmem:[%s459 + $0x30] sm:$0xff] %v472
      %v474 = vld [vmem:[%s458 + $0x38] sm:$0xff]
      %475 = vst [vmem:[%s459 + $0x38] sm:$0xff] %v474
      %v476 = vld [vmem:[%s458 + $0x40] sm:$0xff]
      %477 = vst [vmem:[%s459 + $0x40] sm:$0xff] %v476
      %v478 = vld [vmem:[%s458 + $0x48] sm:$0xff]
      %479 = vst [vmem:[%s459 + $0x48] sm:$0xff] %v478
      %v480 = vld [vmem:[%s458 + $0x50] sm:$0xff]
      %481 = vst [vmem:[%s459 + $0x50] sm:$0xff] %v480
      %v482 = vld [vmem:[%s458 + $0x58] sm:$0xff]
      %483 = vst [vmem:[%s459 + $0x58] sm:$0xff] %v482
      %v484 = vld [vmem:[%s458 + $0x60] sm:$0xff]
      %485 = vst [vmem:[%s459 + $0x60] sm:$0xff] %v484
      %v486 = vld [vmem:[%s458 + $0x68] sm:$0xff]
      %487 = vst [vmem:[%s459 + $0x68] sm:$0xff] %v486
      %v488 = vld [vmem:[%s458 + $0x70] sm:$0xff]
      %489 = vst [vmem:[%s459 + $0x70] sm:$0xff] %v488
      %v490 = vld [vmem:[%s458 + $0x78] sm:$0xff]
      %491 = vst [vmem:[%s459 + $0x78] sm:$0xff] %v490
    $region61: #{mconvnet3_forward.1} parent=55 // loop_footer
      %s457 = sadd.s32 1, %s453
    $region62: #{mconvnet3_forward.1} parent=55 // loop_footer_branch
      %452 = sbr.rel target = $region58
    $region63: #{mconvnet3_forward.1} parent=55 // loop_exit
      _
  $region56: #{mconvnet3_forward.1} parent=0 // pred_fallthru
    _
  // Predicated region
  $region64: #{mconvnet3_forward.1} parent=0 // pred_check
    _
  $region65: #{mconvnet3_forward.1} parent=0 // pred_check_branch
    %493 = sbr.rel target = $region67
  $region66: #{mconvnet3_forward.1} parent=0 // pred_region
    _
  $region67: #{mconvnet3_forward.1} parent=0 // pred_fallthru
    _
  // Predicated region
  $region68: #{mconvnet3_forward.1} parent=0 // pred_check
    _
  $region69: #{mconvnet3_forward.1} parent=0 // pred_check_branch
    %496 = sbr.rel (0) target = $region71
  $region70: #{mconvnet3_forward.1} parent=0 // pred_region
    %497 = vsyncadd %s449, 2048
  $region71: #{mconvnet3_forward.1} parent=0 // pred_fallthru
    _
  %s498 = scalar_lea.sflag [#allocation6], 2
  // Predicated region
  $region72: #{mconvnet3_forward.1} parent=0 // pred_check
    _
  $region73: #{mconvnet3_forward.1} parent=0 // pred_check_branch
    %500 = sbr.rel (0) target = $region75
  $region74: #{mconvnet3_forward.1} parent=0 // pred_region
    loop: start=0, step=1, limit=1
    $region76: #{mconvnet3_forward.1} parent=74 // loop_pre_header
      _
    $region77: #{mconvnet3_forward.1} parent=74 // loop_header
      %s502 = sphi 0, %s506
      %p503 = scmp.ge.s32.totalorder %s502, 1
      %s507 = sphi %s9, %s9
      %s508 = sphi [#allocation4], [#allocation4]
    $region78: #{mconvnet3_forward.1} parent=74 // loop_header_branch
      %505 = sbr.rel (%p503) target = $region82
    $region79: #{mconvnet3_forward.1} parent=74 // loop_body
      %v509 = vld [vmem:[%s507] sm:$0xff]
      %510 = vst [vmem:[%s508] sm:$0xff] %v509
      %v511 = vld [vmem:[%s507 + $0x8] sm:$0xff]
      %512 = vst [vmem:[%s508 + $0x8] sm:$0xff] %v511
      %v513 = vld [vmem:[%s507 + $0x10] sm:$0xff]
      %514 = vst [vmem:[%s508 + $0x10] sm:$0xff] %v513
      %v515 = vld [vmem:[%s507 + $0x18] sm:$0xff]
      %516 = vst [vmem:[%s508 + $0x18] sm:$0xff] %v515
      %v517 = vld [vmem:[%s507 + $0x20] sm:$0xff]
      %518 = vst [vmem:[%s508 + $0x20] sm:$0xff] %v517
      %v519 = vld [vmem:[%s507 + $0x28] sm:$0xff]
      %520 = vst [vmem:[%s508 + $0x28] sm:$0xff] %v519
      %v521 = vld [vmem:[%s507 + $0x30] sm:$0xff]
      %522 = vst [vmem:[%s508 + $0x30] sm:$0xff] %v521
      %v523 = vld [vmem:[%s507 + $0x38] sm:$0xff]
      %524 = vst [vmem:[%s508 + $0x38] sm:$0xff] %v523
      %v525 = vld [vmem:[%s507 + $0x40] sm:$0xff]
      %526 = vst [vmem:[%s508 + $0x40] sm:$0xff] %v525
      %v527 = vld [vmem:[%s507 + $0x48] sm:$0xff]
      %528 = vst [vmem:[%s508 + $0x48] sm:$0xff] %v527
      %v529 = vld [vmem:[%s507 + $0x50] sm:$0xff]
      %530 = vst [vmem:[%s508 + $0x50] sm:$0xff] %v529
      %v531 = vld [vmem:[%s507 + $0x58] sm:$0xff]
      %532 = vst [vmem:[%s508 + $0x58] sm:$0xff] %v531
      %v533 = vld [vmem:[%s507 + $0x60] sm:$0xff]
      %534 = vst [vmem:[%s508 + $0x60] sm:$0xff] %v533
      %v535 = vld [vmem:[%s507 + $0x68] sm:$0xff]
      %536 = vst [vmem:[%s508 + $0x68] sm:$0xff] %v535
      %v537 = vld [vmem:[%s507 + $0x70] sm:$0xff]
      %538 = vst [vmem:[%s508 + $0x70] sm:$0xff] %v537
      %v539 = vld [vmem:[%s507 + $0x78] sm:$0xff]
      %540 = vst [vmem:[%s508 + $0x78] sm:$0xff] %v539
    $region80: #{mconvnet3_forward.1} parent=74 // loop_footer
      %s506 = sadd.s32 1, %s502
    $region81: #{mconvnet3_forward.1} parent=74 // loop_footer_branch
      %501 = sbr.rel target = $region77
    $region82: #{mconvnet3_forward.1} parent=74 // loop_exit
      _
  $region75: #{mconvnet3_forward.1} parent=0 // pred_fallthru
    _
  // Predicated region
  $region83: #{mconvnet3_forward.1} parent=0 // pred_check
    _
  $region84: #{mconvnet3_forward.1} parent=0 // pred_check_branch
    %542 = sbr.rel target = $region86
  $region85: #{mconvnet3_forward.1} parent=0 // pred_region
    _
  $region86: #{mconvnet3_forward.1} parent=0 // pred_fallthru
    _
  // Predicated region
  $region87: #{mconvnet3_forward.1} parent=0 // pred_check
    _
  $region88: #{mconvnet3_forward.1} parent=0 // pred_check_branch
    %545 = sbr.rel (0) target = $region90
  $region89: #{mconvnet3_forward.1} parent=0 // pred_region
    %546 = vsyncadd %s498, 2048
  $region90: #{mconvnet3_forward.1} parent=0 // pred_fallthru
    _
  %v547 = vld [vmem:[%s0] sm:$0xf]
  %v548 = vld [vmem:[%s0 + $0x4] sm:$0xf]
  %v549 = vld [vmem:[%s0 + $0x8] sm:$0xf]
  %v550 = vld [vmem:[%s0 + $0xc] sm:$0xf]
  %v551 = vld [vmem:[%s0 + $0x10] sm:$0xf]
  %v552 = vld [vmem:[%s0 + $0x14] sm:$0xf]
  %v553 = vld [vmem:[%s0 + $0x18] sm:$0xf]
  %v554 = vld [vmem:[%s0 + $0x1c] sm:$0xf]
  %v555 = vld [vmem:[%s0 + $0x20] sm:$0xf]
  %v556 = vld [vmem:[%s0 + $0x24] sm:$0xf]
  %v557 = vld [vmem:[%s0 + $0x28] sm:$0xf]
  %v558 = vld [vmem:[%s0 + $0x2c] sm:$0xf]
  %v559 = vld [vmem:[%s0 + $0x30] sm:$0xf]
  %v560 = vld [vmem:[%s0 + $0x34] sm:$0xf]
  %v561 = vld [vmem:[%s0 + $0x38] sm:$0xf]
  %v562 = vld [vmem:[%s0 + $0x3c] sm:$0xf]
  %v563 = vld [vmem:[%s0 + $0x40] sm:$0xf]
  %v564 = vld [vmem:[%s0 + $0x44] sm:$0xf]
  %v565 = vld [vmem:[%s0 + $0x48] sm:$0xf]
  %v566 = vld [vmem:[%s0 + $0x4c] sm:$0xf]
  %v567 = vld [vmem:[%s0 + $0x50] sm:$0xf]
  %v568 = vld [vmem:[%s0 + $0x54] sm:$0xf]
  %v569 = vld [vmem:[%s0 + $0x58] sm:$0xf]
  %v570 = vld [vmem:[%s0 + $0x5c] sm:$0xf]
  %v571 = vld [vmem:[%s0 + $0x60] sm:$0xf]
  %v572 = vld [vmem:[%s0 + $0x64] sm:$0xf]
  %v573 = vld [vmem:[%s0 + $0x68] sm:$0xf]
  %v574 = vld [vmem:[%s0 + $0x6c] sm:$0xf]
  %v575 = vld [vmem:[%s0 + $0x70] sm:$0xf]
  %v576 = vld [vmem:[%s0 + $0x74] sm:$0xf]
  %v577 = vld [vmem:[%s0 + $0x78] sm:$0xf]
  %v578 = vld [vmem:[%s0 + $0x7c] sm:$0xf]
  %v579 = vld [vmem:[%s0 + $0x80] sm:$0xf]
  %v580 = vld [vmem:[%s0 + $0x84] sm:$0xf]
  %v581 = vld [vmem:[%s0 + $0x88] sm:$0xf]
  %v582 = vld [vmem:[%s0 + $0x8c] sm:$0xf]
  %v583 = vld [vmem:[%s1] sm:$0xf]
  %v584 = vld [vmem:[%s1 + $0x4] sm:$0xf]
  %v585 = vld [vmem:[%s1 + $0x8] sm:$0xf]
  %v586 = vld [vmem:[%s1 + $0xc] sm:$0xf]
  %v587 = vld [vmem:[%s1 + $0x10] sm:$0xf]
  %v588 = vld [vmem:[%s1 + $0x14] sm:$0xf]
  %v589 = vld [vmem:[%s1 + $0x18] sm:$0xf]
  %v590 = vld [vmem:[%s1 + $0x1c] sm:$0xf]
  %v591 = vld [vmem:[%s1 + $0x20] sm:$0xf]
  %v592 = vld [vmem:[%s1 + $0x24] sm:$0xf]
  %v593 = vld [vmem:[%s1 + $0x28] sm:$0xf]
  %v594 = vld [vmem:[%s1 + $0x2c] sm:$0xf]
  %v595 = vld [vmem:[%s1 + $0x30] sm:$0xf]
  %v596 = vld [vmem:[%s1 + $0x34] sm:$0xf]
  %v597 = vld [vmem:[%s1 + $0x38] sm:$0xf]
  %v598 = vld [vmem:[%s1 + $0x3c] sm:$0xf]
  %v635 = vunpack.c.l.b16 %v547
  %v636 = vunpack.c.l.b16 %v548
  %v637 = vunpack.c.l.b16 %v549
  %v638 = vunpack.c.l.b16 %v550
  %v639 = vunpack.c.l.b16 %v551
  %v640 = vunpack.c.l.b16 %v552
  %v641 = vunpack.c.l.b16 %v553
  %v642 = vunpack.c.l.b16 %v554
  %v643 = vunpack.c.l.b16 %v555
  %v644 = vunpack.c.l.b16 %v556
  %v645 = vunpack.c.l.b16 %v557
  %v646 = vunpack.c.l.b16 %v558
  %v647 = vunpack.c.l.b16 %v559
  %v648 = vunpack.c.l.b16 %v560
  %v649 = vunpack.c.l.b16 %v561
  %v650 = vunpack.c.l.b16 %v562
  %v651 = vunpack.c.l.b16 %v563
  %v652 = vunpack.c.l.b16 %v564
  %v653 = vunpack.c.l.b16 %v565
  %v654 = vunpack.c.l.b16 %v566
  %v655 = vunpack.c.l.b16 %v567
  %v656 = vunpack.c.l.b16 %v568
  %v657 = vunpack.c.l.b16 %v569
  %v658 = vunpack.c.l.b16 %v570
  %v659 = vunpack.c.l.b16 %v571
  %v660 = vunpack.c.l.b16 %v572
  %v661 = vunpack.c.l.b16 %v573
  %v662 = vunpack.c.l.b16 %v574
  %v663 = vunpack.c.l.b16 %v575
  %v664 = vunpack.c.l.b16 %v576
  %v665 = vunpack.c.l.b16 %v577
  %v666 = vunpack.c.l.b16 %v578
  %v667 = vunpack.c.l.b16 %v579
  %v668 = vunpack.c.l.b16 %v580
  %v669 = vunpack.c.l.b16 %v581
  %v670 = vunpack.c.l.b16 %v582
  %v671 = vpack.c.b16 %v636, %v635
  %v672 = vpack.c.b16 %v638, %v637
  %v673 = vpack.c.b16 %v640, %v639
  %v674 = vpack.c.b16 %v642, %v641
  %v675 = vpack.c.b16 %v644, %v643
  %v676 = vpack.c.b16 %v646, %v645
  %v677 = vpack.c.b16 %v648, %v647
  %v678 = vpack.c.b16 %v650, %v649
  %v679 = vpack.c.b16 %v652, %v651
  %v680 = vpack.c.b16 %v654, %v653
  %v681 = vpack.c.b16 %v656, %v655
  %v682 = vpack.c.b16 %v658, %v657
  %v683 = vpack.c.b16 %v660, %v659
  %v684 = vpack.c.b16 %v662, %v661
  %v685 = vpack.c.b16 %v664, %v663
  %v686 = vpack.c.b16 %v666, %v665
  %v687 = vpack.c.b16 %v668, %v667
  %v688 = vpack.c.b16 %v670, %v669
  %v723 = vunpack.c.l.b16 %v583
  %v724 = vunpack.c.l.b16 %v584
  %v725 = vunpack.c.l.b16 %v585
  %v726 = vunpack.c.l.b16 %v586
  %v727 = vunpack.c.l.b16 %v587
  %v728 = vunpack.c.l.b16 %v588
  %v729 = vunpack.c.l.b16 %v589
  %v730 = vunpack.c.l.b16 %v590
  %v731 = vunpack.c.l.b16 %v591
  %v732 = vunpack.c.l.b16 %v592
  %v733 = vunpack.c.l.b16 %v593
  %v734 = vunpack.c.l.b16 %v594
  %v735 = vunpack.c.l.b16 %v595
  %v736 = vunpack.c.l.b16 %v596
  %v737 = vunpack.c.l.b16 %v597
  %v738 = vunpack.c.l.b16 %v598
  %v739 = vpack.c.b16 %v724, %v723
  %v740 = vpack.c.b16 %v726, %v725
  %v741 = vpack.c.b16 %v728, %v727
  %v742 = vpack.c.b16 %v730, %v729
  %v743 = vpack.c.b16 %v732, %v731
  %v744 = vpack.c.b16 %v734, %v733
  %v745 = vpack.c.b16 %v736, %v735
  %v746 = vpack.c.b16 %v738, %v737
  %755 = vmatpush.bf16.msra.mxu0 %v746
  %756 = vmatpush.bf16.msra.mxu0 %v745
  %757 = vmatpush.bf16.msra.mxu0 %v744
  %758 = vmatpush.bf16.msra.mxu0 %v743
  %759 = vmatpush.bf16.msra.mxu0 %v742
  %760 = vmatpush.bf16.msra.mxu0 %v741
  %761 = vmatpush.bf16.msra.mxu0 %v740
  %762 = vmatpush.bf16.msra.mxu0 %v739
  %763 = vmatmul.bf16.gmra.mxu0 %v671
  %v764 = vpop.f32.mrf.mxu0
  %v765 = vadd.f32 0.0, %v764
  %v766 = vpop.f32.mrf.mxu0
  %v767 = vadd.f32 0.0, %v766
  %768 = vmatmul.bf16.gmra.mxu0 %v672
  %v769 = vpop.f32.mrf.mxu0
  %v770 = vadd.f32 0.0, %v769
  %v771 = vpop.f32.mrf.mxu0
  %v772 = vadd.f32 0.0, %v771
  %773 = vmatmul.bf16.gmra.mxu0 %v673
  %v774 = vpop.f32.mrf.mxu0
  %v775 = vadd.f32 0.0, %v774
  %v776 = vpop.f32.mrf.mxu0
  %v777 = vadd.f32 0.0, %v776
  %778 = vmatmul.bf16.gmra.mxu0 %v674
  %v779 = vpop.f32.mrf.mxu0
  %v780 = vadd.f32 0.0, %v779
  %v781 = vpop.f32.mrf.mxu0
  %v782 = vadd.f32 0.0, %v781
  %783 = vmatmul.bf16.gmra.mxu0 %v675
  %v784 = vpop.f32.mrf.mxu0
  %v785 = vadd.f32 0.0, %v784
  %v786 = vpop.f32.mrf.mxu0
  %v787 = vadd.f32 0.0, %v786
  %788 = vmatmul.bf16.gmra.mxu0 %v676
  %v789 = vpop.f32.mrf.mxu0
  %v790 = vadd.f32 0.0, %v789
  %v791 = vpop.f32.mrf.mxu0
  %v792 = vadd.f32 0.0, %v791
  %793 = vmatmul.bf16.gmra.mxu0 %v677
  %v794 = vpop.f32.mrf.mxu0
  %v795 = vadd.f32 0.0, %v794
  %v796 = vpop.f32.mrf.mxu0
  %v797 = vadd.f32 0.0, %v796
  %798 = vmatmul.bf16.gmra.mxu0 %v678
  %v799 = vpop.f32.mrf.mxu0
  %v800 = vadd.f32 0.0, %v799
  %v801 = vpop.f32.mrf.mxu0
  %v802 = vadd.f32 0.0, %v801
  %803 = vmatmul.bf16.gmra.mxu0 %v679
  %v804 = vpop.f32.mrf.mxu0
  %v805 = vadd.f32 0.0, %v804
  %v806 = vpop.f32.mrf.mxu0
  %v807 = vadd.f32 0.0, %v806
  %808 = vmatmul.bf16.gmra.mxu0 %v680
  %v809 = vpop.f32.mrf.mxu0
  %v810 = vadd.f32 0.0, %v809
  %v811 = vpop.f32.mrf.mxu0
  %v812 = vadd.f32 0.0, %v811
  %813 = vmatmul.bf16.gmra.mxu0 %v681
  %v814 = vpop.f32.mrf.mxu0
  %v815 = vadd.f32 0.0, %v814
  %v816 = vpop.f32.mrf.mxu0
  %v817 = vadd.f32 0.0, %v816
  %818 = vmatmul.bf16.gmra.mxu0 %v682
  %v819 = vpop.f32.mrf.mxu0
  %v820 = vadd.f32 0.0, %v819
  %v821 = vpop.f32.mrf.mxu0
  %v822 = vadd.f32 0.0, %v821
  %823 = vmatmul.bf16.gmra.mxu0 %v683
  %v824 = vpop.f32.mrf.mxu0
  %v825 = vadd.f32 0.0, %v824
  %v826 = vpop.f32.mrf.mxu0
  %v827 = vadd.f32 0.0, %v826
  %828 = vmatmul.bf16.gmra.mxu0 %v684
  %v829 = vpop.f32.mrf.mxu0
  %v830 = vadd.f32 0.0, %v829
  %v831 = vpop.f32.mrf.mxu0
  %v832 = vadd.f32 0.0, %v831
  %833 = vmatmul.bf16.gmra.mxu0 %v685
  %v834 = vpop.f32.mrf.mxu0
  %v835 = vadd.f32 0.0, %v834
  %v836 = vpop.f32.mrf.mxu0
  %v837 = vadd.f32 0.0, %v836
  %838 = vmatmul.bf16.gmra.mxu0 %v686
  %v839 = vpop.f32.mrf.mxu0
  %v840 = vadd.f32 0.0, %v839
  %v841 = vpop.f32.mrf.mxu0
  %v842 = vadd.f32 0.0, %v841
  %843 = vmatmul.bf16.gmra.mxu0 %v687
  %v844 = vpop.f32.mrf.mxu0
  %v845 = vadd.f32 0.0, %v844
  %v846 = vpop.f32.mrf.mxu0
  %v847 = vadd.f32 0.0, %v846
  %848 = vmatmul.bf16.gmra.mxu0 %v688
  %v849 = vpop.f32.mrf.mxu0
  %v850 = vadd.f32 0.0, %v849
  %v851 = vpop.f32.mrf.mxu0
  %v852 = vadd.f32 0.0, %v851
  %853 = vdwg.mxu0
  %v854 = vadd.f32 %v765, %v767
  %v855 = vadd.f32 %v854, %v770
  %v856 = vadd.f32 %v855, %v772
  %v857 = vadd.f32 %v856, %v775
  %v858 = vadd.f32 %v857, %v777
  %v859 = vadd.f32 %v858, %v780
  %v860 = vadd.f32 %v859, %v782
  %v861 = vadd.f32 %v860, %v785
  %v862 = vadd.f32 %v861, %v787
  %v863 = vadd.f32 %v862, %v790
  %v864 = vadd.f32 %v863, %v792
  %v865 = vadd.f32 %v864, %v795
  %v866 = vadd.f32 %v865, %v797
  %v867 = vadd.f32 %v866, %v800
  %v868 = vadd.f32 %v867, %v802
  %v869 = vadd.f32 %v868, %v805
  %v870 = vadd.f32 %v869, %v807
  %v871 = vadd.f32 %v870, %v810
  %v872 = vadd.f32 %v871, %v812
  %v873 = vadd.f32 %v872, %v815
  %v874 = vadd.f32 %v873, %v817
  %v875 = vadd.f32 %v874, %v820
  %v876 = vadd.f32 %v875, %v822
  %v877 = vadd.f32 %v876, %v825
  %v878 = vadd.f32 %v877, %v827
  %v879 = vadd.f32 %v878, %v830
  %v880 = vadd.f32 %v879, %v832
  %v881 = vadd.f32 %v880, %v835
  %v882 = vadd.f32 %v881, %v837
  %v883 = vadd.f32 %v882, %v840
  %v884 = vadd.f32 %v883, %v842
  %v885 = vadd.f32 %v884, %v845
  %v886 = vadd.f32 %v885, %v847
  %v887 = vadd.f32 %v886, %v850
  %v888 = vadd.f32 %v887, %v852
  %v889 = vrot.slane %v888, 4
  %v890 = vadd.f32 %v888, %v889
  %v891 = vrot.slane %v890, 2
  %v892 = vadd.f32 %v890, %v891
  %v893 = vrot.slane %v892, 1
  %v894 = vadd.f32 %v892, %v893
  %v895 = vmul.f32 %v894, 0.0034722222
  %v896 = vsub.f32 %v765, %v895
  %v897 = vsub.f32 %v767, %v895
  %v898 = vsub.f32 %v770, %v895
  %v899 = vsub.f32 %v772, %v895
  %v900 = vsub.f32 %v775, %v895
  %v901 = vsub.f32 %v777, %v895
  %v902 = vsub.f32 %v780, %v895
  %v903 = vsub.f32 %v782, %v895
  %v904 = vsub.f32 %v785, %v895
  %v905 = vsub.f32 %v787, %v895
  %v906 = vsub.f32 %v790, %v895
  %v907 = vsub.f32 %v792, %v895
  %v908 = vsub.f32 %v795, %v895
  %v909 = vsub.f32 %v797, %v895
  %v910 = vsub.f32 %v800, %v895
  %v911 = vsub.f32 %v802, %v895
  %v912 = vsub.f32 %v805, %v895
  %v913 = vsub.f32 %v807, %v895
  %v914 = vsub.f32 %v810, %v895
  %v915 = vsub.f32 %v812, %v895
  %v916 = vsub.f32 %v815, %v895
  %v917 = vsub.f32 %v817, %v895
  %v918 = vsub.f32 %v820, %v895
  %v919 = vsub.f32 %v822, %v895
  %v920 = vsub.f32 %v825, %v895
  %v921 = vsub.f32 %v827, %v895
  %v922 = vsub.f32 %v830, %v895
  %v923 = vsub.f32 %v832, %v895
  %v924 = vsub.f32 %v835, %v895
  %v925 = vsub.f32 %v837, %v895
  %v926 = vsub.f32 %v840, %v895
  %v927 = vsub.f32 %v842, %v895
  %v928 = vsub.f32 %v845, %v895
  %v929 = vsub.f32 %v847, %v895
  %v930 = vsub.f32 %v850, %v895
  %v931 = vsub.f32 %v852, %v895
  %v932 = vmul.f32 %v896, %v896
  %v933 = vmul.f32 %v897, %v897
  %v934 = vmul.f32 %v898, %v898
  %v935 = vmul.f32 %v899, %v899
  %v936 = vmul.f32 %v900, %v900
  %v937 = vmul.f32 %v901, %v901
  %v938 = vmul.f32 %v902, %v902
  %v939 = vmul.f32 %v903, %v903
  %v940 = vmul.f32 %v904, %v904
  %v941 = vmul.f32 %v905, %v905
  %v942 = vmul.f32 %v906, %v906
  %v943 = vmul.f32 %v907, %v907
  %v944 = vmul.f32 %v908, %v908
  %v945 = vmul.f32 %v909, %v909
  %v946 = vmul.f32 %v910, %v910
  %v947 = vmul.f32 %v911, %v911
  %v948 = vmul.f32 %v912, %v912
  %v949 = vmul.f32 %v913, %v913
  %v950 = vmul.f32 %v914, %v914
  %v951 = vmul.f32 %v915, %v915
  %v952 = vmul.f32 %v916, %v916
  %v953 = vmul.f32 %v917, %v917
  %v954 = vmul.f32 %v918, %v918
  %v955 = vmul.f32 %v919, %v919
  %v956 = vmul.f32 %v920, %v920
  %v957 = vmul.f32 %v921, %v921
  %v958 = vmul.f32 %v922, %v922
  %v959 = vmul.f32 %v923, %v923
  %v960 = vmul.f32 %v924, %v924
  %v961 = vmul.f32 %v925, %v925
  %v962 = vmul.f32 %v926, %v926
  %v963 = vmul.f32 %v927, %v927
  %v964 = vmul.f32 %v928, %v928
  %v965 = vmul.f32 %v929, %v929
  %v966 = vmul.f32 %v930, %v930
  %v967 = vmul.f32 %v931, %v931
  %v968 = vadd.f32 %v932, %v933
  %v969 = vadd.f32 %v968, %v934
  %v970 = vadd.f32 %v969, %v935
  %v971 = vadd.f32 %v970, %v936
  %v972 = vadd.f32 %v971, %v937
  %v973 = vadd.f32 %v972, %v938
  %v974 = vadd.f32 %v973, %v939
  %v975 = vadd.f32 %v974, %v940
  %v976 = vadd.f32 %v975, %v941
  %v977 = vadd.f32 %v976, %v942
  %v978 = vadd.f32 %v977, %v943
  %v979 = vadd.f32 %v978, %v944
  %v980 = vadd.f32 %v979, %v945
  %v981 = vadd.f32 %v980, %v946
  %v982 = vadd.f32 %v981, %v947
  %v983 = vadd.f32 %v982, %v948
  %v984 = vadd.f32 %v983, %v949
  %v985 = vadd.f32 %v984, %v950
  %v986 = vadd.f32 %v985, %v951
  %v987 = vadd.f32 %v986, %v952
  %v988 = vadd.f32 %v987, %v953
  %v989 = vadd.f32 %v988, %v954
  %v990 = vadd.f32 %v989, %v955
  %v991 = vadd.f32 %v990, %v956
  %v992 = vadd.f32 %v991, %v957
  %v993 = vadd.f32 %v992, %v958
  %v994 = vadd.f32 %v993, %v959
  %v995 = vadd.f32 %v994, %v960
  %v996 = vadd.f32 %v995, %v961
  %v997 = vadd.f32 %v996, %v962
  %v998 = vadd.f32 %v997, %v963
  %v999 = vadd.f32 %v998, %v964
  %v1000 = vadd.f32 %v999, %v965
  %v1001 = vadd.f32 %v1000, %v966
  %v1002 = vadd.f32 %v1001, %v967
  %v1003 = vrot.slane %v1002, 4
  %v1004 = vadd.f32 %v1002, %v1003
  %v1005 = vrot.slane %v1004, 2
  %v1006 = vadd.f32 %v1004, %v1005
  %v1007 = vrot.slane %v1006, 1
  %v1008 = vadd.f32 %v1006, %v1007
  %v1009 = vmul.f32 %v1008, 0.0034722222
  %v1010 = vadd.f32 %v1009, 1e-05
  %v1011 = vrsqrt.pop %v1010
  %v1012 = vmul.f32 %v1011, %v1010
  %v1013 = vmul.f32 %v1012, %v1011
  %v1014 = vmul.f32 0.5, %v1013
  %v1015 = vsub.f32 1.5, %v1014
  %v1016 = vmul.f32 %v1011, %v1015
  %vm1017 = vweird.f32 %v1010
  %vm1018 = vweird.f32 %v1011
  %vm1019 = vmor %vm1017, %vm1018
  %v1020 = vsel %vm1019, %v1011, %v1016
  %v1021 = vmul.f32 %v896, %v1020
  %v1022 = vmul.f32 %v897, %v1020
  %v1023 = vmul.f32 %v898, %v1020
  %v1024 = vmul.f32 %v899, %v1020
  %v1025 = vmul.f32 %v900, %v1020
  %v1026 = vmul.f32 %v901, %v1020
  %v1027 = vmul.f32 %v902, %v1020
  %v1028 = vmul.f32 %v903, %v1020
  %v1029 = vmul.f32 %v904, %v1020
  %v1030 = vmul.f32 %v905, %v1020
  %v1031 = vmul.f32 %v906, %v1020
  %v1032 = vmul.f32 %v907, %v1020
  %v1033 = vmul.f32 %v908, %v1020
  %v1034 = vmul.f32 %v909, %v1020
  %v1035 = vmul.f32 %v910, %v1020
  %v1036 = vmul.f32 %v911, %v1020
  %v1037 = vmul.f32 %v912, %v1020
  %v1038 = vmul.f32 %v913, %v1020
  %v1039 = vmul.f32 %v914, %v1020
  %v1040 = vmul.f32 %v915, %v1020
  %v1041 = vmul.f32 %v916, %v1020
  %v1042 = vmul.f32 %v917, %v1020
  %v1043 = vmul.f32 %v918, %v1020
  %v1044 = vmul.f32 %v919, %v1020
  %v1045 = vmul.f32 %v920, %v1020
  %v1046 = vmul.f32 %v921, %v1020
  %v1047 = vmul.f32 %v922, %v1020
  %v1048 = vmul.f32 %v923, %v1020
  %v1049 = vmul.f32 %v924, %v1020
  %v1050 = vmul.f32 %v925, %v1020
  %v1051 = vmul.f32 %v926, %v1020
  %v1052 = vmul.f32 %v927, %v1020
  %v1053 = vmul.f32 %v928, %v1020
  %v1054 = vmul.f32 %v929, %v1020
  %v1055 = vmul.f32 %v930, %v1020
  %v1056 = vmul.f32 %v931, %v1020
  %v1057 = vld [vmem:[%s2] sm:$0x1]
  %v1059 = vperm.slane %v1057, 0
  %v1061 = vmul.f32 %v1021, %v1059
  %v1062 = vmul.f32 %v1022, %v1059
  %v1063 = vmul.f32 %v1023, %v1059
  %v1064 = vmul.f32 %v1024, %v1059
  %v1065 = vmul.f32 %v1025, %v1059
  %v1066 = vmul.f32 %v1026, %v1059
  %v1067 = vmul.f32 %v1027, %v1059
  %v1068 = vmul.f32 %v1028, %v1059
  %v1069 = vmul.f32 %v1029, %v1059
  %v1070 = vmul.f32 %v1030, %v1059
  %v1071 = vmul.f32 %v1031, %v1059
  %v1072 = vmul.f32 %v1032, %v1059
  %v1073 = vmul.f32 %v1033, %v1059
  %v1074 = vmul.f32 %v1034, %v1059
  %v1075 = vmul.f32 %v1035, %v1059
  %v1076 = vmul.f32 %v1036, %v1059
  %v1077 = vmul.f32 %v1037, %v1059
  %v1078 = vmul.f32 %v1038, %v1059
  %v1079 = vmul.f32 %v1039, %v1059
  %v1080 = vmul.f32 %v1040, %v1059
  %v1081 = vmul.f32 %v1041, %v1059
  %v1082 = vmul.f32 %v1042, %v1059
  %v1083 = vmul.f32 %v1043, %v1059
  %v1084 = vmul.f32 %v1044, %v1059
  %v1085 = vmul.f32 %v1045, %v1059
  %v1086 = vmul.f32 %v1046, %v1059
  %v1087 = vmul.f32 %v1047, %v1059
  %v1088 = vmul.f32 %v1048, %v1059
  %v1089 = vmul.f32 %v1049, %v1059
  %v1090 = vmul.f32 %v1050, %v1059
  %v1091 = vmul.f32 %v1051, %v1059
  %v1092 = vmul.f32 %v1052, %v1059
  %v1093 = vmul.f32 %v1053, %v1059
  %v1094 = vmul.f32 %v1054, %v1059
  %v1095 = vmul.f32 %v1055, %v1059
  %v1096 = vmul.f32 %v1056, %v1059
  %v1097 = vld [vmem:[%s3] sm:$0x1]
  %v1099 = vperm.slane %v1097, 0
  %v1101 = vadd.f32 %v1061, %v1099
  %v1102 = vadd.f32 %v1062, %v1099
  %v1103 = vadd.f32 %v1063, %v1099
  %v1104 = vadd.f32 %v1064, %v1099
  %v1105 = vadd.f32 %v1065, %v1099
  %v1106 = vadd.f32 %v1066, %v1099
  %v1107 = vadd.f32 %v1067, %v1099
  %v1108 = vadd.f32 %v1068, %v1099
  %v1109 = vadd.f32 %v1069, %v1099
  %v1110 = vadd.f32 %v1070, %v1099
  %v1111 = vadd.f32 %v1071, %v1099
  %v1112 = vadd.f32 %v1072, %v1099
  %v1113 = vadd.f32 %v1073, %v1099
  %v1114 = vadd.f32 %v1074, %v1099
  %v1115 = vadd.f32 %v1075, %v1099
  %v1116 = vadd.f32 %v1076, %v1099
  %v1117 = vadd.f32 %v1077, %v1099
  %v1118 = vadd.f32 %v1078, %v1099
  %v1119 = vadd.f32 %v1079, %v1099
  %v1120 = vadd.f32 %v1080, %v1099
  %v1121 = vadd.f32 %v1081, %v1099
  %v1122 = vadd.f32 %v1082, %v1099
  %v1123 = vadd.f32 %v1083, %v1099
  %v1124 = vadd.f32 %v1084, %v1099
  %v1125 = vadd.f32 %v1085, %v1099
  %v1126 = vadd.f32 %v1086, %v1099
  %v1127 = vadd.f32 %v1087, %v1099
  %v1128 = vadd.f32 %v1088, %v1099
  %v1129 = vadd.f32 %v1089, %v1099
  %v1130 = vadd.f32 %v1090, %v1099
  %v1131 = vadd.f32 %v1091, %v1099
  %v1132 = vadd.f32 %v1092, %v1099
  %v1133 = vadd.f32 %v1093, %v1099
  %v1134 = vadd.f32 %v1094, %v1099
  %v1135 = vadd.f32 %v1095, %v1099
  %v1136 = vadd.f32 %v1096, %v1099
  %v1137 = vmax.f32 %v1101, 0.0
  %v1138 = vmax.f32 %v1102, 0.0
  %v1139 = vmax.f32 %v1103, 0.0
  %v1140 = vmax.f32 %v1104, 0.0
  %v1141 = vmax.f32 %v1105, 0.0
  %v1142 = vmax.f32 %v1106, 0.0
  %v1143 = vmax.f32 %v1107, 0.0
  %v1144 = vmax.f32 %v1108, 0.0
  %v1145 = vmax.f32 %v1109, 0.0
  %v1146 = vmax.f32 %v1110, 0.0
  %v1147 = vmax.f32 %v1111, 0.0
  %v1148 = vmax.f32 %v1112, 0.0
  %v1149 = vmax.f32 %v1113, 0.0
  %v1150 = vmax.f32 %v1114, 0.0
  %v1151 = vmax.f32 %v1115, 0.0
  %v1152 = vmax.f32 %v1116, 0.0
  %v1153 = vmax.f32 %v1117, 0.0
  %v1154 = vmax.f32 %v1118, 0.0
  %v1155 = vmax.f32 %v1119, 0.0
  %v1156 = vmax.f32 %v1120, 0.0
  %v1157 = vmax.f32 %v1121, 0.0
  %v1158 = vmax.f32 %v1122, 0.0
  %v1159 = vmax.f32 %v1123, 0.0
  %v1160 = vmax.f32 %v1124, 0.0
  %v1161 = vmax.f32 %v1125, 0.0
  %v1162 = vmax.f32 %v1126, 0.0
  %v1163 = vmax.f32 %v1127, 0.0
  %v1164 = vmax.f32 %v1128, 0.0
  %v1165 = vmax.f32 %v1129, 0.0
  %v1166 = vmax.f32 %v1130, 0.0
  %v1167 = vmax.f32 %v1131, 0.0
  %v1168 = vmax.f32 %v1132, 0.0
  %v1169 = vmax.f32 %v1133, 0.0
  %v1170 = vmax.f32 %v1134, 0.0
  %v1171 = vmax.f32 %v1135, 0.0
  %v1172 = vmax.f32 %v1136, 0.0
  %v1173 = vmax.f32 %v1137, %v1146
  %v1174 = vmax.f32 %v1138, %v1147
  %v1175 = vmax.f32 %v1139, %v1148
  %v1176 = vmax.f32 %v1140, %v1149
  %v1177 = vmax.f32 %v1141, %v1150
  %v1178 = vmax.f32 %v1142, %v1151
  %v1179 = vmax.f32 %v1143, %v1152
  %v1180 = vmax.f32 %v1144, %v1153
  %v1181 = vmax.f32 %v1145, %v1154
  %v1182 = vmax.f32 %v1155, %v1164
  %v1183 = vmax.f32 %v1156, %v1165
  %v1184 = vmax.f32 %v1157, %v1166
  %v1185 = vmax.f32 %v1158, %v1167
  %v1186 = vmax.f32 %v1159, %v1168
  %v1187 = vmax.f32 %v1160, %v1169
  %v1188 = vmax.f32 %v1161, %v1170
  %v1189 = vmax.f32 %v1162, %v1171
  %v1190 = vmax.f32 %v1163, %v1172
  %v1191 = vmax.f32 %v1173, %v1182
  %v1192 = vmax.f32 %v1174, %v1183
  %v1193 = vmax.f32 %v1175, %v1184
  %v1194 = vmax.f32 %v1176, %v1185
  %v1195 = vmax.f32 %v1177, %v1186
  %v1196 = vmax.f32 %v1178, %v1187
  %v1197 = vmax.f32 %v1179, %v1188
  %v1198 = vmax.f32 %v1180, %v1189
  %v1199 = vmax.f32 %v1181, %v1190
  %v1200 = vpack.c.bf16 %v1191, %v1191
  %v1201 = vpack.c.bf16 %v1192, %v1192
  %v1202 = vpack.c.bf16 %v1193, %v1193
  %v1203 = vpack.c.bf16 %v1194, %v1194
  %v1204 = vpack.c.bf16 %v1195, %v1195
  %v1205 = vpack.c.bf16 %v1196, %v1196
  %v1206 = vpack.c.bf16 %v1197, %v1197
  %v1207 = vpack.c.bf16 %v1198, %v1198
  %v1208 = vpack.c.bf16 %v1199, %v1199
  %v1218 = vunpack.c.l.b16 %v1200
  %v1219 = vunpack.c.l.b16 %v1201
  %v1220 = vunpack.c.l.b16 %v1202
  %v1221 = vunpack.c.l.b16 %v1203
  %v1222 = vunpack.c.l.b16 %v1204
  %v1223 = vunpack.c.l.b16 %v1205
  %v1224 = vunpack.c.l.b16 %v1206
  %v1225 = vunpack.c.l.b16 %v1207
  %v1226 = vunpack.c.l.b16 %v1208
  %v1227 = vpack.c.b16 %v1226, %v1226
  %vm1228 = vcmask 1043456
  %v1231 = vsel %vm1228, %v1227, 0
  %v1234 = vunpack.c.l.b16 %v1231
  %v1235 = vunpack.c.h.b16 %v1231
  %v1236 = vunpack.c.l.b16 0
  %v1237 = vunpack.c.h.b16 0
  %v1238 = vpack.c.b16 %v1218, %v1218
  %v1239 = vpack.c.b16 %v1219, %v1219
  %v1240 = vpack.c.b16 %v1220, %v1220
  %v1241 = vpack.c.b16 %v1221, %v1221
  %v1242 = vpack.c.b16 %v1222, %v1222
  %v1243 = vpack.c.b16 %v1223, %v1223
  %v1244 = vpack.c.b16 %v1224, %v1224
  %v1245 = vpack.c.b16 %v1225, %v1225
  %v1246 = vpack.c.b16 %v1234, %v1234
  %v1247 = vpack.c.b16 %v1235, %v1235
  %v1248 = vpack.c.b16 %v1236, %v1236
  %v1249 = vpack.c.b16 %v1237, %v1237
  %1262 = vst [vmem:[#allocation5] sm:$0xf] %v1238
  %1263 = vst [vmem:[#allocation5 + $0x4] sm:$0xf] %v1239
  %1264 = vst [vmem:[#allocation5 + $0x8] sm:$0xf] %v1240
  %1265 = vst [vmem:[#allocation5 + $0xc] sm:$0xf] %v1241
  %1266 = vst [vmem:[#allocation5 + $0x10] sm:$0xf] %v1242
  %1267 = vst [vmem:[#allocation5 + $0x14] sm:$0xf] %v1243
  %1268 = vst [vmem:[#allocation5 + $0x18] sm:$0xf] %v1244
  %1269 = vst [vmem:[#allocation5 + $0x1c] sm:$0xf] %v1245
  %1270 = vst [vmem:[#allocation5 + $0x20] sm:$0xf] %v1246
  %1271 = vst [vmem:[#allocation5 + $0x24] sm:$0xf] %v1247
  %1272 = vst [vmem:[#allocation5 + $0x28] sm:$0xf] %v1248
  %1273 = vst [vmem:[#allocation5 + $0x2c] sm:$0xf] %v1249
  %1274 = vst [vmem:[#allocation5 + $0x30] sm:$0xf] %v1248
  %1275 = vst [vmem:[#allocation5 + $0x34] sm:$0xf] %v1249
  %s1276 = smul.u32 4, 5
  %s1277 = smul.u32 %s1276, 80
  %s1278 = smul.u32 %s1277, 1
  %s1279 = sshll.u32 %s1278, 4
  %1280 = dma.done [#allocation6], %s1279
  %v1281 = vld [vmem:[#allocation5] sm:$0xf]
  %v1282 = vld [vmem:[#allocation5 + $0x4] sm:$0xf]
  %v1283 = vld [vmem:[#allocation5 + $0x8] sm:$0xf]
  %v1284 = vld [vmem:[#allocation5 + $0xc] sm:$0xf]
  %v1285 = vld [vmem:[#allocation5 + $0x10] sm:$0xf]
  %v1286 = vld [vmem:[#allocation5 + $0x14] sm:$0xf]
  %v1287 = vld [vmem:[#allocation5 + $0x18] sm:$0xf]
  %v1288 = vld [vmem:[#allocation5 + $0x1c] sm:$0xf]
  %v1289 = vld [vmem:[#allocation5 + $0x20] sm:$0xf]
  %v1290 = vld [vmem:[#allocation5 + $0x24] sm:$0x1]
  %v1291 = vld [vmem:[#allocation5] sm:$0xe]
  %v1292 = vld [vmem:[#allocation5 + $0x24] sm:$0x3]
  %v1293 = vld [vmem:[#allocation5] sm:$0xc]
  %v1303 = vunpack.c.l.b16 %v1281
  %v1304 = vunpack.c.l.b16 %v1282
  %v1305 = vunpack.c.l.b16 %v1283
  %v1306 = vunpack.c.l.b16 %v1284
  %v1307 = vunpack.c.l.b16 %v1285
  %v1308 = vunpack.c.l.b16 %v1286
  %v1309 = vunpack.c.l.b16 %v1287
  %v1310 = vunpack.c.l.b16 %v1288
  %v1311 = vunpack.c.l.b16 %v1289
  %v1312 = vpack.c.b16 %v1304, %v1303
  %v1313 = vpack.c.b16 %v1306, %v1305
  %v1314 = vpack.c.b16 %v1308, %v1307
  %v1315 = vpack.c.b16 %v1310, %v1309
  %v1316 = vpack.c.b16 %v1311, %v1311
  %v1323 = vunpack.c.l.b16 %v1290
  %v1324 = vpack.c.b16 %v1323, %v1311
  %vm1325 = vsmask.f32 7424
  %v1327 = vshrl.u32 %v1312, 16
  %v1329 = vshll.u32 %v1312, 16
  %v1331 = vrot.slane %v1329, 1
  %v1332 = vor.u32 %v1327, %v1331
  %v1334 = vshll.u32 %v1313, 16
  %v1336 = vrot.slane %v1334, 1
  %v1337 = vsel %vm1325, %v1332, %v1336
  %v1338 = vshrl.u32 %v1313, 16
  %v1340 = vor.u32 %v1338, %v1336
  %v1342 = vshll.u32 %v1314, 16
  %v1344 = vrot.slane %v1342, 1
  %v1345 = vsel %vm1325, %v1340, %v1344
  %v1346 = vshrl.u32 %v1314, 16
  %v1348 = vor.u32 %v1346, %v1344
  %v1350 = vshll.u32 %v1315, 16
  %v1352 = vrot.slane %v1350, 1
  %v1353 = vsel %vm1325, %v1348, %v1352
  %v1354 = vshrl.u32 %v1315, 16
  %v1356 = vor.u32 %v1354, %v1352
  %v1358 = vshll.u32 %v1324, 16
  %v1360 = vrot.slane %v1358, 1
  %v1361 = vsel %vm1325, %v1356, %v1360
  %v1362 = vshrl.u32 %v1324, 16
  %v1364 = vor.u32 %v1362, %v1360
  %v1371 = vunpack.c.l.b16 %v1291
  %v1372 = vpack.c.b16 %v1304, %v1371
  %vm1373 = vcmask 1046528
  %v1374 = vrot.slane %v1372, 1
  %v1375 = vrot.slane %v1313, 1
  %v1376 = vsel %vm1373, %v1374, %v1375
  %v1377 = vrot.slane %v1314, 1
  %v1378 = vsel %vm1373, %v1375, %v1377
  %v1379 = vrot.slane %v1315, 1
  %v1380 = vsel %vm1373, %v1377, %v1379
  %v1381 = vrot.slane %v1324, 1
  %v1382 = vsel %vm1373, %v1379, %v1381
  %v1389 = vunpack.c.l.b16 %v1292
  %v1390 = vpack.c.b16 %v1389, %v1311
  %vm1391 = vsmask.f32 6400
  %v1393 = vshrl.u32 %v1372, 16
  %v1395 = vrot.slane %v1393, 1
  %v1396 = vshll.u32 %v1372, 16
  %v1398 = vrot.slane %v1396, 2
  %v1399 = vor.u32 %v1395, %v1398
  %v1400 = vrot.slane %v1338, 1
  %v1401 = vrot.slane %v1334, 2
  %v1402 = vor.u32 %v1400, %v1401
  %v1403 = vsel %vm1391, %v1399, %v1402
  %v1404 = vrot.slane %v1346, 1
  %v1405 = vrot.slane %v1342, 2
  %v1406 = vor.u32 %v1404, %v1405
  %v1407 = vsel %vm1391, %v1402, %v1406
  %v1408 = vrot.slane %v1354, 1
  %v1409 = vrot.slane %v1350, 2
  %v1410 = vor.u32 %v1408, %v1409
  %v1411 = vsel %vm1391, %v1406, %v1410
  %v1413 = vshrl.u32 %v1390, 16
  %v1415 = vrot.slane %v1413, 1
  %v1416 = vshll.u32 %v1390, 16
  %v1418 = vrot.slane %v1416, 2
  %v1419 = vor.u32 %v1415, %v1418
  %v1420 = vsel %vm1391, %v1410, %v1419
  %v1427 = vunpack.c.l.b16 %v1293
  %v1428 = vpack.c.b16 %v1304, %v1427
  %vm1429 = vcmask 1045504
  %v1430 = vrot.slane %v1428, 2
  %v1431 = vrot.slane %v1313, 2
  %v1432 = vsel %vm1429, %v1430, %v1431
  %v1433 = vrot.slane %v1314, 2
  %v1434 = vsel %vm1429, %v1431, %v1433
  %v1435 = vrot.slane %v1315, 2
  %v1436 = vsel %vm1429, %v1433, %v1435
  %v1437 = vrot.slane %v1390, 2
  %v1438 = vsel %vm1429, %v1435, %v1437
  %v1444 = vld [vmem:[#allocation2] sm:$0xf]
  %v1445 = vld [vmem:[#allocation2 + $0x4] sm:$0xf]
  %v1446 = vld [vmem:[#allocation2 + $0x8] sm:$0xf]
  %v1447 = vld [vmem:[#allocation2 + $0xc] sm:$0xf]
  %v1448 = vld [vmem:[#allocation2 + $0x10] sm:$0xf]
  %v1449 = vld [vmem:[#allocation2 + $0x14] sm:$0xf]
  %v1450 = vld [vmem:[#allocation2 + $0x18] sm:$0xf]
  %v1451 = vld [vmem:[#allocation2 + $0x1c] sm:$0xf]
  %v1452 = vld [vmem:[#allocation2 + $0x20] sm:$0xf]
  %v1453 = vld [vmem:[#allocation2 + $0x24] sm:$0xf]
  %v1454 = vld [vmem:[#allocation2 + $0x28] sm:$0xf]
  %v1455 = vld [vmem:[#allocation2 + $0x2c] sm:$0xf]
  %v1456 = vld [vmem:[#allocation2 + $0x30] sm:$0xf]
  %v1457 = vld [vmem:[#allocation2 + $0x34] sm:$0xf]
  %v1458 = vld [vmem:[#allocation2 + $0x38] sm:$0xf]
  %v1459 = vld [vmem:[#allocation2 + $0x3c] sm:$0xf]
  %v1460 = vld [vmem:[#allocation2 + $0x40] sm:$0xf]
  %v1461 = vld [vmem:[#allocation2 + $0x44] sm:$0xf]
  %v1462 = vld [vmem:[#allocation2 + $0x48] sm:$0xf]
  %v1463 = vld [vmem:[#allocation2 + $0x4c] sm:$0xf]
  %v1464 = vld [vmem:[#allocation2 + $0x50] sm:$0xf]
  %v1465 = vld [vmem:[#allocation2 + $0x54] sm:$0xf]
  %v1466 = vld [vmem:[#allocation2 + $0x58] sm:$0xf]
  %v1467 = vld [vmem:[#allocation2 + $0x5c] sm:$0xf]
  %v1468 = vld [vmem:[#allocation2 + $0x60] sm:$0xf]
  %v1469 = vld [vmem:[#allocation2 + $0x64] sm:$0xf]
  %v1470 = vld [vmem:[#allocation2 + $0x68] sm:$0xf]
  %v1471 = vld [vmem:[#allocation2 + $0x6c] sm:$0xf]
  %v1472 = vld [vmem:[#allocation2 + $0x70] sm:$0xf]
  %v1473 = vld [vmem:[#allocation2 + $0x74] sm:$0xf]
  %v1474 = vld [vmem:[#allocation2 + $0x78] sm:$0xf]
  %v1475 = vld [vmem:[#allocation2 + $0x7c] sm:$0xf]
  %v1476 = vld [vmem:[#allocation2 + $0x80] sm:$0xf]
  %v1477 = vld [vmem:[#allocation2 + $0x84] sm:$0xf]
  %v1478 = vld [vmem:[#allocation2 + $0x88] sm:$0xf]
  %v1479 = vld [vmem:[#allocation2 + $0x8c] sm:$0xf]
  %v1480 = vld [vmem:[#allocation2 + $0x90] sm:$0xf]
  %v1481 = vld [vmem:[#allocation2 + $0x94] sm:$0xf]
  %v1482 = vld [vmem:[#allocation2 + $0x98] sm:$0xf]
  %v1483 = vld [vmem:[#allocation2 + $0x9c] sm:$0xf]
  %v1484 = vld [vmem:[#allocation2 + $0xa0] sm:$0xf]
  %v1485 = vld [vmem:[#allocation2 + $0xa4] sm:$0xf]
  %v1486 = vld [vmem:[#allocation2 + $0xa8] sm:$0xf]
  %v1487 = vld [vmem:[#allocation2 + $0xac] sm:$0xf]
  %v1488 = vld [vmem:[#allocation2 + $0xb0] sm:$0xf]
  %v1489 = vld [vmem:[#allocation2 + $0xb4] sm:$0xf]
  %v1490 = vld [vmem:[#allocation2 + $0xb8] sm:$0xf]
  %v1491 = vld [vmem:[#allocation2 + $0xbc] sm:$0xf]
  %v1492 = vld [vmem:[#allocation2 + $0xc0] sm:$0xf]
  %v1493 = vld [vmem:[#allocation2 + $0xc4] sm:$0xf]
  %v1494 = vld [vmem:[#allocation2 + $0xc8] sm:$0xf]
  %v1495 = vld [vmem:[#allocation2 + $0xcc] sm:$0xf]
  %v1496 = vld [vmem:[#allocation2 + $0xd0] sm:$0xf]
  %v1497 = vld [vmem:[#allocation2 + $0xd4] sm:$0xf]
  %v1498 = vld [vmem:[#allocation2 + $0xd8] sm:$0xf]
  %v1499 = vld [vmem:[#allocation2 + $0xdc] sm:$0xf]
  %v1500 = vld [vmem:[#allocation2 + $0xe0] sm:$0xf]
  %v1501 = vld [vmem:[#allocation2 + $0xe4] sm:$0xf]
  %v1502 = vld [vmem:[#allocation2 + $0xe8] sm:$0xf]
  %v1503 = vld [vmem:[#allocation2 + $0xec] sm:$0xf]
  %v1504 = vld [vmem:[#allocation2 + $0xf0] sm:$0xf]
  %v1505 = vld [vmem:[#allocation2 + $0xf4] sm:$0xf]
  %v1506 = vld [vmem:[#allocation2 + $0xf8] sm:$0xf]
  %v1507 = vld [vmem:[#allocation2 + $0xfc] sm:$0xf]
  %v1508 = vld [vmem:[#allocation2 + $0x100] sm:$0xf]
  %v1509 = vld [vmem:[#allocation2 + $0x104] sm:$0xf]
  %v1510 = vld [vmem:[#allocation2 + $0x108] sm:$0xf]
  %v1511 = vld [vmem:[#allocation2 + $0x10c] sm:$0xf]
  %v1512 = vld [vmem:[#allocation2 + $0x110] sm:$0xf]
  %v1513 = vld [vmem:[#allocation2 + $0x114] sm:$0xf]
  %v1514 = vld [vmem:[#allocation2 + $0x118] sm:$0xf]
  %v1515 = vld [vmem:[#allocation2 + $0x11c] sm:$0xf]
  %v1516 = vld [vmem:[#allocation2 + $0x120] sm:$0xf]
  %v1517 = vld [vmem:[#allocation2 + $0x124] sm:$0xf]
  %v1518 = vld [vmem:[#allocation2 + $0x128] sm:$0xf]
  %v1519 = vld [vmem:[#allocation2 + $0x12c] sm:$0xf]
  %v1520 = vld [vmem:[#allocation2 + $0x130] sm:$0xf]
  %v1521 = vld [vmem:[#allocation2 + $0x134] sm:$0xf]
  %v1522 = vld [vmem:[#allocation2 + $0x138] sm:$0xf]
  %v1523 = vld [vmem:[#allocation2 + $0x13c] sm:$0xf]
  %v1524 = vld [vmem:[#allocation5] sm:$0x8]
  %v1525 = vld [vmem:[#allocation5 + $0x24] sm:$0x7]
  %v1526 = vld [vmem:[#allocation5 + $0x24] sm:$0xf]
  %v1527 = vld [vmem:[#allocation5 + $0x28] sm:$0x1]
  %v1528 = vld [vmem:[#allocation5 + $0x4] sm:$0xe]
  %v1531 = vunpack.c.l.b16 %v1524
  %v1532 = vunpack.c.l.b16 %v1525
  %v1533 = vpack.c.b16 %v1304, %v1531
  %v1534 = vpack.c.b16 %v1532, %v1311
  %v1536 = vunpack.c.l.b16 %v1526
  %v1537 = vpack.c.b16 %v1536, %v1311
  %v1539 = vshrl.u32 %v1533, 16
  %v1541 = vshll.u32 %v1533, 16
  %v1543 = vrot.slane %v1541, 1
  %v1544 = vor.u32 %v1539, %v1543
  %v1545 = vsel %vm1325, %v1544, %v1336
  %v1547 = vshll.u32 %v1537, 16
  %v1549 = vrot.slane %v1547, 1
  %v1550 = vsel %vm1325, %v1356, %v1549
  %v1551 = vshrl.u32 %v1537, 16
  %v1553 = vor.u32 %v1551, %v1549
  %v1554 = vpack.c.b16 %v1305, %v1304
  %v1555 = vpack.c.b16 %v1307, %v1306
  %v1556 = vpack.c.b16 %v1309, %v1308
  %v1557 = vpack.c.b16 %v1311, %v1310
  %v1558 = vpack.c.b16 %v1536, %v1536
  %vm1559 = vcmask 1042432
  %v1560 = vrot.slane %v1554, 5
  %v1561 = vrot.slane %v1555, 5
  %v1562 = vsel %vm1559, %v1560, %v1561
  %v1563 = vrot.slane %v1556, 5
  %v1564 = vsel %vm1559, %v1561, %v1563
  %v1565 = vrot.slane %v1557, 5
  %v1566 = vsel %vm1559, %v1563, %v1565
  %v1567 = vrot.slane %v1558, 5
  %v1568 = vsel %vm1559, %v1565, %v1567
  %v1570 = vunpack.c.l.b16 %v1527
  %v1571 = vpack.c.b16 %v1570, %v1536
  %vm1572 = vsmask.f32 2304
  %v1574 = vshrl.u32 %v1554, 16
  %v1576 = vrot.slane %v1574, 5
  %v1577 = vshll.u32 %v1554, 16
  %v1579 = vrot.slane %v1577, 6
  %v1580 = vor.u32 %v1576, %v1579
  %v1582 = vshrl.u32 %v1555, 16
  %v1584 = vrot.slane %v1582, 5
  %v1585 = vshll.u32 %v1555, 16
  %v1587 = vrot.slane %v1585, 6
  %v1588 = vor.u32 %v1584, %v1587
  %v1589 = vsel %vm1572, %v1580, %v1588
  %v1591 = vshrl.u32 %v1556, 16
  %v1593 = vrot.slane %v1591, 5
  %v1594 = vshll.u32 %v1556, 16
  %v1596 = vrot.slane %v1594, 6
  %v1597 = vor.u32 %v1593, %v1596
  %v1598 = vsel %vm1572, %v1588, %v1597
  %v1600 = vshrl.u32 %v1557, 16
  %v1602 = vrot.slane %v1600, 5
  %v1603 = vshll.u32 %v1557, 16
  %v1605 = vrot.slane %v1603, 6
  %v1606 = vor.u32 %v1602, %v1605
  %v1607 = vsel %vm1572, %v1597, %v1606
  %v1609 = vshrl.u32 %v1571, 16
  %v1611 = vrot.slane %v1609, 5
  %v1612 = vshll.u32 %v1571, 16
  %v1614 = vrot.slane %v1612, 6
  %v1615 = vor.u32 %v1611, %v1614
  %v1616 = vsel %vm1572, %v1606, %v1615
  %v1618 = vunpack.c.l.b16 %v1528
  %v1619 = vpack.c.b16 %v1305, %v1618
  %vm1620 = vcmask 1041408
  %v1621 = vrot.slane %v1619, 6
  %v1622 = vrot.slane %v1555, 6
  %v1623 = vsel %vm1620, %v1621, %v1622
  %v1624 = vrot.slane %v1556, 6
  %v1625 = vsel %vm1620, %v1622, %v1624
  %v1626 = vrot.slane %v1557, 6
  %v1627 = vsel %vm1620, %v1624, %v1626
  %v1628 = vrot.slane %v1571, 6
  %v1629 = vsel %vm1620, %v1626, %v1628
  %s1630 = scalar_lea.vmem [#allocation2], 320
  %v1631 = vld [vmem:[%s1630] sm:$0xf]
  %v1632 = vld [vmem:[%s1630 + $0x4] sm:$0xf]
  %v1633 = vld [vmem:[%s1630 + $0x8] sm:$0xf]
  %v1634 = vld [vmem:[%s1630 + $0xc] sm:$0xf]
  %v1635 = vld [vmem:[%s1630 + $0x10] sm:$0xf]
  %v1636 = vld [vmem:[%s1630 + $0x14] sm:$0xf]
  %v1637 = vld [vmem:[%s1630 + $0x18] sm:$0xf]
  %v1638 = vld [vmem:[%s1630 + $0x1c] sm:$0xf]
  %v1639 = vld [vmem:[%s1630 + $0x20] sm:$0xf]
  %v1640 = vld [vmem:[%s1630 + $0x24] sm:$0xf]
  %v1641 = vld [vmem:[%s1630 + $0x28] sm:$0xf]
  %v1642 = vld [vmem:[%s1630 + $0x2c] sm:$0xf]
  %v1643 = vld [vmem:[%s1630 + $0x30] sm:$0xf]
  %v1644 = vld [vmem:[%s1630 + $0x34] sm:$0xf]
  %v1645 = vld [vmem:[%s1630 + $0x38] sm:$0xf]
  %v1646 = vld [vmem:[%s1630 + $0x3c] sm:$0xf]
  %v1647 = vld [vmem:[%s1630 + $0x40] sm:$0xf]
  %v1648 = vld [vmem:[%s1630 + $0x44] sm:$0xf]
  %v1649 = vld [vmem:[%s1630 + $0x48] sm:$0xf]
  %v1650 = vld [vmem:[%s1630 + $0x4c] sm:$0xf]
  %v1651 = vld [vmem:[%s1630 + $0x50] sm:$0xf]
  %v1652 = vld [vmem:[%s1630 + $0x54] sm:$0xf]
  %v1653 = vld [vmem:[%s1630 + $0x58] sm:$0xf]
  %v1654 = vld [vmem:[%s1630 + $0x5c] sm:$0xf]
  %v1655 = vld [vmem:[%s1630 + $0x60] sm:$0xf]
  %v1656 = vld [vmem:[%s1630 + $0x64] sm:$0xf]
  %v1657 = vld [vmem:[%s1630 + $0x68] sm:$0xf]
  %v1658 = vld [vmem:[%s1630 + $0x6c] sm:$0xf]
  %v1659 = vld [vmem:[%s1630 + $0x70] sm:$0xf]
  %v1660 = vld [vmem:[%s1630 + $0x74] sm:$0xf]
  %v1661 = vld [vmem:[%s1630 + $0x78] sm:$0xf]
  %v1662 = vld [vmem:[%s1630 + $0x7c] sm:$0xf]
  %v1663 = vld [vmem:[%s1630 + $0x80] sm:$0xf]
  %v1664 = vld [vmem:[%s1630 + $0x84] sm:$0xf]
  %v1665 = vld [vmem:[%s1630 + $0x88] sm:$0xf]
  %v1666 = vld [vmem:[%s1630 + $0x8c] sm:$0xf]
  %v1667 = vld [vmem:[%s1630 + $0x90] sm:$0xf]
  %v1668 = vld [vmem:[%s1630 + $0x94] sm:$0xf]
  %v1669 = vld [vmem:[%s1630 + $0x98] sm:$0xf]
  %v1670 = vld [vmem:[%s1630 + $0x9c] sm:$0xf]
  %v1671 = vld [vmem:[%s1630 + $0xa0] sm:$0xf]
  %v1672 = vld [vmem:[%s1630 + $0xa4] sm:$0xf]
  %v1673 = vld [vmem:[%s1630 + $0xa8] sm:$0xf]
  %v1674 = vld [vmem:[%s1630 + $0xac] sm:$0xf]
  %v1675 = vld [vmem:[%s1630 + $0xb0] sm:$0xf]
  %v1676 = vld [vmem:[%s1630 + $0xb4] sm:$0xf]
  %v1677 = vld [vmem:[%s1630 + $0xb8] sm:$0xf]
  %v1678 = vld [vmem:[%s1630 + $0xbc] sm:$0xf]
  %v1679 = vld [vmem:[%s1630 + $0xc0] sm:$0xf]
  %v1680 = vld [vmem:[%s1630 + $0xc4] sm:$0xf]
  %v1681 = vld [vmem:[%s1630 + $0xc8] sm:$0xf]
  %v1682 = vld [vmem:[%s1630 + $0xcc] sm:$0xf]
  %v1683 = vld [vmem:[%s1630 + $0xd0] sm:$0xf]
  %v1684 = vld [vmem:[%s1630 + $0xd4] sm:$0xf]
  %v1685 = vld [vmem:[%s1630 + $0xd8] sm:$0xf]
  %v1686 = vld [vmem:[%s1630 + $0xdc] sm:$0xf]
  %v1687 = vld [vmem:[%s1630 + $0xe0] sm:$0xf]
  %v1688 = vld [vmem:[%s1630 + $0xe4] sm:$0xf]
  %v1689 = vld [vmem:[%s1630 + $0xe8] sm:$0xf]
  %v1690 = vld [vmem:[%s1630 + $0xec] sm:$0xf]
  %v1691 = vld [vmem:[%s1630 + $0xf0] sm:$0xf]
  %v1692 = vld [vmem:[%s1630 + $0xf4] sm:$0xf]
  %v1693 = vld [vmem:[%s1630 + $0xf8] sm:$0xf]
  %v1694 = vld [vmem:[%s1630 + $0xfc] sm:$0xf]
  %v1695 = vld [vmem:[%s1630 + $0x100] sm:$0xf]
  %v1696 = vld [vmem:[%s1630 + $0x104] sm:$0xf]
  %v1697 = vld [vmem:[%s1630 + $0x108] sm:$0xf]
  %v1698 = vld [vmem:[%s1630 + $0x10c] sm:$0xf]
  %v1699 = vld [vmem:[%s1630 + $0x110] sm:$0xf]
  %v1700 = vld [vmem:[%s1630 + $0x114] sm:$0xf]
  %v1701 = vld [vmem:[%s1630 + $0x118] sm:$0xf]
  %v1702 = vld [vmem:[%s1630 + $0x11c] sm:$0xf]
  %v1703 = vld [vmem:[%s1630 + $0x120] sm:$0xf]
  %v1704 = vld [vmem:[%s1630 + $0x124] sm:$0xf]
  %v1705 = vld [vmem:[%s1630 + $0x128] sm:$0xf]
  %v1706 = vld [vmem:[%s1630 + $0x12c] sm:$0xf]
  %v1707 = vld [vmem:[%s1630 + $0x130] sm:$0xf]
  %v1708 = vld [vmem:[%s1630 + $0x134] sm:$0xf]
  %v1709 = vld [vmem:[%s1630 + $0x138] sm:$0xf]
  %v1710 = vld [vmem:[%s1630 + $0x13c] sm:$0xf]
  %vm1711 = vcmask 1044480
  %v1712 = vrot.slane %v1533, 3
  %v1713 = vrot.slane %v1313, 3
  %v1714 = vsel %vm1711, %v1712, %v1713
  %v1715 = vrot.slane %v1545, 3
  %v1716 = vrot.slane %v1345, 3
  %v1717 = vsel %vm1711, %v1715, %v1716
  %v1718 = vrot.slane %v1560, 3
  %v1719 = vrot.slane %v1562, 3
  %v1720 = vsel %vm1711, %v1718, %v1719
  %v1721 = vrot.slane %v1580, 3
  %v1722 = vrot.slane %v1589, 3
  %v1723 = vsel %vm1711, %v1721, %v1722
  %v1724 = vrot.slane %v1621, 3
  %v1725 = vrot.slane %v1623, 3
  %v1726 = vsel %vm1711, %v1724, %v1725
  %v1727 = vrot.slane %v1314, 3
  %v1728 = vsel %vm1711, %v1713, %v1727
  %v1729 = vrot.slane %v1353, 3
  %v1730 = vsel %vm1711, %v1716, %v1729
  %v1731 = vrot.slane %v1564, 3
  %v1732 = vsel %vm1711, %v1719, %v1731
  %v1733 = vrot.slane %v1598, 3
  %v1734 = vsel %vm1711, %v1722, %v1733
  %v1735 = vrot.slane %v1625, 3
  %v1736 = vsel %vm1711, %v1725, %v1735
  %v1737 = vrot.slane %v1315, 3
  %v1738 = vsel %vm1711, %v1727, %v1737
  %v1739 = vrot.slane %v1550, 3
  %v1740 = vsel %vm1711, %v1729, %v1739
  %v1741 = vrot.slane %v1566, 3
  %v1742 = vsel %vm1711, %v1731, %v1741
  %v1743 = vrot.slane %v1607, 3
  %v1744 = vsel %vm1711, %v1733, %v1743
  %v1745 = vrot.slane %v1627, 3
  %v1746 = vsel %vm1711, %v1735, %v1745
  %v1747 = vrot.slane %v1534, 3
  %v1748 = vsel %vm1711, %v1737, %v1747
  %v1749 = vrot.slane %v1553, 3
  %v1750 = vsel %vm1711, %v1739, %v1749
  %v1751 = vrot.slane %v1568, 3
  %v1752 = vsel %vm1711, %v1741, %v1751
  %v1753 = vrot.slane %v1616, 3
  %v1754 = vsel %vm1711, %v1743, %v1753
  %v1755 = vrot.slane %v1629, 3
  %v1756 = vsel %vm1711, %v1745, %v1755
  %v1862 = vunpack.c.l.b16 %v1631
  %v1863 = vunpack.c.l.b16 %v1632
  %v1864 = vunpack.c.l.b16 %v1633
  %v1865 = vunpack.c.l.b16 %v1634
  %v1866 = vunpack.c.l.b16 %v1635
  %v1867 = vunpack.c.l.b16 %v1636
  %v1868 = vunpack.c.l.b16 %v1637
  %v1869 = vunpack.c.l.b16 %v1638
  %v1870 = vunpack.c.l.b16 %v1639
  %v1871 = vunpack.c.l.b16 %v1640
  %v1872 = vunpack.c.l.b16 %v1641
  %v1873 = vunpack.c.l.b16 %v1642
  %v1874 = vunpack.c.l.b16 %v1643
  %v1875 = vunpack.c.l.b16 %v1644
  %v1876 = vunpack.c.l.b16 %v1645
  %v1877 = vunpack.c.l.b16 %v1646
  %v1878 = vunpack.c.l.b16 %v1647
  %v1879 = vunpack.c.l.b16 %v1648
  %v1880 = vunpack.c.l.b16 %v1649
  %v1881 = vunpack.c.l.b16 %v1650
  %v1882 = vunpack.c.l.b16 %v1651
  %v1883 = vunpack.c.l.b16 %v1652
  %v1884 = vunpack.c.l.b16 %v1653
  %v1885 = vunpack.c.l.b16 %v1654
  %v1886 = vunpack.c.l.b16 %v1655
  %v1887 = vunpack.c.l.b16 %v1656
  %v1888 = vunpack.c.l.b16 %v1657
  %v1889 = vunpack.c.l.b16 %v1658
  %v1890 = vunpack.c.l.b16 %v1659
  %v1891 = vunpack.c.l.b16 %v1660
  %v1892 = vunpack.c.l.b16 %v1661
  %v1893 = vunpack.c.l.b16 %v1662
  %v1894 = vunpack.c.l.b16 %v1663
  %v1895 = vunpack.c.l.b16 %v1664
  %v1896 = vunpack.c.l.b16 %v1665
  %v1897 = vunpack.c.l.b16 %v1666
  %v1898 = vunpack.c.l.b16 %v1667
  %v1899 = vunpack.c.l.b16 %v1668
  %v1900 = vunpack.c.l.b16 %v1669
  %v1901 = vunpack.c.l.b16 %v1670
  %v1902 = vunpack.c.l.b16 %v1671
  %v1903 = vunpack.c.l.b16 %v1672
  %v1904 = vunpack.c.l.b16 %v1673
  %v1905 = vunpack.c.l.b16 %v1674
  %v1906 = vunpack.c.l.b16 %v1675
  %v1907 = vunpack.c.l.b16 %v1676
  %v1908 = vunpack.c.l.b16 %v1677
  %v1909 = vunpack.c.l.b16 %v1678
  %v1910 = vunpack.c.l.b16 %v1679
  %v1911 = vunpack.c.l.b16 %v1680
  %v1912 = vunpack.c.l.b16 %v1681
  %v1913 = vunpack.c.l.b16 %v1682
  %v1914 = vunpack.c.l.b16 %v1683
  %v1915 = vunpack.c.l.b16 %v1684
  %v1916 = vunpack.c.l.b16 %v1685
  %v1917 = vunpack.c.l.b16 %v1686
  %v1918 = vunpack.c.l.b16 %v1687
  %v1919 = vunpack.c.l.b16 %v1688
  %v1920 = vunpack.c.l.b16 %v1689
  %v1921 = vunpack.c.l.b16 %v1690
  %v1922 = vunpack.c.l.b16 %v1691
  %v1923 = vunpack.c.l.b16 %v1692
  %v1924 = vunpack.c.l.b16 %v1693
  %v1925 = vunpack.c.l.b16 %v1694
  %v1926 = vunpack.c.l.b16 %v1695
  %v1927 = vunpack.c.l.b16 %v1696
  %v1928 = vunpack.c.l.b16 %v1697
  %v1929 = vunpack.c.l.b16 %v1698
  %v1930 = vunpack.c.l.b16 %v1699
  %v1931 = vunpack.c.l.b16 %v1700
  %v1932 = vunpack.c.l.b16 %v1701
  %v1933 = vunpack.c.l.b16 %v1702
  %v1934 = vunpack.c.l.b16 %v1703
  %v1935 = vunpack.c.l.b16 %v1704
  %v1936 = vunpack.c.l.b16 %v1705
  %v1937 = vunpack.c.l.b16 %v1706
  %v1938 = vunpack.c.l.b16 %v1707
  %v1939 = vunpack.c.l.b16 %v1708
  %v1940 = vunpack.c.l.b16 %v1709
  %v1941 = vunpack.c.l.b16 %v1710
  %v1942 = vpack.c.b16 %v1863, %v1862
  %v1943 = vpack.c.b16 %v1865, %v1864
  %v1944 = vpack.c.b16 %v1867, %v1866
  %v1945 = vpack.c.b16 %v1869, %v1868
  %v1946 = vpack.c.b16 %v1871, %v1870
  %v1947 = vpack.c.b16 %v1873, %v1872
  %v1948 = vpack.c.b16 %v1875, %v1874
  %v1949 = vpack.c.b16 %v1877, %v1876
  %v1950 = vpack.c.b16 %v1879, %v1878
  %v1951 = vpack.c.b16 %v1881, %v1880
  %v1952 = vpack.c.b16 %v1883, %v1882
  %v1953 = vpack.c.b16 %v1885, %v1884
  %v1954 = vpack.c.b16 %v1887, %v1886
  %v1955 = vpack.c.b16 %v1889, %v1888
  %v1956 = vpack.c.b16 %v1891, %v1890
  %v1957 = vpack.c.b16 %v1893, %v1892
  %v1958 = vpack.c.b16 %v1895, %v1894
  %v1959 = vpack.c.b16 %v1897, %v1896
  %v1960 = vpack.c.b16 %v1899, %v1898
  %v1961 = vpack.c.b16 %v1901, %v1900
  %v1962 = vpack.c.b16 %v1903, %v1902
  %v1963 = vpack.c.b16 %v1905, %v1904
  %v1964 = vpack.c.b16 %v1907, %v1906
  %v1965 = vpack.c.b16 %v1909, %v1908
  %v1966 = vpack.c.b16 %v1911, %v1910
  %v1967 = vpack.c.b16 %v1913, %v1912
  %v1968 = vpack.c.b16 %v1915, %v1914
  %v1969 = vpack.c.b16 %v1917, %v1916
  %v1970 = vpack.c.b16 %v1919, %v1918
  %v1971 = vpack.c.b16 %v1921, %v1920
  %v1972 = vpack.c.b16 %v1923, %v1922
  %v1973 = vpack.c.b16 %v1925, %v1924
  %v1974 = vpack.c.b16 %v1927, %v1926
  %v1975 = vpack.c.b16 %v1929, %v1928
  %v1976 = vpack.c.b16 %v1931, %v1930
  %v1977 = vpack.c.b16 %v1933, %v1932
  %v1978 = vpack.c.b16 %v1935, %v1934
  %v1979 = vpack.c.b16 %v1937, %v1936
  %v1980 = vpack.c.b16 %v1939, %v1938
  %v1981 = vpack.c.b16 %v1941, %v1940
  %2022 = vmatpush.bf16.msra.mxu0 %v1949
  %2023 = vmatpush.bf16.msra.mxu0 %v1948
  %2024 = vmatpush.bf16.msra.mxu0 %v1947
  %2025 = vmatpush.bf16.msra.mxu0 %v1946
  %2026 = vmatpush.bf16.msra.mxu0 %v1945
  %2027 = vmatpush.bf16.msra.mxu0 %v1944
  %2028 = vmatpush.bf16.msra.mxu0 %v1943
  %2029 = vmatpush.bf16.msra.mxu0 %v1942
  %2030 = vmatmul.bf16.gmra.mxu0 %v1714
  %v2031 = vpop.f32.mrf.mxu0
  %v2032 = vadd.f32 0.0, %v2031
  %v2033 = vpop.f32.mrf.mxu0
  %2034 = vmatmul.bf16.gmra.mxu0 %v1728
  %v2035 = vpop.f32.mrf.mxu0
  %v2036 = vpop.f32.mrf.mxu0
  %2037 = vmatmul.bf16.gmra.mxu0 %v1738
  %v2038 = vpop.f32.mrf.mxu0
  %v2039 = vadd.f32 0.0, %v2038
  %v2040 = vpop.f32.mrf.mxu0
  %v2041 = vadd.f32 0.0, %v2040
  %2042 = vmatmul.bf16.gmra.mxu0 %v1748
  %v2043 = vpop.f32.mrf.mxu0
  %v2044 = vpop.f32.mrf.mxu0
  %2045 = vmatmul.bf16.gmra.mxu0 %v1747
  %v2046 = vpop.f32.mrf.mxu0
  %v2047 = vpop.f32.mrf.mxu0
  %2048 = vdwg.mxu0
  %2049 = vmatpush.bf16.msra.mxu0 %v1957
  %2050 = vmatpush.bf16.msra.mxu0 %v1956
  %2051 = vmatpush.bf16.msra.mxu0 %v1955
  %2052 = vmatpush.bf16.msra.mxu0 %v1954
  %2053 = vmatpush.bf16.msra.mxu0 %v1953
  %2054 = vmatpush.bf16.msra.mxu0 %v1952
  %2055 = vmatpush.bf16.msra.mxu0 %v1951
  %2056 = vmatpush.bf16.msra.mxu0 %v1950
  %2057 = vmatmul.bf16.gmra.mxu0 %v1717
  %v2058 = vpop.f32.mrf.mxu0
  %v2059 = vadd.f32 %v2032, %v2058
  %v2060 = vpop.f32.mrf.mxu0
  %2061 = vmatmul.bf16.gmra.mxu0 %v1730
  %v2062 = vpop.f32.mrf.mxu0
  %v2063 = vpop.f32.mrf.mxu0
  %2064 = vmatmul.bf16.gmra.mxu0 %v1740
  %v2065 = vpop.f32.mrf.mxu0
  %v2066 = vadd.f32 %v2039, %v2065
  %v2067 = vpop.f32.mrf.mxu0
  %v2068 = vadd.f32 %v2041, %v2067
  %2069 = vmatmul.bf16.gmra.mxu0 %v1750
  %v2070 = vpop.f32.mrf.mxu0
  %v2071 = vpop.f32.mrf.mxu0
  %2072 = vmatmul.bf16.gmra.mxu0 %v1749
  %v2073 = vpop.f32.mrf.mxu0
  %v2074 = vpop.f32.mrf.mxu0
  %2075 = vdwg.mxu0
  %2076 = vmatpush.bf16.msra.mxu0 %v1965
  %2077 = vmatpush.bf16.msra.mxu0 %v1964
  %2078 = vmatpush.bf16.msra.mxu0 %v1963
  %2079 = vmatpush.bf16.msra.mxu0 %v1962
  %2080 = vmatpush.bf16.msra.mxu0 %v1961
  %2081 = vmatpush.bf16.msra.mxu0 %v1960
  %2082 = vmatpush.bf16.msra.mxu0 %v1959
  %2083 = vmatpush.bf16.msra.mxu0 %v1958
  %2084 = vmatmul.bf16.gmra.mxu0 %v1720
  %v2085 = vpop.f32.mrf.mxu0
  %v2086 = vadd.f32 %v2059, %v2085
  %v2087 = vpop.f32.mrf.mxu0
  %2088 = vmatmul.bf16.gmra.mxu0 %v1732
  %v2089 = vpop.f32.mrf.mxu0
  %v2090 = vpop.f32.mrf.mxu0
  %2091 = vmatmul.bf16.gmra.mxu0 %v1742
  %v2092 = vpop.f32.mrf.mxu0
  %v2093 = vadd.f32 %v2066, %v2092
  %v2094 = vpop.f32.mrf.mxu0
  %v2095 = vadd.f32 %v2068, %v2094
  %2096 = vmatmul.bf16.gmra.mxu0 %v1752
  %v2097 = vpop.f32.mrf.mxu0
  %v2098 = vpop.f32.mrf.mxu0
  %2099 = vmatmul.bf16.gmra.mxu0 %v1751
  %v2100 = vpop.f32.mrf.mxu0
  %v2101 = vpop.f32.mrf.mxu0
  %2102 = vdwg.mxu0
  %2103 = vmatpush.bf16.msra.mxu0 %v1973
  %2104 = vmatpush.bf16.msra.mxu0 %v1972
  %2105 = vmatpush.bf16.msra.mxu0 %v1971
  %2106 = vmatpush.bf16.msra.mxu0 %v1970
  %2107 = vmatpush.bf16.msra.mxu0 %v1969
  %2108 = vmatpush.bf16.msra.mxu0 %v1968
  %2109 = vmatpush.bf16.msra.mxu0 %v1967
  %2110 = vmatpush.bf16.msra.mxu0 %v1966
  %2111 = vmatmul.bf16.gmra.mxu0 %v1723
  %v2112 = vpop.f32.mrf.mxu0
  %v2113 = vadd.f32 %v2086, %v2112
  %v2114 = vpop.f32.mrf.mxu0
  %2115 = vmatmul.bf16.gmra.mxu0 %v1734
  %v2116 = vpop.f32.mrf.mxu0
  %v2117 = vpop.f32.mrf.mxu0
  %2118 = vmatmul.bf16.gmra.mxu0 %v1744
  %v2119 = vpop.f32.mrf.mxu0
  %v2120 = vadd.f32 %v2093, %v2119
  %v2121 = vpop.f32.mrf.mxu0
  %v2122 = vadd.f32 %v2095, %v2121
  %2123 = vmatmul.bf16.gmra.mxu0 %v1754
  %v2124 = vpop.f32.mrf.mxu0
  %v2125 = vpop.f32.mrf.mxu0
  %2126 = vmatmul.bf16.gmra.mxu0 %v1753
  %v2127 = vpop.f32.mrf.mxu0
  %v2128 = vpop.f32.mrf.mxu0
  %2129 = vdwg.mxu0
  %2130 = vmatpush.bf16.msra.mxu0 %v1981
  %2131 = vmatpush.bf16.msra.mxu0 %v1980
  %2132 = vmatpush.bf16.msra.mxu0 %v1979
  %2133 = vmatpush.bf16.msra.mxu0 %v1978
  %2134 = vmatpush.bf16.msra.mxu0 %v1977
  %2135 = vmatpush.bf16.msra.mxu0 %v1976
  %2136 = vmatpush.bf16.msra.mxu0 %v1975
  %2137 = vmatpush.bf16.msra.mxu0 %v1974
  %2138 = vmatmul.bf16.gmra.mxu0 %v1726
  %v2139 = vpop.f32.mrf.mxu0
  %v2140 = vadd.f32 %v2113, %v2139
  %v2141 = vpop.f32.mrf.mxu0
  %2142 = vmatmul.bf16.gmra.mxu0 %v1736
  %v2143 = vpop.f32.mrf.mxu0
  %v2144 = vpop.f32.mrf.mxu0
  %2145 = vmatmul.bf16.gmra.mxu0 %v1746
  %v2146 = vpop.f32.mrf.mxu0
  %v2147 = vadd.f32 %v2120, %v2146
  %v2148 = vpop.f32.mrf.mxu0
  %v2149 = vadd.f32 %v2122, %v2148
  %2150 = vmatmul.bf16.gmra.mxu0 %v1756
  %v2151 = vpop.f32.mrf.mxu0
  %v2152 = vpop.f32.mrf.mxu0
  %2153 = vmatmul.bf16.gmra.mxu0 %v1755
  %v2154 = vpop.f32.mrf.mxu0
  %v2155 = vpop.f32.mrf.mxu0
  %2156 = vdwg.mxu0
  %v2237 = vunpack.c.l.b16 %v1444
  %v2238 = vunpack.c.l.b16 %v1445
  %v2239 = vunpack.c.l.b16 %v1446
  %v2240 = vunpack.c.l.b16 %v1447
  %v2241 = vunpack.c.l.b16 %v1448
  %v2242 = vunpack.c.l.b16 %v1449
  %v2243 = vunpack.c.l.b16 %v1450
  %v2244 = vunpack.c.l.b16 %v1451
  %v2245 = vunpack.c.l.b16 %v1452
  %v2246 = vunpack.c.l.b16 %v1453
  %v2247 = vunpack.c.l.b16 %v1454
  %v2248 = vunpack.c.l.b16 %v1455
  %v2249 = vunpack.c.l.b16 %v1456
  %v2250 = vunpack.c.l.b16 %v1457
  %v2251 = vunpack.c.l.b16 %v1458
  %v2252 = vunpack.c.l.b16 %v1459
  %v2253 = vunpack.c.l.b16 %v1460
  %v2254 = vunpack.c.l.b16 %v1461
  %v2255 = vunpack.c.l.b16 %v1462
  %v2256 = vunpack.c.l.b16 %v1463
  %v2257 = vunpack.c.l.b16 %v1464
  %v2258 = vunpack.c.l.b16 %v1465
  %v2259 = vunpack.c.l.b16 %v1466
  %v2260 = vunpack.c.l.b16 %v1467
  %v2261 = vunpack.c.l.b16 %v1468
  %v2262 = vunpack.c.l.b16 %v1469
  %v2263 = vunpack.c.l.b16 %v1470
  %v2264 = vunpack.c.l.b16 %v1471
  %v2265 = vunpack.c.l.b16 %v1472
  %v2266 = vunpack.c.l.b16 %v1473
  %v2267 = vunpack.c.l.b16 %v1474
  %v2268 = vunpack.c.l.b16 %v1475
  %v2269 = vunpack.c.l.b16 %v1476
  %v2270 = vunpack.c.l.b16 %v1477
  %v2271 = vunpack.c.l.b16 %v1478
  %v2272 = vunpack.c.l.b16 %v1479
  %v2273 = vunpack.c.l.b16 %v1480
  %v2274 = vunpack.c.l.b16 %v1481
  %v2275 = vunpack.c.l.b16 %v1482
  %v2276 = vunpack.c.l.b16 %v1483
  %v2277 = vunpack.c.l.b16 %v1484
  %v2278 = vunpack.c.l.b16 %v1485
  %v2279 = vunpack.c.l.b16 %v1486
  %v2280 = vunpack.c.l.b16 %v1487
  %v2281 = vunpack.c.l.b16 %v1488
  %v2282 = vunpack.c.l.b16 %v1489
  %v2283 = vunpack.c.l.b16 %v1490
  %v2284 = vunpack.c.l.b16 %v1491
  %v2285 = vunpack.c.l.b16 %v1492
  %v2286 = vunpack.c.l.b16 %v1493
  %v2287 = vunpack.c.l.b16 %v1494
  %v2288 = vunpack.c.l.b16 %v1495
  %v2289 = vunpack.c.l.b16 %v1496
  %v2290 = vunpack.c.l.b16 %v1497
  %v2291 = vunpack.c.l.b16 %v1498
  %v2292 = vunpack.c.l.b16 %v1499
  %v2293 = vunpack.c.l.b16 %v1500
  %v2294 = vunpack.c.l.b16 %v1501
  %v2295 = vunpack.c.l.b16 %v1502
  %v2296 = vunpack.c.l.b16 %v1503
  %v2297 = vunpack.c.l.b16 %v1504
  %v2298 = vunpack.c.l.b16 %v1505
  %v2299 = vunpack.c.l.b16 %v1506
  %v2300 = vunpack.c.l.b16 %v1507
  %v2301 = vunpack.c.l.b16 %v1508
  %v2302 = vunpack.c.l.b16 %v1509
  %v2303 = vunpack.c.l.b16 %v1510
  %v2304 = vunpack.c.l.b16 %v1511
  %v2305 = vunpack.c.l.b16 %v1512
  %v2306 = vunpack.c.l.b16 %v1513
  %v2307 = vunpack.c.l.b16 %v1514
  %v2308 = vunpack.c.l.b16 %v1515
  %v2309 = vunpack.c.l.b16 %v1516
  %v2310 = vunpack.c.l.b16 %v1517
  %v2311 = vunpack.c.l.b16 %v1518
  %v2312 = vunpack.c.l.b16 %v1519
  %v2313 = vunpack.c.l.b16 %v1520
  %v2314 = vunpack.c.l.b16 %v1521
  %v2315 = vunpack.c.l.b16 %v1522
  %v2316 = vunpack.c.l.b16 %v1523
  %v2317 = vpack.c.b16 %v2238, %v2237
  %v2318 = vpack.c.b16 %v2240, %v2239
  %v2319 = vpack.c.b16 %v2242, %v2241
  %v2320 = vpack.c.b16 %v2244, %v2243
  %v2321 = vpack.c.b16 %v2246, %v2245
  %v2322 = vpack.c.b16 %v2248, %v2247
  %v2323 = vpack.c.b16 %v2250, %v2249
  %v2324 = vpack.c.b16 %v2252, %v2251
  %v2325 = vpack.c.b16 %v2254, %v2253
  %v2326 = vpack.c.b16 %v2256, %v2255
  %v2327 = vpack.c.b16 %v2258, %v2257
  %v2328 = vpack.c.b16 %v2260, %v2259
  %v2329 = vpack.c.b16 %v2262, %v2261
  %v2330 = vpack.c.b16 %v2264, %v2263
  %v2331 = vpack.c.b16 %v2266, %v2265
  %v2332 = vpack.c.b16 %v2268, %v2267
  %v2333 = vpack.c.b16 %v2270, %v2269
  %v2334 = vpack.c.b16 %v2272, %v2271
  %v2335 = vpack.c.b16 %v2274, %v2273
  %v2336 = vpack.c.b16 %v2276, %v2275
  %v2337 = vpack.c.b16 %v2278, %v2277
  %v2338 = vpack.c.b16 %v2280, %v2279
  %v2339 = vpack.c.b16 %v2282, %v2281
  %v2340 = vpack.c.b16 %v2284, %v2283
  %v2341 = vpack.c.b16 %v2286, %v2285
  %v2342 = vpack.c.b16 %v2288, %v2287
  %v2343 = vpack.c.b16 %v2290, %v2289
  %v2344 = vpack.c.b16 %v2292, %v2291
  %v2345 = vpack.c.b16 %v2294, %v2293
  %v2346 = vpack.c.b16 %v2296, %v2295
  %v2347 = vpack.c.b16 %v2298, %v2297
  %v2348 = vpack.c.b16 %v2300, %v2299
  %v2349 = vpack.c.b16 %v2302, %v2301
  %v2350 = vpack.c.b16 %v2304, %v2303
  %v2351 = vpack.c.b16 %v2306, %v2305
  %v2352 = vpack.c.b16 %v2308, %v2307
  %v2353 = vpack.c.b16 %v2310, %v2309
  %v2354 = vpack.c.b16 %v2312, %v2311
  %v2355 = vpack.c.b16 %v2314, %v2313
  %v2356 = vpack.c.b16 %v2316, %v2315
  %2397 = vmatpush.bf16.msra.mxu0 %v2324
  %2398 = vmatpush.bf16.msra.mxu0 %v2323
  %2399 = vmatpush.bf16.msra.mxu0 %v2322
  %2400 = vmatpush.bf16.msra.mxu0 %v2321
  %2401 = vmatpush.bf16.msra.mxu0 %v2320
  %2402 = vmatpush.bf16.msra.mxu0 %v2319
  %2403 = vmatpush.bf16.msra.mxu0 %v2318
  %2404 = vmatpush.bf16.msra.mxu0 %v2317
  %2405 = vmatmul.bf16.gmra.mxu0 %v1312
  %v2406 = vpop.f32.mrf.mxu0
  %v2407 = vadd.f32 %v2140, %v2406
  %v2408 = vpop.f32.mrf.mxu0
  %2409 = vmatmul.bf16.gmra.mxu0 %v1313
  %v2410 = vpop.f32.mrf.mxu0
  %v2411 = vpop.f32.mrf.mxu0
  %2412 = vmatmul.bf16.gmra.mxu0 %v1314
  %v2413 = vpop.f32.mrf.mxu0
  %v2414 = vadd.f32 %v2147, %v2413
  %v2415 = vpop.f32.mrf.mxu0
  %v2416 = vadd.f32 %v2149, %v2415
  %2417 = vmatmul.bf16.gmra.mxu0 %v1315
  %v2418 = vpop.f32.mrf.mxu0
  %v2419 = vpop.f32.mrf.mxu0
  %2420 = vmatmul.bf16.gmra.mxu0 %v1316
  %v2421 = vpop.f32.mrf.mxu0
  %v2422 = vpop.f32.mrf.mxu0
  %2423 = vdwg.mxu0
  %2424 = vmatpush.bf16.msra.mxu0 %v2332
  %2425 = vmatpush.bf16.msra.mxu0 %v2331
  %2426 = vmatpush.bf16.msra.mxu0 %v2330
  %2427 = vmatpush.bf16.msra.mxu0 %v2329
  %2428 = vmatpush.bf16.msra.mxu0 %v2328
  %2429 = vmatpush.bf16.msra.mxu0 %v2327
  %2430 = vmatpush.bf16.msra.mxu0 %v2326
  %2431 = vmatpush.bf16.msra.mxu0 %v2325
  %2432 = vmatmul.bf16.gmra.mxu0 %v1337
  %v2433 = vpop.f32.mrf.mxu0
  %v2434 = vadd.f32 %v2407, %v2433
  %v2435 = vpop.f32.mrf.mxu0
  %2436 = vmatmul.bf16.gmra.mxu0 %v1345
  %v2437 = vpop.f32.mrf.mxu0
  %v2438 = vpop.f32.mrf.mxu0
  %2439 = vmatmul.bf16.gmra.mxu0 %v1353
  %v2440 = vpop.f32.mrf.mxu0
  %v2441 = vadd.f32 %v2414, %v2440
  %v2442 = vpop.f32.mrf.mxu0
  %v2443 = vadd.f32 %v2416, %v2442
  %2444 = vmatmul.bf16.gmra.mxu0 %v1361
  %v2445 = vpop.f32.mrf.mxu0
  %v2446 = vpop.f32.mrf.mxu0
  %2447 = vmatmul.bf16.gmra.mxu0 %v1364
  %v2448 = vpop.f32.mrf.mxu0
  %v2449 = vpop.f32.mrf.mxu0
  %2450 = vdwg.mxu0
  %2451 = vmatpush.bf16.msra.mxu0 %v2340
  %2452 = vmatpush.bf16.msra.mxu0 %v2339
  %2453 = vmatpush.bf16.msra.mxu0 %v2338
  %2454 = vmatpush.bf16.msra.mxu0 %v2337
  %2455 = vmatpush.bf16.msra.mxu0 %v2336
  %2456 = vmatpush.bf16.msra.mxu0 %v2335
  %2457 = vmatpush.bf16.msra.mxu0 %v2334
  %2458 = vmatpush.bf16.msra.mxu0 %v2333
  %2459 = vmatmul.bf16.gmra.mxu0 %v1376
  %v2460 = vpop.f32.mrf.mxu0
  %v2461 = vadd.f32 %v2434, %v2460
  %v2462 = vpop.f32.mrf.mxu0
  %2463 = vmatmul.bf16.gmra.mxu0 %v1378
  %v2464 = vpop.f32.mrf.mxu0
  %v2465 = vpop.f32.mrf.mxu0
  %2466 = vmatmul.bf16.gmra.mxu0 %v1380
  %v2467 = vpop.f32.mrf.mxu0
  %v2468 = vadd.f32 %v2441, %v2467
  %v2469 = vpop.f32.mrf.mxu0
  %v2470 = vadd.f32 %v2443, %v2469
  %2471 = vmatmul.bf16.gmra.mxu0 %v1382
  %v2472 = vpop.f32.mrf.mxu0
  %v2473 = vpop.f32.mrf.mxu0
  %2474 = vmatmul.bf16.gmra.mxu0 %v1381
  %v2475 = vpop.f32.mrf.mxu0
  %v2476 = vpop.f32.mrf.mxu0
  %2477 = vdwg.mxu0
  %2478 = vmatpush.bf16.msra.mxu0 %v2348
  %2479 = vmatpush.bf16.msra.mxu0 %v2347
  %2480 = vmatpush.bf16.msra.mxu0 %v2346
  %2481 = vmatpush.bf16.msra.mxu0 %v2345
  %2482 = vmatpush.bf16.msra.mxu0 %v2344
  %2483 = vmatpush.bf16.msra.mxu0 %v2343
  %2484 = vmatpush.bf16.msra.mxu0 %v2342
  %2485 = vmatpush.bf16.msra.mxu0 %v2341
  %2486 = vmatmul.bf16.gmra.mxu0 %v1403
  %v2487 = vpop.f32.mrf.mxu0
  %v2488 = vadd.f32 %v2461, %v2487
  %v2489 = vpop.f32.mrf.mxu0
  %2490 = vmatmul.bf16.gmra.mxu0 %v1407
  %v2491 = vpop.f32.mrf.mxu0
  %v2492 = vpop.f32.mrf.mxu0
  %2493 = vmatmul.bf16.gmra.mxu0 %v1411
  %v2494 = vpop.f32.mrf.mxu0
  %v2495 = vadd.f32 %v2468, %v2494
  %v2496 = vpop.f32.mrf.mxu0
  %v2497 = vadd.f32 %v2470, %v2496
  %2498 = vmatmul.bf16.gmra.mxu0 %v1420
  %v2499 = vpop.f32.mrf.mxu0
  %v2500 = vpop.f32.mrf.mxu0
  %2501 = vmatmul.bf16.gmra.mxu0 %v1419
  %v2502 = vpop.f32.mrf.mxu0
  %v2503 = vpop.f32.mrf.mxu0
  %2504 = vdwg.mxu0
  %2505 = vmatpush.bf16.msra.mxu0 %v2356
  %2506 = vmatpush.bf16.msra.mxu0 %v2355
  %2507 = vmatpush.bf16.msra.mxu0 %v2354
  %2508 = vmatpush.bf16.msra.mxu0 %v2353
  %2509 = vmatpush.bf16.msra.mxu0 %v2352
  %2510 = vmatpush.bf16.msra.mxu0 %v2351
  %2511 = vmatpush.bf16.msra.mxu0 %v2350
  %2512 = vmatpush.bf16.msra.mxu0 %v2349
  %2513 = vmatmul.bf16.gmra.mxu0 %v1432
  %v2514 = vpop.f32.mrf.mxu0
  %v2515 = vadd.f32 %v2488, %v2514
  %v2516 = vpop.f32.mrf.mxu0
  %2517 = vmatmul.bf16.gmra.mxu0 %v1434
  %v2518 = vpop.f32.mrf.mxu0
  %v2519 = vpop.f32.mrf.mxu0
  %2520 = vmatmul.bf16.gmra.mxu0 %v1436
  %v2521 = vpop.f32.mrf.mxu0
  %v2522 = vadd.f32 %v2495, %v2521
  %v2523 = vpop.f32.mrf.mxu0
  %v2524 = vadd.f32 %v2497, %v2523
  %2525 = vmatmul.bf16.gmra.mxu0 %v1438
  %v2526 = vpop.f32.mrf.mxu0
  %v2527 = vpop.f32.mrf.mxu0
  %2528 = vmatmul.bf16.gmra.mxu0 %v1437
  %v2529 = vpop.f32.mrf.mxu0
  %v2530 = vpop.f32.mrf.mxu0
  %2531 = vdwg.mxu0
  %v2532 = vld [vmem:[#allocation5 + $0x4] sm:$0xc]
  %v2533 = vld [vmem:[#allocation5 + $0x28] sm:$0x3]
  %v2534 = vld [vmem:[#allocation5 + $0x28] sm:$0x7]
  %v2535 = vld [vmem:[#allocation5 + $0x4] sm:$0x8]
  %v2536 = vld [vmem:[#allocation5 + $0x28] sm:$0xf]
  %v2539 = vunpack.c.l.b16 %v2532
  %v2540 = vunpack.c.l.b16 %v2533
  %v2541 = vpack.c.b16 %v1305, %v2539
  %v2542 = vpack.c.b16 %v2540, %v1536
  %v2544 = vunpack.c.l.b16 %v2534
  %v2545 = vpack.c.b16 %v2544, %v1536
  %v2547 = vshrl.u32 %v2541, 16
  %v2549 = vshll.u32 %v2541, 16
  %v2551 = vrot.slane %v2549, 1
  %v2552 = vor.u32 %v2547, %v2551
  %v2553 = vrot.slane %v1585, 1
  %v2554 = vsel %vm1325, %v2552, %v2553
  %v2555 = vor.u32 %v1582, %v2553
  %v2556 = vrot.slane %v1594, 1
  %v2557 = vsel %vm1325, %v2555, %v2556
  %v2558 = vor.u32 %v1591, %v2556
  %v2559 = vrot.slane %v1603, 1
  %v2560 = vsel %vm1325, %v2558, %v2559
  %v2561 = vor.u32 %v1600, %v2559
  %v2563 = vshll.u32 %v2545, 16
  %v2565 = vrot.slane %v2563, 1
  %v2566 = vsel %vm1325, %v2561, %v2565
  %v2567 = vshrl.u32 %v2545, 16
  %v2569 = vor.u32 %v2567, %v2565
  %v2571 = vunpack.c.l.b16 %v2535
  %v2572 = vpack.c.b16 %v1305, %v2571
  %v2573 = vrot.slane %v2572, 1
  %v2574 = vrot.slane %v1555, 1
  %v2575 = vsel %vm1373, %v2573, %v2574
  %v2576 = vrot.slane %v1556, 1
  %v2577 = vsel %vm1373, %v2574, %v2576
  %v2578 = vrot.slane %v1557, 1
  %v2579 = vsel %vm1373, %v2576, %v2578
  %v2580 = vrot.slane %v2545, 1
  %v2581 = vsel %vm1373, %v2578, %v2580
  %v2583 = vunpack.c.l.b16 %v2536
  %v2584 = vpack.c.b16 %v2583, %v1536
  %v2586 = vshrl.u32 %v2572, 16
  %v2588 = vrot.slane %v2586, 1
  %v2589 = vshll.u32 %v2572, 16
  %v2591 = vrot.slane %v2589, 2
  %v2592 = vor.u32 %v2588, %v2591
  %v2593 = vrot.slane %v1582, 1
  %v2594 = vrot.slane %v1585, 2
  %v2595 = vor.u32 %v2593, %v2594
  %v2596 = vsel %vm1391, %v2592, %v2595
  %v2597 = vrot.slane %v1591, 1
  %v2598 = vrot.slane %v1594, 2
  %v2599 = vor.u32 %v2597, %v2598
  %v2600 = vsel %vm1391, %v2595, %v2599
  %v2601 = vrot.slane %v1600, 1
  %v2602 = vrot.slane %v1603, 2
  %v2603 = vor.u32 %v2601, %v2602
  %v2604 = vsel %vm1391, %v2599, %v2603
  %v2606 = vshrl.u32 %v2584, 16
  %v2608 = vrot.slane %v2606, 1
  %v2609 = vshll.u32 %v2584, 16
  %v2611 = vrot.slane %v2609, 2
  %v2612 = vor.u32 %v2608, %v2611
  %v2613 = vsel %vm1391, %v2603, %v2612
  %v2614 = vpack.c.b16 %v2583, %v2583
  %v2615 = vrot.slane %v1313, 6
  %v2616 = vrot.slane %v1314, 6
  %v2617 = vsel %vm1620, %v2615, %v2616
  %v2618 = vrot.slane %v1315, 6
  %v2619 = vsel %vm1620, %v2616, %v2618
  %v2620 = vrot.slane %v1537, 6
  %v2621 = vsel %vm1620, %v2618, %v2620
  %v2622 = vrot.slane %v2614, 6
  %v2623 = vsel %vm1620, %v2620, %v2622
  %s2624 = scalar_lea.vmem [#allocation2], 640
  %v2625 = vld [vmem:[%s2624] sm:$0xf]
  %v2626 = vld [vmem:[%s2624 + $0x4] sm:$0xf]
  %v2627 = vld [vmem:[%s2624 + $0x8] sm:$0xf]
  %v2628 = vld [vmem:[%s2624 + $0xc] sm:$0xf]
  %v2629 = vld [vmem:[%s2624 + $0x10] sm:$0xf]
  %v2630 = vld [vmem:[%s2624 + $0x14] sm:$0xf]
  %v2631 = vld [vmem:[%s2624 + $0x18] sm:$0xf]
  %v2632 = vld [vmem:[%s2624 + $0x1c] sm:$0xf]
  %v2633 = vld [vmem:[%s2624 + $0x20] sm:$0xf]
  %v2634 = vld [vmem:[%s2624 + $0x24] sm:$0xf]
  %v2635 = vld [vmem:[%s2624 + $0x28] sm:$0xf]
  %v2636 = vld [vmem:[%s2624 + $0x2c] sm:$0xf]
  %v2637 = vld [vmem:[%s2624 + $0x30] sm:$0xf]
  %v2638 = vld [vmem:[%s2624 + $0x34] sm:$0xf]
  %v2639 = vld [vmem:[%s2624 + $0x38] sm:$0xf]
  %v2640 = vld [vmem:[%s2624 + $0x3c] sm:$0xf]
  %v2641 = vld [vmem:[%s2624 + $0x40] sm:$0xf]
  %v2642 = vld [vmem:[%s2624 + $0x44] sm:$0xf]
  %v2643 = vld [vmem:[%s2624 + $0x48] sm:$0xf]
  %v2644 = vld [vmem:[%s2624 + $0x4c] sm:$0xf]
  %v2645 = vld [vmem:[%s2624 + $0x50] sm:$0xf]
  %v2646 = vld [vmem:[%s2624 + $0x54] sm:$0xf]
  %v2647 = vld [vmem:[%s2624 + $0x58] sm:$0xf]
  %v2648 = vld [vmem:[%s2624 + $0x5c] sm:$0xf]
  %v2649 = vld [vmem:[%s2624 + $0x60] sm:$0xf]
  %v2650 = vld [vmem:[%s2624 + $0x64] sm:$0xf]
  %v2651 = vld [vmem:[%s2624 + $0x68] sm:$0xf]
  %v2652 = vld [vmem:[%s2624 + $0x6c] sm:$0xf]
  %v2653 = vld [vmem:[%s2624 + $0x70] sm:$0xf]
  %v2654 = vld [vmem:[%s2624 + $0x74] sm:$0xf]
  %v2655 = vld [vmem:[%s2624 + $0x78] sm:$0xf]
  %v2656 = vld [vmem:[%s2624 + $0x7c] sm:$0xf]
  %v2657 = vld [vmem:[%s2624 + $0x80] sm:$0xf]
  %v2658 = vld [vmem:[%s2624 + $0x84] sm:$0xf]
  %v2659 = vld [vmem:[%s2624 + $0x88] sm:$0xf]
  %v2660 = vld [vmem:[%s2624 + $0x8c] sm:$0xf]
  %v2661 = vld [vmem:[%s2624 + $0x90] sm:$0xf]
  %v2662 = vld [vmem:[%s2624 + $0x94] sm:$0xf]
  %v2663 = vld [vmem:[%s2624 + $0x98] sm:$0xf]
  %v2664 = vld [vmem:[%s2624 + $0x9c] sm:$0xf]
  %v2665 = vld [vmem:[%s2624 + $0xa0] sm:$0xf]
  %v2666 = vld [vmem:[%s2624 + $0xa4] sm:$0xf]
  %v2667 = vld [vmem:[%s2624 + $0xa8] sm:$0xf]
  %v2668 = vld [vmem:[%s2624 + $0xac] sm:$0xf]
  %v2669 = vld [vmem:[%s2624 + $0xb0] sm:$0xf]
  %v2670 = vld [vmem:[%s2624 + $0xb4] sm:$0xf]
  %v2671 = vld [vmem:[%s2624 + $0xb8] sm:$0xf]
  %v2672 = vld [vmem:[%s2624 + $0xbc] sm:$0xf]
  %v2673 = vld [vmem:[%s2624 + $0xc0] sm:$0xf]
  %v2674 = vld [vmem:[%s2624 + $0xc4] sm:$0xf]
  %v2675 = vld [vmem:[%s2624 + $0xc8] sm:$0xf]
  %v2676 = vld [vmem:[%s2624 + $0xcc] sm:$0xf]
  %v2677 = vld [vmem:[%s2624 + $0xd0] sm:$0xf]
  %v2678 = vld [vmem:[%s2624 + $0xd4] sm:$0xf]
  %v2679 = vld [vmem:[%s2624 + $0xd8] sm:$0xf]
  %v2680 = vld [vmem:[%s2624 + $0xdc] sm:$0xf]
  %v2681 = vld [vmem:[%s2624 + $0xe0] sm:$0xf]
  %v2682 = vld [vmem:[%s2624 + $0xe4] sm:$0xf]
  %v2683 = vld [vmem:[%s2624 + $0xe8] sm:$0xf]
  %v2684 = vld [vmem:[%s2624 + $0xec] sm:$0xf]
  %v2685 = vld [vmem:[%s2624 + $0xf0] sm:$0xf]
  %v2686 = vld [vmem:[%s2624 + $0xf4] sm:$0xf]
  %v2687 = vld [vmem:[%s2624 + $0xf8] sm:$0xf]
  %v2688 = vld [vmem:[%s2624 + $0xfc] sm:$0xf]
  %v2689 = vld [vmem:[%s2624 + $0x100] sm:$0xf]
  %v2690 = vld [vmem:[%s2624 + $0x104] sm:$0xf]
  %v2691 = vld [vmem:[%s2624 + $0x108] sm:$0xf]
  %v2692 = vld [vmem:[%s2624 + $0x10c] sm:$0xf]
  %v2693 = vld [vmem:[%s2624 + $0x110] sm:$0xf]
  %v2694 = vld [vmem:[%s2624 + $0x114] sm:$0xf]
  %v2695 = vld [vmem:[%s2624 + $0x118] sm:$0xf]
  %v2696 = vld [vmem:[%s2624 + $0x11c] sm:$0xf]
  %v2697 = vld [vmem:[%s2624 + $0x120] sm:$0xf]
  %v2698 = vld [vmem:[%s2624 + $0x124] sm:$0xf]
  %v2699 = vld [vmem:[%s2624 + $0x128] sm:$0xf]
  %v2700 = vld [vmem:[%s2624 + $0x12c] sm:$0xf]
  %v2701 = vld [vmem:[%s2624 + $0x130] sm:$0xf]
  %v2702 = vld [vmem:[%s2624 + $0x134] sm:$0xf]
  %v2703 = vld [vmem:[%s2624 + $0x138] sm:$0xf]
  %v2704 = vld [vmem:[%s2624 + $0x13c] sm:$0xf]
  %v2705 = vrot.slane %v2541, 2
  %v2706 = vrot.slane %v1555, 2
  %v2707 = vsel %vm1429, %v2705, %v2706
  %v2708 = vrot.slane %v2554, 2
  %v2709 = vrot.slane %v2557, 2
  %v2710 = vsel %vm1429, %v2708, %v2709
  %v2711 = vrot.slane %v2575, 2
  %v2712 = vrot.slane %v2577, 2
  %v2713 = vsel %vm1429, %v2711, %v2712
  %v2714 = vrot.slane %v2596, 2
  %v2715 = vrot.slane %v2600, 2
  %v2716 = vsel %vm1429, %v2714, %v2715
  %v2717 = vrot.slane %v2615, 2
  %v2718 = vrot.slane %v2617, 2
  %v2719 = vsel %vm1429, %v2717, %v2718
  %v2720 = vrot.slane %v1556, 2
  %v2721 = vsel %vm1429, %v2706, %v2720
  %v2722 = vrot.slane %v2560, 2
  %v2723 = vsel %vm1429, %v2709, %v2722
  %v2724 = vrot.slane %v2579, 2
  %v2725 = vsel %vm1429, %v2712, %v2724
  %v2726 = vrot.slane %v2604, 2
  %v2727 = vsel %vm1429, %v2715, %v2726
  %v2728 = vrot.slane %v2619, 2
  %v2729 = vsel %vm1429, %v2718, %v2728
  %v2730 = vrot.slane %v1557, 2
  %v2731 = vsel %vm1429, %v2720, %v2730
  %v2732 = vrot.slane %v2566, 2
  %v2733 = vsel %vm1429, %v2722, %v2732
  %v2734 = vrot.slane %v2581, 2
  %v2735 = vsel %vm1429, %v2724, %v2734
  %v2736 = vrot.slane %v2613, 2
  %v2737 = vsel %vm1429, %v2726, %v2736
  %v2738 = vrot.slane %v2621, 2
  %v2739 = vsel %vm1429, %v2728, %v2738
  %v2740 = vrot.slane %v2542, 2
  %v2741 = vsel %vm1429, %v2730, %v2740
  %v2742 = vrot.slane %v2569, 2
  %v2743 = vsel %vm1429, %v2732, %v2742
  %v2744 = vrot.slane %v2580, 2
  %v2745 = vsel %vm1429, %v2734, %v2744
  %v2746 = vrot.slane %v2612, 2
  %v2747 = vsel %vm1429, %v2736, %v2746
  %v2748 = vrot.slane %v2623, 2
  %v2749 = vsel %vm1429, %v2738, %v2748
  %v2855 = vunpack.c.l.b16 %v2625
  %v2856 = vunpack.c.l.b16 %v2626
  %v2857 = vunpack.c.l.b16 %v2627
  %v2858 = vunpack.c.l.b16 %v2628
  %v2859 = vunpack.c.l.b16 %v2629
  %v2860 = vunpack.c.l.b16 %v2630
  %v2861 = vunpack.c.l.b16 %v2631
  %v2862 = vunpack.c.l.b16 %v2632
  %v2863 = vunpack.c.l.b16 %v2633
  %v2864 = vunpack.c.l.b16 %v2634
  %v2865 = vunpack.c.l.b16 %v2635
  %v2866 = vunpack.c.l.b16 %v2636
  %v2867 = vunpack.c.l.b16 %v2637
  %v2868 = vunpack.c.l.b16 %v2638
  %v2869 = vunpack.c.l.b16 %v2639
  %v2870 = vunpack.c.l.b16 %v2640
  %v2871 = vunpack.c.l.b16 %v2641
  %v2872 = vunpack.c.l.b16 %v2642
  %v2873 = vunpack.c.l.b16 %v2643
  %v2874 = vunpack.c.l.b16 %v2644
  %v2875 = vunpack.c.l.b16 %v2645
  %v2876 = vunpack.c.l.b16 %v2646
  %v2877 = vunpack.c.l.b16 %v2647
  %v2878 = vunpack.c.l.b16 %v2648
  %v2879 = vunpack.c.l.b16 %v2649
  %v2880 = vunpack.c.l.b16 %v2650
  %v2881 = vunpack.c.l.b16 %v2651
  %v2882 = vunpack.c.l.b16 %v2652
  %v2883 = vunpack.c.l.b16 %v2653
  %v2884 = vunpack.c.l.b16 %v2654
  %v2885 = vunpack.c.l.b16 %v2655
  %v2886 = vunpack.c.l.b16 %v2656
  %v2887 = vunpack.c.l.b16 %v2657
  %v2888 = vunpack.c.l.b16 %v2658
  %v2889 = vunpack.c.l.b16 %v2659
  %v2890 = vunpack.c.l.b16 %v2660
  %v2891 = vunpack.c.l.b16 %v2661
  %v2892 = vunpack.c.l.b16 %v2662
  %v2893 = vunpack.c.l.b16 %v2663
  %v2894 = vunpack.c.l.b16 %v2664
  %v2895 = vunpack.c.l.b16 %v2665
  %v2896 = vunpack.c.l.b16 %v2666
  %v2897 = vunpack.c.l.b16 %v2667
  %v2898 = vunpack.c.l.b16 %v2668
  %v2899 = vunpack.c.l.b16 %v2669
  %v2900 = vunpack.c.l.b16 %v2670
  %v2901 = vunpack.c.l.b16 %v2671
  %v2902 = vunpack.c.l.b16 %v2672
  %v2903 = vunpack.c.l.b16 %v2673
  %v2904 = vunpack.c.l.b16 %v2674
  %v2905 = vunpack.c.l.b16 %v2675
  %v2906 = vunpack.c.l.b16 %v2676
  %v2907 = vunpack.c.l.b16 %v2677
  %v2908 = vunpack.c.l.b16 %v2678
  %v2909 = vunpack.c.l.b16 %v2679
  %v2910 = vunpack.c.l.b16 %v2680
  %v2911 = vunpack.c.l.b16 %v2681
  %v2912 = vunpack.c.l.b16 %v2682
  %v2913 = vunpack.c.l.b16 %v2683
  %v2914 = vunpack.c.l.b16 %v2684
  %v2915 = vunpack.c.l.b16 %v2685
  %v2916 = vunpack.c.l.b16 %v2686
  %v2917 = vunpack.c.l.b16 %v2687
  %v2918 = vunpack.c.l.b16 %v2688
  %v2919 = vunpack.c.l.b16 %v2689
  %v2920 = vunpack.c.l.b16 %v2690
  %v2921 = vunpack.c.l.b16 %v2691
  %v2922 = vunpack.c.l.b16 %v2692
  %v2923 = vunpack.c.l.b16 %v2693
  %v2924 = vunpack.c.l.b16 %v2694
  %v2925 = vunpack.c.l.b16 %v2695
  %v2926 = vunpack.c.l.b16 %v2696
  %v2927 = vunpack.c.l.b16 %v2697
  %v2928 = vunpack.c.l.b16 %v2698
  %v2929 = vunpack.c.l.b16 %v2699
  %v2930 = vunpack.c.l.b16 %v2700
  %v2931 = vunpack.c.l.b16 %v2701
  %v2932 = vunpack.c.l.b16 %v2702
  %v2933 = vunpack.c.l.b16 %v2703
  %v2934 = vunpack.c.l.b16 %v2704
  %v2935 = vpack.c.b16 %v2856, %v2855
  %v2936 = vpack.c.b16 %v2858, %v2857
  %v2937 = vpack.c.b16 %v2860, %v2859
  %v2938 = vpack.c.b16 %v2862, %v2861
  %v2939 = vpack.c.b16 %v2864, %v2863
  %v2940 = vpack.c.b16 %v2866, %v2865
  %v2941 = vpack.c.b16 %v2868, %v2867
  %v2942 = vpack.c.b16 %v2870, %v2869
  %v2943 = vpack.c.b16 %v2872, %v2871
  %v2944 = vpack.c.b16 %v2874, %v2873
  %v2945 = vpack.c.b16 %v2876, %v2875
  %v2946 = vpack.c.b16 %v2878, %v2877
  %v2947 = vpack.c.b16 %v2880, %v2879
  %v2948 = vpack.c.b16 %v2882, %v2881
  %v2949 = vpack.c.b16 %v2884, %v2883
  %v2950 = vpack.c.b16 %v2886, %v2885
  %v2951 = vpack.c.b16 %v2888, %v2887
  %v2952 = vpack.c.b16 %v2890, %v2889
  %v2953 = vpack.c.b16 %v2892, %v2891
  %v2954 = vpack.c.b16 %v2894, %v2893
  %v2955 = vpack.c.b16 %v2896, %v2895
  %v2956 = vpack.c.b16 %v2898, %v2897
  %v2957 = vpack.c.b16 %v2900, %v2899
  %v2958 = vpack.c.b16 %v2902, %v2901
  %v2959 = vpack.c.b16 %v2904, %v2903
  %v2960 = vpack.c.b16 %v2906, %v2905
  %v2961 = vpack.c.b16 %v2908, %v2907
  %v2962 = vpack.c.b16 %v2910, %v2909
  %v2963 = vpack.c.b16 %v2912, %v2911
  %v2964 = vpack.c.b16 %v2914, %v2913
  %v2965 = vpack.c.b16 %v2916, %v2915
  %v2966 = vpack.c.b16 %v2918, %v2917
  %v2967 = vpack.c.b16 %v2920, %v2919
  %v2968 = vpack.c.b16 %v2922, %v2921
  %v2969 = vpack.c.b16 %v2924, %v2923
  %v2970 = vpack.c.b16 %v2926, %v2925
  %v2971 = vpack.c.b16 %v2928, %v2927
  %v2972 = vpack.c.b16 %v2930, %v2929
  %v2973 = vpack.c.b16 %v2932, %v2931
  %v2974 = vpack.c.b16 %v2934, %v2933
  %3015 = vmatpush.bf16.msra.mxu0 %v2942
  %3016 = vmatpush.bf16.msra.mxu0 %v2941
  %3017 = vmatpush.bf16.msra.mxu0 %v2940
  %3018 = vmatpush.bf16.msra.mxu0 %v2939
  %3019 = vmatpush.bf16.msra.mxu0 %v2938
  %3020 = vmatpush.bf16.msra.mxu0 %v2937
  %3021 = vmatpush.bf16.msra.mxu0 %v2936
  %3022 = vmatpush.bf16.msra.mxu0 %v2935
  %3023 = vmatmul.bf16.gmra.mxu0 %v2707
  %v3024 = vpop.f32.mrf.mxu0
  %v3025 = vadd.f32 0.0, %v3024
  %v3026 = vpop.f32.mrf.mxu0
  %3027 = vmatmul.bf16.gmra.mxu0 %v2721
  %v3028 = vpop.f32.mrf.mxu0
  %v3029 = vpop.f32.mrf.mxu0
  %3030 = vmatmul.bf16.gmra.mxu0 %v2731
  %v3031 = vpop.f32.mrf.mxu0
  %v3032 = vadd.f32 0.0, %v3031
  %v3033 = vpop.f32.mrf.mxu0
  %v3034 = vadd.f32 0.0, %v3033
  %3035 = vmatmul.bf16.gmra.mxu0 %v2741
  %v3036 = vpop.f32.mrf.mxu0
  %v3037 = vpop.f32.mrf.mxu0
  %3038 = vmatmul.bf16.gmra.mxu0 %v2740
  %v3039 = vpop.f32.mrf.mxu0
  %v3040 = vpop.f32.mrf.mxu0
  %3041 = vdwg.mxu0
  %3042 = vmatpush.bf16.msra.mxu0 %v2950
  %3043 = vmatpush.bf16.msra.mxu0 %v2949
  %3044 = vmatpush.bf16.msra.mxu0 %v2948
  %3045 = vmatpush.bf16.msra.mxu0 %v2947
  %3046 = vmatpush.bf16.msra.mxu0 %v2946
  %3047 = vmatpush.bf16.msra.mxu0 %v2945
  %3048 = vmatpush.bf16.msra.mxu0 %v2944
  %3049 = vmatpush.bf16.msra.mxu0 %v2943
  %3050 = vmatmul.bf16.gmra.mxu0 %v2710
  %v3051 = vpop.f32.mrf.mxu0
  %v3052 = vadd.f32 %v3025, %v3051
  %v3053 = vpop.f32.mrf.mxu0
  %3054 = vmatmul.bf16.gmra.mxu0 %v2723
  %v3055 = vpop.f32.mrf.mxu0
  %v3056 = vpop.f32.mrf.mxu0
  %3057 = vmatmul.bf16.gmra.mxu0 %v2733
  %v3058 = vpop.f32.mrf.mxu0
  %v3059 = vadd.f32 %v3032, %v3058
  %v3060 = vpop.f32.mrf.mxu0
  %v3061 = vadd.f32 %v3034, %v3060
  %3062 = vmatmul.bf16.gmra.mxu0 %v2743
  %v3063 = vpop.f32.mrf.mxu0
  %v3064 = vpop.f32.mrf.mxu0
  %3065 = vmatmul.bf16.gmra.mxu0 %v2742
  %v3066 = vpop.f32.mrf.mxu0
  %v3067 = vpop.f32.mrf.mxu0
  %3068 = vdwg.mxu0
  %3069 = vmatpush.bf16.msra.mxu0 %v2958
  %3070 = vmatpush.bf16.msra.mxu0 %v2957
  %3071 = vmatpush.bf16.msra.mxu0 %v2956
  %3072 = vmatpush.bf16.msra.mxu0 %v2955
  %3073 = vmatpush.bf16.msra.mxu0 %v2954
  %3074 = vmatpush.bf16.msra.mxu0 %v2953
  %3075 = vmatpush.bf16.msra.mxu0 %v2952
  %3076 = vmatpush.bf16.msra.mxu0 %v2951
  %3077 = vmatmul.bf16.gmra.mxu0 %v2713
  %v3078 = vpop.f32.mrf.mxu0
  %v3079 = vadd.f32 %v3052, %v3078
  %v3080 = vpop.f32.mrf.mxu0
  %3081 = vmatmul.bf16.gmra.mxu0 %v2725
  %v3082 = vpop.f32.mrf.mxu0
  %v3083 = vpop.f32.mrf.mxu0
  %3084 = vmatmul.bf16.gmra.mxu0 %v2735
  %v3085 = vpop.f32.mrf.mxu0
  %v3086 = vadd.f32 %v3059, %v3085
  %v3087 = vpop.f32.mrf.mxu0
  %v3088 = vadd.f32 %v3061, %v3087
  %3089 = vmatmul.bf16.gmra.mxu0 %v2745
  %v3090 = vpop.f32.mrf.mxu0
  %v3091 = vpop.f32.mrf.mxu0
  %3092 = vmatmul.bf16.gmra.mxu0 %v2744
  %v3093 = vpop.f32.mrf.mxu0
  %v3094 = vpop.f32.mrf.mxu0
  %3095 = vdwg.mxu0
  %3096 = vmatpush.bf16.msra.mxu0 %v2966
  %3097 = vmatpush.bf16.msra.mxu0 %v2965
  %3098 = vmatpush.bf16.msra.mxu0 %v2964
  %3099 = vmatpush.bf16.msra.mxu0 %v2963
  %3100 = vmatpush.bf16.msra.mxu0 %v2962
  %3101 = vmatpush.bf16.msra.mxu0 %v2961
  %3102 = vmatpush.bf16.msra.mxu0 %v2960
  %3103 = vmatpush.bf16.msra.mxu0 %v2959
  %3104 = vmatmul.bf16.gmra.mxu0 %v2716
  %v3105 = vpop.f32.mrf.mxu0
  %v3106 = vadd.f32 %v3079, %v3105
  %v3107 = vpop.f32.mrf.mxu0
  %3108 = vmatmul.bf16.gmra.mxu0 %v2727
  %v3109 = vpop.f32.mrf.mxu0
  %v3110 = vpop.f32.mrf.mxu0
  %3111 = vmatmul.bf16.gmra.mxu0 %v2737
  %v3112 = vpop.f32.mrf.mxu0
  %v3113 = vadd.f32 %v3086, %v3112
  %v3114 = vpop.f32.mrf.mxu0
  %v3115 = vadd.f32 %v3088, %v3114
  %3116 = vmatmul.bf16.gmra.mxu0 %v2747
  %v3117 = vpop.f32.mrf.mxu0
  %v3118 = vpop.f32.mrf.mxu0
  %3119 = vmatmul.bf16.gmra.mxu0 %v2746
  %v3120 = vpop.f32.mrf.mxu0
  %v3121 = vpop.f32.mrf.mxu0
  %3122 = vdwg.mxu0
  %3123 = vmatpush.bf16.msra.mxu0 %v2974
  %3124 = vmatpush.bf16.msra.mxu0 %v2973
  %3125 = vmatpush.bf16.msra.mxu0 %v2972
  %3126 = vmatpush.bf16.msra.mxu0 %v2971
  %3127 = vmatpush.bf16.msra.mxu0 %v2970
  %3128 = vmatpush.bf16.msra.mxu0 %v2969
  %3129 = vmatpush.bf16.msra.mxu0 %v2968
  %3130 = vmatpush.bf16.msra.mxu0 %v2967
  %3131 = vmatmul.bf16.gmra.mxu0 %v2719
  %v3132 = vpop.f32.mrf.mxu0
  %v3133 = vadd.f32 %v3106, %v3132
  %v3134 = vpop.f32.mrf.mxu0
  %3135 = vmatmul.bf16.gmra.mxu0 %v2729
  %v3136 = vpop.f32.mrf.mxu0
  %v3137 = vpop.f32.mrf.mxu0
  %3138 = vmatmul.bf16.gmra.mxu0 %v2739
  %v3139 = vpop.f32.mrf.mxu0
  %v3140 = vadd.f32 %v3113, %v3139
  %v3141 = vpop.f32.mrf.mxu0
  %v3142 = vadd.f32 %v3115, %v3141
  %3143 = vmatmul.bf16.gmra.mxu0 %v2749
  %v3144 = vpop.f32.mrf.mxu0
  %v3145 = vpop.f32.mrf.mxu0
  %3146 = vmatmul.bf16.gmra.mxu0 %v2748
  %v3147 = vpop.f32.mrf.mxu0
  %v3148 = vpop.f32.mrf.mxu0
  %3149 = vdwg.mxu0
  %v3150 = vadd.f32 %v2515, %v3133
  %v3151 = vadd.f32 %v2522, %v3140
  %v3152 = vadd.f32 %v2524, %v3142
  %v3153 = vld [vmem:[#allocation5 + $0x8] sm:$0xe]
  %v3154 = vld [vmem:[#allocation5 + $0xc] sm:$0xf]
  %v3155 = vld [vmem:[#allocation5 + $0x10] sm:$0xf]
  %v3156 = vld [vmem:[#allocation5 + $0x14] sm:$0xf]
  %v3157 = vld [vmem:[#allocation5 + $0x18] sm:$0xf]
  %v3158 = vld [vmem:[#allocation5 + $0x1c] sm:$0xf]
  %v3159 = vld [vmem:[#allocation5 + $0x20] sm:$0xf]
  %v3160 = vld [vmem:[#allocation5 + $0x24] sm:$0xf]
  %v3161 = vld [vmem:[#allocation5 + $0x28] sm:$0xf]
  %v3162 = vld [vmem:[#allocation5 + $0x2c] sm:$0x1]
  %v3163 = vld [vmem:[#allocation5 + $0x2c] sm:$0x3]
  %v3164 = vld [vmem:[#allocation5 + $0x8] sm:$0xc]
  %v3165 = vld [vmem:[#allocation5 + $0x2c] sm:$0x7]
  %v3166 = vld [vmem:[#allocation5 + $0x8] sm:$0x8]
  %v3177 = vunpack.c.l.b16 %v3153
  %v3178 = vunpack.c.l.b16 %v3154
  %v3179 = vunpack.c.l.b16 %v3155
  %v3180 = vunpack.c.l.b16 %v3156
  %v3181 = vunpack.c.l.b16 %v3157
  %v3182 = vunpack.c.l.b16 %v3158
  %v3183 = vunpack.c.l.b16 %v3159
  %v3184 = vunpack.c.l.b16 %v3160
  %v3185 = vunpack.c.l.b16 %v3161
  %v3186 = vunpack.c.l.b16 %v3162
  %v3187 = vpack.c.b16 %v3178, %v3177
  %v3188 = vpack.c.b16 %v3180, %v3179
  %v3189 = vpack.c.b16 %v3182, %v3181
  %v3190 = vpack.c.b16 %v3184, %v3183
  %v3191 = vpack.c.b16 %v3186, %v3185
  %v3193 = vunpack.c.l.b16 %v3163
  %v3194 = vpack.c.b16 %v3193, %v3185
  %v3196 = vshrl.u32 %v3187, 16
  %v3198 = vshll.u32 %v3187, 16
  %v3200 = vrot.slane %v3198, 1
  %v3201 = vor.u32 %v3196, %v3200
  %v3203 = vshll.u32 %v3188, 16
  %v3205 = vrot.slane %v3203, 1
  %v3206 = vsel %vm1325, %v3201, %v3205
  %v3207 = vshrl.u32 %v3188, 16
  %v3209 = vor.u32 %v3207, %v3205
  %v3211 = vshll.u32 %v3189, 16
  %v3213 = vrot.slane %v3211, 1
  %v3214 = vsel %vm1325, %v3209, %v3213
  %v3215 = vshrl.u32 %v3189, 16
  %v3217 = vor.u32 %v3215, %v3213
  %v3219 = vshll.u32 %v3190, 16
  %v3221 = vrot.slane %v3219, 1
  %v3222 = vsel %vm1325, %v3217, %v3221
  %v3223 = vshrl.u32 %v3190, 16
  %v3225 = vor.u32 %v3223, %v3221
  %v3227 = vshll.u32 %v3194, 16
  %v3229 = vrot.slane %v3227, 1
  %v3230 = vsel %vm1325, %v3225, %v3229
  %v3231 = vshrl.u32 %v3194, 16
  %v3233 = vor.u32 %v3231, %v3229
  %v3235 = vunpack.c.l.b16 %v3164
  %v3236 = vpack.c.b16 %v3178, %v3235
  %v3237 = vrot.slane %v3236, 1
  %v3238 = vrot.slane %v3188, 1
  %v3239 = vsel %vm1373, %v3237, %v3238
  %v3240 = vrot.slane %v3189, 1
  %v3241 = vsel %vm1373, %v3238, %v3240
  %v3242 = vrot.slane %v3190, 1
  %v3243 = vsel %vm1373, %v3240, %v3242
  %v3244 = vrot.slane %v3194, 1
  %v3245 = vsel %vm1373, %v3242, %v3244
  %v3247 = vunpack.c.l.b16 %v3165
  %v3248 = vpack.c.b16 %v3247, %v3185
  %v3250 = vshrl.u32 %v3236, 16
  %v3252 = vrot.slane %v3250, 1
  %v3253 = vshll.u32 %v3236, 16
  %v3255 = vrot.slane %v3253, 2
  %v3256 = vor.u32 %v3252, %v3255
  %v3257 = vrot.slane %v3207, 1
  %v3258 = vrot.slane %v3203, 2
  %v3259 = vor.u32 %v3257, %v3258
  %v3260 = vsel %vm1391, %v3256, %v3259
  %v3261 = vrot.slane %v3215, 1
  %v3262 = vrot.slane %v3211, 2
  %v3263 = vor.u32 %v3261, %v3262
  %v3264 = vsel %vm1391, %v3259, %v3263
  %v3265 = vrot.slane %v3223, 1
  %v3266 = vrot.slane %v3219, 2
  %v3267 = vor.u32 %v3265, %v3266
  %v3268 = vsel %vm1391, %v3263, %v3267
  %v3270 = vshrl.u32 %v3248, 16
  %v3272 = vrot.slane %v3270, 1
  %v3273 = vshll.u32 %v3248, 16
  %v3275 = vrot.slane %v3273, 2
  %v3276 = vor.u32 %v3272, %v3275
  %v3277 = vsel %vm1391, %v3267, %v3276
  %v3279 = vunpack.c.l.b16 %v3166
  %v3280 = vpack.c.b16 %v3178, %v3279
  %v3281 = vrot.slane %v3280, 2
  %v3282 = vrot.slane %v3188, 2
  %v3283 = vsel %vm1429, %v3281, %v3282
  %v3284 = vrot.slane %v3189, 2
  %v3285 = vsel %vm1429, %v3282, %v3284
  %v3286 = vrot.slane %v3190, 2
  %v3287 = vsel %vm1429, %v3284, %v3286
  %v3288 = vrot.slane %v3248, 2
  %v3289 = vsel %vm1429, %v3286, %v3288
  %s3290 = scalar_lea.vmem [#allocation2], 960
  %v3291 = vld [vmem:[%s3290] sm:$0xf]
  %v3292 = vld [vmem:[%s3290 + $0x4] sm:$0xf]
  %v3293 = vld [vmem:[%s3290 + $0x8] sm:$0xf]
  %v3294 = vld [vmem:[%s3290 + $0xc] sm:$0xf]
  %v3295 = vld [vmem:[%s3290 + $0x10] sm:$0xf]
  %v3296 = vld [vmem:[%s3290 + $0x14] sm:$0xf]
  %v3297 = vld [vmem:[%s3290 + $0x18] sm:$0xf]
  %v3298 = vld [vmem:[%s3290 + $0x1c] sm:$0xf]
  %v3299 = vld [vmem:[%s3290 + $0x20] sm:$0xf]
  %v3300 = vld [vmem:[%s3290 + $0x24] sm:$0xf]
  %v3301 = vld [vmem:[%s3290 + $0x28] sm:$0xf]
  %v3302 = vld [vmem:[%s3290 + $0x2c] sm:$0xf]
  %v3303 = vld [vmem:[%s3290 + $0x30] sm:$0xf]
  %v3304 = vld [vmem:[%s3290 + $0x34] sm:$0xf]
  %v3305 = vld [vmem:[%s3290 + $0x38] sm:$0xf]
  %v3306 = vld [vmem:[%s3290 + $0x3c] sm:$0xf]
  %v3307 = vld [vmem:[%s3290 + $0x40] sm:$0xf]
  %v3308 = vld [vmem:[%s3290 + $0x44] sm:$0xf]
  %v3309 = vld [vmem:[%s3290 + $0x48] sm:$0xf]
  %v3310 = vld [vmem:[%s3290 + $0x4c] sm:$0xf]
  %v3311 = vld [vmem:[%s3290 + $0x50] sm:$0xf]
  %v3312 = vld [vmem:[%s3290 + $0x54] sm:$0xf]
  %v3313 = vld [vmem:[%s3290 + $0x58] sm:$0xf]
  %v3314 = vld [vmem:[%s3290 + $0x5c] sm:$0xf]
  %v3315 = vld [vmem:[%s3290 + $0x60] sm:$0xf]
  %v3316 = vld [vmem:[%s3290 + $0x64] sm:$0xf]
  %v3317 = vld [vmem:[%s3290 + $0x68] sm:$0xf]
  %v3318 = vld [vmem:[%s3290 + $0x6c] sm:$0xf]
  %v3319 = vld [vmem:[%s3290 + $0x70] sm:$0xf]
  %v3320 = vld [vmem:[%s3290 + $0x74] sm:$0xf]
  %v3321 = vld [vmem:[%s3290 + $0x78] sm:$0xf]
  %v3322 = vld [vmem:[%s3290 + $0x7c] sm:$0xf]
  %v3323 = vld [vmem:[%s3290 + $0x80] sm:$0xf]
  %v3324 = vld [vmem:[%s3290 + $0x84] sm:$0xf]
  %v3325 = vld [vmem:[%s3290 + $0x88] sm:$0xf]
  %v3326 = vld [vmem:[%s3290 + $0x8c] sm:$0xf]
  %v3327 = vld [vmem:[%s3290 + $0x90] sm:$0xf]
  %v3328 = vld [vmem:[%s3290 + $0x94] sm:$0xf]
  %v3329 = vld [vmem:[%s3290 + $0x98] sm:$0xf]
  %v3330 = vld [vmem:[%s3290 + $0x9c] sm:$0xf]
  %v3331 = vld [vmem:[%s3290 + $0xa0] sm:$0xf]
  %v3332 = vld [vmem:[%s3290 + $0xa4] sm:$0xf]
  %v3333 = vld [vmem:[%s3290 + $0xa8] sm:$0xf]
  %v3334 = vld [vmem:[%s3290 + $0xac] sm:$0xf]
  %v3335 = vld [vmem:[%s3290 + $0xb0] sm:$0xf]
  %v3336 = vld [vmem:[%s3290 + $0xb4] sm:$0xf]
  %v3337 = vld [vmem:[%s3290 + $0xb8] sm:$0xf]
  %v3338 = vld [vmem:[%s3290 + $0xbc] sm:$0xf]
  %v3339 = vld [vmem:[%s3290 + $0xc0] sm:$0xf]
  %v3340 = vld [vmem:[%s3290 + $0xc4] sm:$0xf]
  %v3341 = vld [vmem:[%s3290 + $0xc8] sm:$0xf]
  %v3342 = vld [vmem:[%s3290 + $0xcc] sm:$0xf]
  %v3343 = vld [vmem:[%s3290 + $0xd0] sm:$0xf]
  %v3344 = vld [vmem:[%s3290 + $0xd4] sm:$0xf]
  %v3345 = vld [vmem:[%s3290 + $0xd8] sm:$0xf]
  %v3346 = vld [vmem:[%s3290 + $0xdc] sm:$0xf]
  %v3347 = vld [vmem:[%s3290 + $0xe0] sm:$0xf]
  %v3348 = vld [vmem:[%s3290 + $0xe4] sm:$0xf]
  %v3349 = vld [vmem:[%s3290 + $0xe8] sm:$0xf]
  %v3350 = vld [vmem:[%s3290 + $0xec] sm:$0xf]
  %v3351 = vld [vmem:[%s3290 + $0xf0] sm:$0xf]
  %v3352 = vld [vmem:[%s3290 + $0xf4] sm:$0xf]
  %v3353 = vld [vmem:[%s3290 + $0xf8] sm:$0xf]
  %v3354 = vld [vmem:[%s3290 + $0xfc] sm:$0xf]
  %v3355 = vld [vmem:[%s3290 + $0x100] sm:$0xf]
  %v3356 = vld [vmem:[%s3290 + $0x104] sm:$0xf]
  %v3357 = vld [vmem:[%s3290 + $0x108] sm:$0xf]
  %v3358 = vld [vmem:[%s3290 + $0x10c] sm:$0xf]
  %v3359 = vld [vmem:[%s3290 + $0x110] sm:$0xf]
  %v3360 = vld [vmem:[%s3290 + $0x114] sm:$0xf]
  %v3361 = vld [vmem:[%s3290 + $0x118] sm:$0xf]
  %v3362 = vld [vmem:[%s3290 + $0x11c] sm:$0xf]
  %v3363 = vld [vmem:[%s3290 + $0x120] sm:$0xf]
  %v3364 = vld [vmem:[%s3290 + $0x124] sm:$0xf]
  %v3365 = vld [vmem:[%s3290 + $0x128] sm:$0xf]
  %v3366 = vld [vmem:[%s3290 + $0x12c] sm:$0xf]
  %v3367 = vld [vmem:[%s3290 + $0x130] sm:$0xf]
  %v3368 = vld [vmem:[%s3290 + $0x134] sm:$0xf]
  %v3369 = vld [vmem:[%s3290 + $0x138] sm:$0xf]
  %v3370 = vld [vmem:[%s3290 + $0x13c] sm:$0xf]
  %v3371 = vrot.slane %v3187, 1
  %v3372 = vsel %vm1373, %v3371, %v3238
  %v3373 = vrot.slane %v3206, 1
  %v3374 = vrot.slane %v3214, 1
  %v3375 = vsel %vm1373, %v3373, %v3374
  %v3376 = vrot.slane %v3239, 1
  %v3377 = vrot.slane %v3241, 1
  %v3378 = vsel %vm1373, %v3376, %v3377
  %v3379 = vrot.slane %v3260, 1
  %v3380 = vrot.slane %v3264, 1
  %v3381 = vsel %vm1373, %v3379, %v3380
  %v3382 = vrot.slane %v3283, 1
  %v3383 = vrot.slane %v3285, 1
  %v3384 = vsel %vm1373, %v3382, %v3383
  %v3385 = vrot.slane %v3222, 1
  %v3386 = vsel %vm1373, %v3374, %v3385
  %v3387 = vrot.slane %v3243, 1
  %v3388 = vsel %vm1373, %v3377, %v3387
  %v3389 = vrot.slane %v3268, 1
  %v3390 = vsel %vm1373, %v3380, %v3389
  %v3391 = vrot.slane %v3287, 1
  %v3392 = vsel %vm1373, %v3383, %v3391
  %v3393 = vrot.slane %v3230, 1
  %v3394 = vsel %vm1373, %v3385, %v3393
  %v3395 = vrot.slane %v3245, 1
  %v3396 = vsel %vm1373, %v3387, %v3395
  %v3397 = vrot.slane %v3277, 1
  %v3398 = vsel %vm1373, %v3389, %v3397
  %v3399 = vrot.slane %v3289, 1
  %v3400 = vsel %vm1373, %v3391, %v3399
  %v3401 = vrot.slane %v3191, 1
  %v3402 = vsel %vm1373, %v3242, %v3401
  %v3403 = vrot.slane %v3233, 1
  %v3404 = vsel %vm1373, %v3393, %v3403
  %v3405 = vrot.slane %v3244, 1
  %v3406 = vsel %vm1373, %v3395, %v3405
  %v3407 = vrot.slane %v3276, 1
  %v3408 = vsel %vm1373, %v3397, %v3407
  %v3409 = vrot.slane %v3288, 1
  %v3410 = vsel %vm1373, %v3399, %v3409
  %v3516 = vunpack.c.l.b16 %v3291
  %v3517 = vunpack.c.l.b16 %v3292
  %v3518 = vunpack.c.l.b16 %v3293
  %v3519 = vunpack.c.l.b16 %v3294
  %v3520 = vunpack.c.l.b16 %v3295
  %v3521 = vunpack.c.l.b16 %v3296
  %v3522 = vunpack.c.l.b16 %v3297
  %v3523 = vunpack.c.l.b16 %v3298
  %v3524 = vunpack.c.l.b16 %v3299
  %v3525 = vunpack.c.l.b16 %v3300
  %v3526 = vunpack.c.l.b16 %v3301
  %v3527 = vunpack.c.l.b16 %v3302
  %v3528 = vunpack.c.l.b16 %v3303
  %v3529 = vunpack.c.l.b16 %v3304
  %v3530 = vunpack.c.l.b16 %v3305
  %v3531 = vunpack.c.l.b16 %v3306
  %v3532 = vunpack.c.l.b16 %v3307
  %v3533 = vunpack.c.l.b16 %v3308
  %v3534 = vunpack.c.l.b16 %v3309
  %v3535 = vunpack.c.l.b16 %v3310
  %v3536 = vunpack.c.l.b16 %v3311
  %v3537 = vunpack.c.l.b16 %v3312
  %v3538 = vunpack.c.l.b16 %v3313
  %v3539 = vunpack.c.l.b16 %v3314
  %v3540 = vunpack.c.l.b16 %v3315
  %v3541 = vunpack.c.l.b16 %v3316
  %v3542 = vunpack.c.l.b16 %v3317
  %v3543 = vunpack.c.l.b16 %v3318
  %v3544 = vunpack.c.l.b16 %v3319
  %v3545 = vunpack.c.l.b16 %v3320
  %v3546 = vunpack.c.l.b16 %v3321
  %v3547 = vunpack.c.l.b16 %v3322
  %v3548 = vunpack.c.l.b16 %v3323
  %v3549 = vunpack.c.l.b16 %v3324
  %v3550 = vunpack.c.l.b16 %v3325
  %v3551 = vunpack.c.l.b16 %v3326
  %v3552 = vunpack.c.l.b16 %v3327
  %v3553 = vunpack.c.l.b16 %v3328
  %v3554 = vunpack.c.l.b16 %v3329
  %v3555 = vunpack.c.l.b16 %v3330
  %v3556 = vunpack.c.l.b16 %v3331
  %v3557 = vunpack.c.l.b16 %v3332
  %v3558 = vunpack.c.l.b16 %v3333
  %v3559 = vunpack.c.l.b16 %v3334
  %v3560 = vunpack.c.l.b16 %v3335
  %v3561 = vunpack.c.l.b16 %v3336
  %v3562 = vunpack.c.l.b16 %v3337
  %v3563 = vunpack.c.l.b16 %v3338
  %v3564 = vunpack.c.l.b16 %v3339
  %v3565 = vunpack.c.l.b16 %v3340
  %v3566 = vunpack.c.l.b16 %v3341
  %v3567 = vunpack.c.l.b16 %v3342
  %v3568 = vunpack.c.l.b16 %v3343
  %v3569 = vunpack.c.l.b16 %v3344
  %v3570 = vunpack.c.l.b16 %v3345
  %v3571 = vunpack.c.l.b16 %v3346
  %v3572 = vunpack.c.l.b16 %v3347
  %v3573 = vunpack.c.l.b16 %v3348
  %v3574 = vunpack.c.l.b16 %v3349
  %v3575 = vunpack.c.l.b16 %v3350
  %v3576 = vunpack.c.l.b16 %v3351
  %v3577 = vunpack.c.l.b16 %v3352
  %v3578 = vunpack.c.l.b16 %v3353
  %v3579 = vunpack.c.l.b16 %v3354
  %v3580 = vunpack.c.l.b16 %v3355
  %v3581 = vunpack.c.l.b16 %v3356
  %v3582 = vunpack.c.l.b16 %v3357
  %v3583 = vunpack.c.l.b16 %v3358
  %v3584 = vunpack.c.l.b16 %v3359
  %v3585 = vunpack.c.l.b16 %v3360
  %v3586 = vunpack.c.l.b16 %v3361
  %v3587 = vunpack.c.l.b16 %v3362
  %v3588 = vunpack.c.l.b16 %v3363
  %v3589 = vunpack.c.l.b16 %v3364
  %v3590 = vunpack.c.l.b16 %v3365
  %v3591 = vunpack.c.l.b16 %v3366
  %v3592 = vunpack.c.l.b16 %v3367
  %v3593 = vunpack.c.l.b16 %v3368
  %v3594 = vunpack.c.l.b16 %v3369
  %v3595 = vunpack.c.l.b16 %v3370
  %v3596 = vpack.c.b16 %v3517, %v3516
  %v3597 = vpack.c.b16 %v3519, %v3518
  %v3598 = vpack.c.b16 %v3521, %v3520
  %v3599 = vpack.c.b16 %v3523, %v3522
  %v3600 = vpack.c.b16 %v3525, %v3524
  %v3601 = vpack.c.b16 %v3527, %v3526
  %v3602 = vpack.c.b16 %v3529, %v3528
  %v3603 = vpack.c.b16 %v3531, %v3530
  %v3604 = vpack.c.b16 %v3533, %v3532
  %v3605 = vpack.c.b16 %v3535, %v3534
  %v3606 = vpack.c.b16 %v3537, %v3536
  %v3607 = vpack.c.b16 %v3539, %v3538
  %v3608 = vpack.c.b16 %v3541, %v3540
  %v3609 = vpack.c.b16 %v3543, %v3542
  %v3610 = vpack.c.b16 %v3545, %v3544
  %v3611 = vpack.c.b16 %v3547, %v3546
  %v3612 = vpack.c.b16 %v3549, %v3548
  %v3613 = vpack.c.b16 %v3551, %v3550
  %v3614 = vpack.c.b16 %v3553, %v3552
  %v3615 = vpack.c.b16 %v3555, %v3554
  %v3616 = vpack.c.b16 %v3557, %v3556
  %v3617 = vpack.c.b16 %v3559, %v3558
  %v3618 = vpack.c.b16 %v3561, %v3560
  %v3619 = vpack.c.b16 %v3563, %v3562
  %v3620 = vpack.c.b16 %v3565, %v3564
  %v3621 = vpack.c.b16 %v3567, %v3566
  %v3622 = vpack.c.b16 %v3569, %v3568
  %v3623 = vpack.c.b16 %v3571, %v3570
  %v3624 = vpack.c.b16 %v3573, %v3572
  %v3625 = vpack.c.b16 %v3575, %v3574
  %v3626 = vpack.c.b16 %v3577, %v3576
  %v3627 = vpack.c.b16 %v3579, %v3578
  %v3628 = vpack.c.b16 %v3581, %v3580
  %v3629 = vpack.c.b16 %v3583, %v3582
  %v3630 = vpack.c.b16 %v3585, %v3584
  %v3631 = vpack.c.b16 %v3587, %v3586
  %v3632 = vpack.c.b16 %v3589, %v3588
  %v3633 = vpack.c.b16 %v3591, %v3590
  %v3634 = vpack.c.b16 %v3593, %v3592
  %v3635 = vpack.c.b16 %v3595, %v3594
  %3676 = vmatpush.bf16.msra.mxu0 %v3603
  %3677 = vmatpush.bf16.msra.mxu0 %v3602
  %3678 = vmatpush.bf16.msra.mxu0 %v3601
  %3679 = vmatpush.bf16.msra.mxu0 %v3600
  %3680 = vmatpush.bf16.msra.mxu0 %v3599
  %3681 = vmatpush.bf16.msra.mxu0 %v3598
  %3682 = vmatpush.bf16.msra.mxu0 %v3597
  %3683 = vmatpush.bf16.msra.mxu0 %v3596
  %3684 = vmatmul.bf16.gmra.mxu0 %v3372
  %v3685 = vpop.f32.mrf.mxu0
  %v3686 = vadd.f32 0.0, %v3685
  %v3687 = vpop.f32.mrf.mxu0
  %3688 = vmatmul.bf16.gmra.mxu0 %v3241
  %v3689 = vpop.f32.mrf.mxu0
  %v3690 = vpop.f32.mrf.mxu0
  %3691 = vmatmul.bf16.gmra.mxu0 %v3243
  %v3692 = vpop.f32.mrf.mxu0
  %v3693 = vadd.f32 0.0, %v3692
  %v3694 = vpop.f32.mrf.mxu0
  %v3695 = vadd.f32 0.0, %v3694
  %3696 = vmatmul.bf16.gmra.mxu0 %v3402
  %v3697 = vpop.f32.mrf.mxu0
  %v3698 = vpop.f32.mrf.mxu0
  %3699 = vmatmul.bf16.gmra.mxu0 %v3401
  %v3700 = vpop.f32.mrf.mxu0
  %v3701 = vpop.f32.mrf.mxu0
  %3702 = vdwg.mxu0
  %3703 = vmatpush.bf16.msra.mxu0 %v3611
  %3704 = vmatpush.bf16.msra.mxu0 %v3610
  %3705 = vmatpush.bf16.msra.mxu0 %v3609
  %3706 = vmatpush.bf16.msra.mxu0 %v3608
  %3707 = vmatpush.bf16.msra.mxu0 %v3607
  %3708 = vmatpush.bf16.msra.mxu0 %v3606
  %3709 = vmatpush.bf16.msra.mxu0 %v3605
  %3710 = vmatpush.bf16.msra.mxu0 %v3604
  %3711 = vmatmul.bf16.gmra.mxu0 %v3375
  %v3712 = vpop.f32.mrf.mxu0
  %v3713 = vadd.f32 %v3686, %v3712
  %v3714 = vpop.f32.mrf.mxu0
  %3715 = vmatmul.bf16.gmra.mxu0 %v3386
  %v3716 = vpop.f32.mrf.mxu0
  %v3717 = vpop.f32.mrf.mxu0
  %3718 = vmatmul.bf16.gmra.mxu0 %v3394
  %v3719 = vpop.f32.mrf.mxu0
  %v3720 = vadd.f32 %v3693, %v3719
  %v3721 = vpop.f32.mrf.mxu0
  %v3722 = vadd.f32 %v3695, %v3721
  %3723 = vmatmul.bf16.gmra.mxu0 %v3404
  %v3724 = vpop.f32.mrf.mxu0
  %v3725 = vpop.f32.mrf.mxu0
  %3726 = vmatmul.bf16.gmra.mxu0 %v3403
  %v3727 = vpop.f32.mrf.mxu0
  %v3728 = vpop.f32.mrf.mxu0
  %3729 = vdwg.mxu0
  %3730 = vmatpush.bf16.msra.mxu0 %v3619
  %3731 = vmatpush.bf16.msra.mxu0 %v3618
  %3732 = vmatpush.bf16.msra.mxu0 %v3617
  %3733 = vmatpush.bf16.msra.mxu0 %v3616
  %3734 = vmatpush.bf16.msra.mxu0 %v3615
  %3735 = vmatpush.bf16.msra.mxu0 %v3614
  %3736 = vmatpush.bf16.msra.mxu0 %v3613
  %3737 = vmatpush.bf16.msra.mxu0 %v3612
  %3738 = vmatmul.bf16.gmra.mxu0 %v3378
  %v3739 = vpop.f32.mrf.mxu0
  %v3740 = vadd.f32 %v3713, %v3739
  %v3741 = vpop.f32.mrf.mxu0
  %3742 = vmatmul.bf16.gmra.mxu0 %v3388
  %v3743 = vpop.f32.mrf.mxu0
  %v3744 = vpop.f32.mrf.mxu0
  %3745 = vmatmul.bf16.gmra.mxu0 %v3396
  %v3746 = vpop.f32.mrf.mxu0
  %v3747 = vadd.f32 %v3720, %v3746
  %v3748 = vpop.f32.mrf.mxu0
  %v3749 = vadd.f32 %v3722, %v3748
  %3750 = vmatmul.bf16.gmra.mxu0 %v3406
  %v3751 = vpop.f32.mrf.mxu0
  %v3752 = vpop.f32.mrf.mxu0
  %3753 = vmatmul.bf16.gmra.mxu0 %v3405
  %v3754 = vpop.f32.mrf.mxu0
  %v3755 = vpop.f32.mrf.mxu0
  %3756 = vdwg.mxu0
  %3757 = vmatpush.bf16.msra.mxu0 %v3627
  %3758 = vmatpush.bf16.msra.mxu0 %v3626
  %3759 = vmatpush.bf16.msra.mxu0 %v3625
  %3760 = vmatpush.bf16.msra.mxu0 %v3624
  %3761 = vmatpush.bf16.msra.mxu0 %v3623
  %3762 = vmatpush.bf16.msra.mxu0 %v3622
  %3763 = vmatpush.bf16.msra.mxu0 %v3621
  %3764 = vmatpush.bf16.msra.mxu0 %v3620
  %3765 = vmatmul.bf16.gmra.mxu0 %v3381
  %v3766 = vpop.f32.mrf.mxu0
  %v3767 = vadd.f32 %v3740, %v3766
  %v3768 = vpop.f32.mrf.mxu0
  %3769 = vmatmul.bf16.gmra.mxu0 %v3390
  %v3770 = vpop.f32.mrf.mxu0
  %v3771 = vpop.f32.mrf.mxu0
  %3772 = vmatmul.bf16.gmra.mxu0 %v3398
  %v3773 = vpop.f32.mrf.mxu0
  %v3774 = vadd.f32 %v3747, %v3773
  %v3775 = vpop.f32.mrf.mxu0
  %v3776 = vadd.f32 %v3749, %v3775
  %3777 = vmatmul.bf16.gmra.mxu0 %v3408
  %v3778 = vpop.f32.mrf.mxu0
  %v3779 = vpop.f32.mrf.mxu0
  %3780 = vmatmul.bf16.gmra.mxu0 %v3407
  %v3781 = vpop.f32.mrf.mxu0
  %v3782 = vpop.f32.mrf.mxu0
  %3783 = vdwg.mxu0
  %3784 = vmatpush.bf16.msra.mxu0 %v3635
  %3785 = vmatpush.bf16.msra.mxu0 %v3634
  %3786 = vmatpush.bf16.msra.mxu0 %v3633
  %3787 = vmatpush.bf16.msra.mxu0 %v3632
  %3788 = vmatpush.bf16.msra.mxu0 %v3631
  %3789 = vmatpush.bf16.msra.mxu0 %v3630
  %3790 = vmatpush.bf16.msra.mxu0 %v3629
  %3791 = vmatpush.bf16.msra.mxu0 %v3628
  %3792 = vmatmul.bf16.gmra.mxu0 %v3384
  %v3793 = vpop.f32.mrf.mxu0
  %v3794 = vadd.f32 %v3767, %v3793
  %v3795 = vpop.f32.mrf.mxu0
  %3796 = vmatmul.bf16.gmra.mxu0 %v3392
  %v3797 = vpop.f32.mrf.mxu0
  %v3798 = vpop.f32.mrf.mxu0
  %3799 = vmatmul.bf16.gmra.mxu0 %v3400
  %v3800 = vpop.f32.mrf.mxu0
  %v3801 = vadd.f32 %v3774, %v3800
  %v3802 = vpop.f32.mrf.mxu0
  %v3803 = vadd.f32 %v3776, %v3802
  %3804 = vmatmul.bf16.gmra.mxu0 %v3410
  %v3805 = vpop.f32.mrf.mxu0
  %v3806 = vpop.f32.mrf.mxu0
  %3807 = vmatmul.bf16.gmra.mxu0 %v3409
  %v3808 = vpop.f32.mrf.mxu0
  %v3809 = vpop.f32.mrf.mxu0
  %3810 = vdwg.mxu0
  %v3811 = vadd.f32 %v3150, %v3794
  %v3812 = vadd.f32 %v3151, %v3801
  %v3813 = vadd.f32 %v3152, %v3803
  %v3814 = vld [vmem:[#allocation5 + $0x2c] sm:$0xf]
  %v3815 = vld [vmem:[#allocation5 + $0xc] sm:$0xf]
  %v3816 = vld [vmem:[#allocation5 + $0x10] sm:$0xf]
  %v3817 = vld [vmem:[#allocation5 + $0x14] sm:$0xf]
  %v3818 = vld [vmem:[#allocation5 + $0x18] sm:$0xf]
  %v3819 = vld [vmem:[#allocation5 + $0x1c] sm:$0xf]
  %v3820 = vld [vmem:[#allocation5 + $0x20] sm:$0xf]
  %v3821 = vld [vmem:[#allocation5 + $0x24] sm:$0xf]
  %v3822 = vld [vmem:[#allocation5 + $0x28] sm:$0xf]
  %v3823 = vld [vmem:[#allocation5 + $0x30] sm:$0x1]
  %v3824 = vld [vmem:[#allocation5 + $0xc] sm:$0xe]
  %v3825 = vld [vmem:[#allocation5 + $0x30] sm:$0x3]
  %v3826 = vld [vmem:[#allocation5 + $0xc] sm:$0xc]
  %v3828 = vunpack.c.l.b16 %v3814
  %v3829 = vpack.c.b16 %v3179, %v3178
  %v3830 = vpack.c.b16 %v3181, %v3180
  %v3831 = vpack.c.b16 %v3183, %v3182
  %v3832 = vpack.c.b16 %v3185, %v3184
  %v3833 = vpack.c.b16 %v3828, %v3828
  %v3848 = vunpack.c.l.b16 %v3815
  %v3849 = vunpack.c.l.b16 %v3816
  %v3850 = vunpack.c.l.b16 %v3817
  %v3851 = vunpack.c.l.b16 %v3818
  %v3852 = vunpack.c.l.b16 %v3819
  %v3853 = vunpack.c.l.b16 %v3820
  %v3854 = vunpack.c.l.b16 %v3821
  %v3855 = vunpack.c.l.b16 %v3822
  %v3856 = vunpack.c.l.b16 %v3823
  %v3857 = vpack.c.b16 %v3849, %v3848
  %v3858 = vpack.c.b16 %v3851, %v3850
  %v3859 = vpack.c.b16 %v3853, %v3852
  %v3860 = vpack.c.b16 %v3855, %v3854
  %v3861 = vpack.c.b16 %v3856, %v3828
  %v3863 = vshrl.u32 %v3857, 16
  %v3865 = vshll.u32 %v3857, 16
  %v3867 = vrot.slane %v3865, 1
  %v3868 = vor.u32 %v3863, %v3867
  %v3870 = vshll.u32 %v3858, 16
  %v3872 = vrot.slane %v3870, 1
  %v3873 = vsel %vm1325, %v3868, %v3872
  %v3874 = vshrl.u32 %v3858, 16
  %v3876 = vor.u32 %v3874, %v3872
  %v3878 = vshll.u32 %v3859, 16
  %v3880 = vrot.slane %v3878, 1
  %v3881 = vsel %vm1325, %v3876, %v3880
  %v3882 = vshrl.u32 %v3859, 16
  %v3884 = vor.u32 %v3882, %v3880
  %v3886 = vshll.u32 %v3860, 16
  %v3888 = vrot.slane %v3886, 1
  %v3889 = vsel %vm1325, %v3884, %v3888
  %v3890 = vshrl.u32 %v3860, 16
  %v3892 = vor.u32 %v3890, %v3888
  %v3894 = vshll.u32 %v3861, 16
  %v3896 = vrot.slane %v3894, 1
  %v3897 = vsel %vm1325, %v3892, %v3896
  %v3898 = vshrl.u32 %v3861, 16
  %v3900 = vor.u32 %v3898, %v3896
  %v3907 = vunpack.c.l.b16 %v3824
  %v3908 = vpack.c.b16 %v3849, %v3907
  %v3909 = vrot.slane %v3908, 1
  %v3910 = vrot.slane %v3858, 1
  %v3911 = vsel %vm1373, %v3909, %v3910
  %v3912 = vrot.slane %v3859, 1
  %v3913 = vsel %vm1373, %v3910, %v3912
  %v3914 = vrot.slane %v3860, 1
  %v3915 = vsel %vm1373, %v3912, %v3914
  %v3916 = vrot.slane %v3861, 1
  %v3917 = vsel %vm1373, %v3914, %v3916
  %v3924 = vunpack.c.l.b16 %v3825
  %v3925 = vpack.c.b16 %v3924, %v3828
  %v3927 = vshrl.u32 %v3908, 16
  %v3929 = vrot.slane %v3927, 1
  %v3930 = vshll.u32 %v3908, 16
  %v3932 = vrot.slane %v3930, 2
  %v3933 = vor.u32 %v3929, %v3932
  %v3934 = vrot.slane %v3874, 1
  %v3935 = vrot.slane %v3870, 2
  %v3936 = vor.u32 %v3934, %v3935
  %v3937 = vsel %vm1391, %v3933, %v3936
  %v3938 = vrot.slane %v3882, 1
  %v3939 = vrot.slane %v3878, 2
  %v3940 = vor.u32 %v3938, %v3939
  %v3941 = vsel %vm1391, %v3936, %v3940
  %v3942 = vrot.slane %v3890, 1
  %v3943 = vrot.slane %v3886, 2
  %v3944 = vor.u32 %v3942, %v3943
  %v3945 = vsel %vm1391, %v3940, %v3944
  %v3947 = vshrl.u32 %v3925, 16
  %v3949 = vrot.slane %v3947, 1
  %v3950 = vshll.u32 %v3925, 16
  %v3952 = vrot.slane %v3950, 2
  %v3953 = vor.u32 %v3949, %v3952
  %v3954 = vsel %vm1391, %v3944, %v3953
  %v3961 = vunpack.c.l.b16 %v3826
  %v3962 = vpack.c.b16 %v3849, %v3961
  %v3963 = vrot.slane %v3962, 2
  %v3964 = vrot.slane %v3858, 2
  %v3965 = vsel %vm1429, %v3963, %v3964
  %v3966 = vrot.slane %v3859, 2
  %v3967 = vsel %vm1429, %v3964, %v3966
  %v3968 = vrot.slane %v3860, 2
  %v3969 = vsel %vm1429, %v3966, %v3968
  %v3970 = vrot.slane %v3925, 2
  %v3971 = vsel %vm1429, %v3968, %v3970
  %s3977 = scalar_lea.vmem [#allocation2], 1280
  %v3978 = vld [vmem:[%s3977] sm:$0xf]
  %v3979 = vld [vmem:[%s3977 + $0x4] sm:$0xf]
  %v3980 = vld [vmem:[%s3977 + $0x8] sm:$0xf]
  %v3981 = vld [vmem:[%s3977 + $0xc] sm:$0xf]
  %v3982 = vld [vmem:[%s3977 + $0x10] sm:$0xf]
  %v3983 = vld [vmem:[%s3977 + $0x14] sm:$0xf]
  %v3984 = vld [vmem:[%s3977 + $0x18] sm:$0xf]
  %v3985 = vld [vmem:[%s3977 + $0x1c] sm:$0xf]
  %v3986 = vld [vmem:[%s3977 + $0x20] sm:$0xf]
  %v3987 = vld [vmem:[%s3977 + $0x24] sm:$0xf]
  %v3988 = vld [vmem:[%s3977 + $0x28] sm:$0xf]
  %v3989 = vld [vmem:[%s3977 + $0x2c] sm:$0xf]
  %v3990 = vld [vmem:[%s3977 + $0x30] sm:$0xf]
  %v3991 = vld [vmem:[%s3977 + $0x34] sm:$0xf]
  %v3992 = vld [vmem:[%s3977 + $0x38] sm:$0xf]
  %v3993 = vld [vmem:[%s3977 + $0x3c] sm:$0xf]
  %v3994 = vld [vmem:[%s3977 + $0x40] sm:$0xf]
  %v3995 = vld [vmem:[%s3977 + $0x44] sm:$0xf]
  %v3996 = vld [vmem:[%s3977 + $0x48] sm:$0xf]
  %v3997 = vld [vmem:[%s3977 + $0x4c] sm:$0xf]
  %v3998 = vld [vmem:[%s3977 + $0x50] sm:$0xf]
  %v3999 = vld [vmem:[%s3977 + $0x54] sm:$0xf]
  %v4000 = vld [vmem:[%s3977 + $0x58] sm:$0xf]
  %v4001 = vld [vmem:[%s3977 + $0x5c] sm:$0xf]
  %v4002 = vld [vmem:[%s3977 + $0x60] sm:$0xf]
  %v4003 = vld [vmem:[%s3977 + $0x64] sm:$0xf]
  %v4004 = vld [vmem:[%s3977 + $0x68] sm:$0xf]
  %v4005 = vld [vmem:[%s3977 + $0x6c] sm:$0xf]
  %v4006 = vld [vmem:[%s3977 + $0x70] sm:$0xf]
  %v4007 = vld [vmem:[%s3977 + $0x74] sm:$0xf]
  %v4008 = vld [vmem:[%s3977 + $0x78] sm:$0xf]
  %v4009 = vld [vmem:[%s3977 + $0x7c] sm:$0xf]
  %v4010 = vld [vmem:[%s3977 + $0x80] sm:$0xf]
  %v4011 = vld [vmem:[%s3977 + $0x84] sm:$0xf]
  %v4012 = vld [vmem:[%s3977 + $0x88] sm:$0xf]
  %v4013 = vld [vmem:[%s3977 + $0x8c] sm:$0xf]
  %v4014 = vld [vmem:[%s3977 + $0x90] sm:$0xf]
  %v4015 = vld [vmem:[%s3977 + $0x94] sm:$0xf]
  %v4016 = vld [vmem:[%s3977 + $0x98] sm:$0xf]
  %v4017 = vld [vmem:[%s3977 + $0x9c] sm:$0xf]
  %v4018 = vld [vmem:[%s3977 + $0xa0] sm:$0xf]
  %v4019 = vld [vmem:[%s3977 + $0xa4] sm:$0xf]
  %v4020 = vld [vmem:[%s3977 + $0xa8] sm:$0xf]
  %v4021 = vld [vmem:[%s3977 + $0xac] sm:$0xf]
  %v4022 = vld [vmem:[%s3977 + $0xb0] sm:$0xf]
  %v4023 = vld [vmem:[%s3977 + $0xb4] sm:$0xf]
  %v4024 = vld [vmem:[%s3977 + $0xb8] sm:$0xf]
  %v4025 = vld [vmem:[%s3977 + $0xbc] sm:$0xf]
  %v4026 = vld [vmem:[%s3977 + $0xc0] sm:$0xf]
  %v4027 = vld [vmem:[%s3977 + $0xc4] sm:$0xf]
  %v4028 = vld [vmem:[%s3977 + $0xc8] sm:$0xf]
  %v4029 = vld [vmem:[%s3977 + $0xcc] sm:$0xf]
  %v4030 = vld [vmem:[%s3977 + $0xd0] sm:$0xf]
  %v4031 = vld [vmem:[%s3977 + $0xd4] sm:$0xf]
  %v4032 = vld [vmem:[%s3977 + $0xd8] sm:$0xf]
  %v4033 = vld [vmem:[%s3977 + $0xdc] sm:$0xf]
  %v4034 = vld [vmem:[%s3977 + $0xe0] sm:$0xf]
  %v4035 = vld [vmem:[%s3977 + $0xe4] sm:$0xf]
  %v4036 = vld [vmem:[%s3977 + $0xe8] sm:$0xf]
  %v4037 = vld [vmem:[%s3977 + $0xec] sm:$0xf]
  %v4038 = vld [vmem:[%s3977 + $0xf0] sm:$0xf]
  %v4039 = vld [vmem:[%s3977 + $0xf4] sm:$0xf]
  %v4040 = vld [vmem:[%s3977 + $0xf8] sm:$0xf]
  %v4041 = vld [vmem:[%s3977 + $0xfc] sm:$0xf]
  %v4042 = vld [vmem:[%s3977 + $0x100] sm:$0xf]
  %v4043 = vld [vmem:[%s3977 + $0x104] sm:$0xf]
  %v4044 = vld [vmem:[%s3977 + $0x108] sm:$0xf]
  %v4045 = vld [vmem:[%s3977 + $0x10c] sm:$0xf]
  %v4046 = vld [vmem:[%s3977 + $0x110] sm:$0xf]
  %v4047 = vld [vmem:[%s3977 + $0x114] sm:$0xf]
  %v4048 = vld [vmem:[%s3977 + $0x118] sm:$0xf]
  %v4049 = vld [vmem:[%s3977 + $0x11c] sm:$0xf]
  %v4050 = vld [vmem:[%s3977 + $0x120] sm:$0xf]
  %v4051 = vld [vmem:[%s3977 + $0x124] sm:$0xf]
  %v4052 = vld [vmem:[%s3977 + $0x128] sm:$0xf]
  %v4053 = vld [vmem:[%s3977 + $0x12c] sm:$0xf]
  %v4054 = vld [vmem:[%s3977 + $0x130] sm:$0xf]
  %v4055 = vld [vmem:[%s3977 + $0x134] sm:$0xf]
  %v4056 = vld [vmem:[%s3977 + $0x138] sm:$0xf]
  %v4057 = vld [vmem:[%s3977 + $0x13c] sm:$0xf]
  %v4138 = vunpack.c.l.b16 %v3978
  %v4139 = vunpack.c.l.b16 %v3979
  %v4140 = vunpack.c.l.b16 %v3980
  %v4141 = vunpack.c.l.b16 %v3981
  %v4142 = vunpack.c.l.b16 %v3982
  %v4143 = vunpack.c.l.b16 %v3983
  %v4144 = vunpack.c.l.b16 %v3984
  %v4145 = vunpack.c.l.b16 %v3985
  %v4146 = vunpack.c.l.b16 %v3986
  %v4147 = vunpack.c.l.b16 %v3987
  %v4148 = vunpack.c.l.b16 %v3988
  %v4149 = vunpack.c.l.b16 %v3989
  %v4150 = vunpack.c.l.b16 %v3990
  %v4151 = vunpack.c.l.b16 %v3991
  %v4152 = vunpack.c.l.b16 %v3992
  %v4153 = vunpack.c.l.b16 %v3993
  %v4154 = vunpack.c.l.b16 %v3994
  %v4155 = vunpack.c.l.b16 %v3995
  %v4156 = vunpack.c.l.b16 %v3996
  %v4157 = vunpack.c.l.b16 %v3997
  %v4158 = vunpack.c.l.b16 %v3998
  %v4159 = vunpack.c.l.b16 %v3999
  %v4160 = vunpack.c.l.b16 %v4000
  %v4161 = vunpack.c.l.b16 %v4001
  %v4162 = vunpack.c.l.b16 %v4002
  %v4163 = vunpack.c.l.b16 %v4003
  %v4164 = vunpack.c.l.b16 %v4004
  %v4165 = vunpack.c.l.b16 %v4005
  %v4166 = vunpack.c.l.b16 %v4006
  %v4167 = vunpack.c.l.b16 %v4007
  %v4168 = vunpack.c.l.b16 %v4008
  %v4169 = vunpack.c.l.b16 %v4009
  %v4170 = vunpack.c.l.b16 %v4010
  %v4171 = vunpack.c.l.b16 %v4011
  %v4172 = vunpack.c.l.b16 %v4012
  %v4173 = vunpack.c.l.b16 %v4013
  %v4174 = vunpack.c.l.b16 %v4014
  %v4175 = vunpack.c.l.b16 %v4015
  %v4176 = vunpack.c.l.b16 %v4016
  %v4177 = vunpack.c.l.b16 %v4017
  %v4178 = vunpack.c.l.b16 %v4018
  %v4179 = vunpack.c.l.b16 %v4019
  %v4180 = vunpack.c.l.b16 %v4020
  %v4181 = vunpack.c.l.b16 %v4021
  %v4182 = vunpack.c.l.b16 %v4022
  %v4183 = vunpack.c.l.b16 %v4023
  %v4184 = vunpack.c.l.b16 %v4024
  %v4185 = vunpack.c.l.b16 %v4025
  %v4186 = vunpack.c.l.b16 %v4026
  %v4187 = vunpack.c.l.b16 %v4027
  %v4188 = vunpack.c.l.b16 %v4028
  %v4189 = vunpack.c.l.b16 %v4029
  %v4190 = vunpack.c.l.b16 %v4030
  %v4191 = vunpack.c.l.b16 %v4031
  %v4192 = vunpack.c.l.b16 %v4032
  %v4193 = vunpack.c.l.b16 %v4033
  %v4194 = vunpack.c.l.b16 %v4034
  %v4195 = vunpack.c.l.b16 %v4035
  %v4196 = vunpack.c.l.b16 %v4036
  %v4197 = vunpack.c.l.b16 %v4037
  %v4198 = vunpack.c.l.b16 %v4038
  %v4199 = vunpack.c.l.b16 %v4039
  %v4200 = vunpack.c.l.b16 %v4040
  %v4201 = vunpack.c.l.b16 %v4041
  %v4202 = vunpack.c.l.b16 %v4042
  %v4203 = vunpack.c.l.b16 %v4043
  %v4204 = vunpack.c.l.b16 %v4044
  %v4205 = vunpack.c.l.b16 %v4045
  %v4206 = vunpack.c.l.b16 %v4046
  %v4207 = vunpack.c.l.b16 %v4047
  %v4208 = vunpack.c.l.b16 %v4048
  %v4209 = vunpack.c.l.b16 %v4049
  %v4210 = vunpack.c.l.b16 %v4050
  %v4211 = vunpack.c.l.b16 %v4051
  %v4212 = vunpack.c.l.b16 %v4052
  %v4213 = vunpack.c.l.b16 %v4053
  %v4214 = vunpack.c.l.b16 %v4054
  %v4215 = vunpack.c.l.b16 %v4055
  %v4216 = vunpack.c.l.b16 %v4056
  %v4217 = vunpack.c.l.b16 %v4057
  %v4218 = vpack.c.b16 %v4139, %v4138
  %v4219 = vpack.c.b16 %v4141, %v4140
  %v4220 = vpack.c.b16 %v4143, %v4142
  %v4221 = vpack.c.b16 %v4145, %v4144
  %v4222 = vpack.c.b16 %v4147, %v4146
  %v4223 = vpack.c.b16 %v4149, %v4148
  %v4224 = vpack.c.b16 %v4151, %v4150
  %v4225 = vpack.c.b16 %v4153, %v4152
  %v4226 = vpack.c.b16 %v4155, %v4154
  %v4227 = vpack.c.b16 %v4157, %v4156
  %v4228 = vpack.c.b16 %v4159, %v4158
  %v4229 = vpack.c.b16 %v4161, %v4160
  %v4230 = vpack.c.b16 %v4163, %v4162
  %v4231 = vpack.c.b16 %v4165, %v4164
  %v4232 = vpack.c.b16 %v4167, %v4166
  %v4233 = vpack.c.b16 %v4169, %v4168
  %v4234 = vpack.c.b16 %v4171, %v4170
  %v4235 = vpack.c.b16 %v4173, %v4172
  %v4236 = vpack.c.b16 %v4175, %v4174
  %v4237 = vpack.c.b16 %v4177, %v4176
  %v4238 = vpack.c.b16 %v4179, %v4178
  %v4239 = vpack.c.b16 %v4181, %v4180
  %v4240 = vpack.c.b16 %v4183, %v4182
  %v4241 = vpack.c.b16 %v4185, %v4184
  %v4242 = vpack.c.b16 %v4187, %v4186
  %v4243 = vpack.c.b16 %v4189, %v4188
  %v4244 = vpack.c.b16 %v4191, %v4190
  %v4245 = vpack.c.b16 %v4193, %v4192
  %v4246 = vpack.c.b16 %v4195, %v4194
  %v4247 = vpack.c.b16 %v4197, %v4196
  %v4248 = vpack.c.b16 %v4199, %v4198
  %v4249 = vpack.c.b16 %v4201, %v4200
  %v4250 = vpack.c.b16 %v4203, %v4202
  %v4251 = vpack.c.b16 %v4205, %v4204
  %v4252 = vpack.c.b16 %v4207, %v4206
  %v4253 = vpack.c.b16 %v4209, %v4208
  %v4254 = vpack.c.b16 %v4211, %v4210
  %v4255 = vpack.c.b16 %v4213, %v4212
  %v4256 = vpack.c.b16 %v4215, %v4214
  %v4257 = vpack.c.b16 %v4217, %v4216
  %4298 = vmatpush.bf16.msra.mxu0 %v4225
  %4299 = vmatpush.bf16.msra.mxu0 %v4224
  %4300 = vmatpush.bf16.msra.mxu0 %v4223
  %4301 = vmatpush.bf16.msra.mxu0 %v4222
  %4302 = vmatpush.bf16.msra.mxu0 %v4221
  %4303 = vmatpush.bf16.msra.mxu0 %v4220
  %4304 = vmatpush.bf16.msra.mxu0 %v4219
  %4305 = vmatpush.bf16.msra.mxu0 %v4218
  %4306 = vmatmul.bf16.gmra.mxu0 %v3829
  %v4307 = vpop.f32.mrf.mxu0
  %v4308 = vadd.f32 0.0, %v4307
  %v4309 = vpop.f32.mrf.mxu0
  %4310 = vmatmul.bf16.gmra.mxu0 %v3830
  %v4311 = vpop.f32.mrf.mxu0
  %v4312 = vpop.f32.mrf.mxu0
  %4313 = vmatmul.bf16.gmra.mxu0 %v3831
  %v4314 = vpop.f32.mrf.mxu0
  %v4315 = vadd.f32 0.0, %v4314
  %v4316 = vpop.f32.mrf.mxu0
  %v4317 = vadd.f32 0.0, %v4316
  %4318 = vmatmul.bf16.gmra.mxu0 %v3832
  %v4319 = vpop.f32.mrf.mxu0
  %v4320 = vpop.f32.mrf.mxu0
  %4321 = vmatmul.bf16.gmra.mxu0 %v3833
  %v4322 = vpop.f32.mrf.mxu0
  %v4323 = vpop.f32.mrf.mxu0
  %4324 = vdwg.mxu0
  %4325 = vmatpush.bf16.msra.mxu0 %v4233
  %4326 = vmatpush.bf16.msra.mxu0 %v4232
  %4327 = vmatpush.bf16.msra.mxu0 %v4231
  %4328 = vmatpush.bf16.msra.mxu0 %v4230
  %4329 = vmatpush.bf16.msra.mxu0 %v4229
  %4330 = vmatpush.bf16.msra.mxu0 %v4228
  %4331 = vmatpush.bf16.msra.mxu0 %v4227
  %4332 = vmatpush.bf16.msra.mxu0 %v4226
  %4333 = vmatmul.bf16.gmra.mxu0 %v3873
  %v4334 = vpop.f32.mrf.mxu0
  %v4335 = vadd.f32 %v4308, %v4334
  %v4336 = vpop.f32.mrf.mxu0
  %4337 = vmatmul.bf16.gmra.mxu0 %v3881
  %v4338 = vpop.f32.mrf.mxu0
  %v4339 = vpop.f32.mrf.mxu0
  %4340 = vmatmul.bf16.gmra.mxu0 %v3889
  %v4341 = vpop.f32.mrf.mxu0
  %v4342 = vadd.f32 %v4315, %v4341
  %v4343 = vpop.f32.mrf.mxu0
  %v4344 = vadd.f32 %v4317, %v4343
  %4345 = vmatmul.bf16.gmra.mxu0 %v3897
  %v4346 = vpop.f32.mrf.mxu0
  %v4347 = vpop.f32.mrf.mxu0
  %4348 = vmatmul.bf16.gmra.mxu0 %v3900
  %v4349 = vpop.f32.mrf.mxu0
  %v4350 = vpop.f32.mrf.mxu0
  %4351 = vdwg.mxu0
  %4352 = vmatpush.bf16.msra.mxu0 %v4241
  %4353 = vmatpush.bf16.msra.mxu0 %v4240
  %4354 = vmatpush.bf16.msra.mxu0 %v4239
  %4355 = vmatpush.bf16.msra.mxu0 %v4238
  %4356 = vmatpush.bf16.msra.mxu0 %v4237
  %4357 = vmatpush.bf16.msra.mxu0 %v4236
  %4358 = vmatpush.bf16.msra.mxu0 %v4235
  %4359 = vmatpush.bf16.msra.mxu0 %v4234
  %4360 = vmatmul.bf16.gmra.mxu0 %v3911
  %v4361 = vpop.f32.mrf.mxu0
  %v4362 = vadd.f32 %v4335, %v4361
  %v4363 = vpop.f32.mrf.mxu0
  %4364 = vmatmul.bf16.gmra.mxu0 %v3913
  %v4365 = vpop.f32.mrf.mxu0
  %v4366 = vpop.f32.mrf.mxu0
  %4367 = vmatmul.bf16.gmra.mxu0 %v3915
  %v4368 = vpop.f32.mrf.mxu0
  %v4369 = vadd.f32 %v4342, %v4368
  %v4370 = vpop.f32.mrf.mxu0
  %v4371 = vadd.f32 %v4344, %v4370
  %4372 = vmatmul.bf16.gmra.mxu0 %v3917
  %v4373 = vpop.f32.mrf.mxu0
  %v4374 = vpop.f32.mrf.mxu0
  %4375 = vmatmul.bf16.gmra.mxu0 %v3916
  %v4376 = vpop.f32.mrf.mxu0
  %v4377 = vpop.f32.mrf.mxu0
  %4378 = vdwg.mxu0
  %4379 = vmatpush.bf16.msra.mxu0 %v4249
  %4380 = vmatpush.bf16.msra.mxu0 %v4248
  %4381 = vmatpush.bf16.msra.mxu0 %v4247
  %4382 = vmatpush.bf16.msra.mxu0 %v4246
  %4383 = vmatpush.bf16.msra.mxu0 %v4245
  %4384 = vmatpush.bf16.msra.mxu0 %v4244
  %4385 = vmatpush.bf16.msra.mxu0 %v4243
  %4386 = vmatpush.bf16.msra.mxu0 %v4242
  %4387 = vmatmul.bf16.gmra.mxu0 %v3937
  %v4388 = vpop.f32.mrf.mxu0
  %v4389 = vadd.f32 %v4362, %v4388
  %v4390 = vpop.f32.mrf.mxu0
  %4391 = vmatmul.bf16.gmra.mxu0 %v3941
  %v4392 = vpop.f32.mrf.mxu0
  %v4393 = vpop.f32.mrf.mxu0
  %4394 = vmatmul.bf16.gmra.mxu0 %v3945
  %v4395 = vpop.f32.mrf.mxu0
  %v4396 = vadd.f32 %v4369, %v4395
  %v4397 = vpop.f32.mrf.mxu0
  %v4398 = vadd.f32 %v4371, %v4397
  %4399 = vmatmul.bf16.gmra.mxu0 %v3954
  %v4400 = vpop.f32.mrf.mxu0
  %v4401 = vpop.f32.mrf.mxu0
  %4402 = vmatmul.bf16.gmra.mxu0 %v3953
  %v4403 = vpop.f32.mrf.mxu0
  %v4404 = vpop.f32.mrf.mxu0
  %4405 = vdwg.mxu0
  %4406 = vmatpush.bf16.msra.mxu0 %v4257
  %4407 = vmatpush.bf16.msra.mxu0 %v4256
  %4408 = vmatpush.bf16.msra.mxu0 %v4255
  %4409 = vmatpush.bf16.msra.mxu0 %v4254
  %4410 = vmatpush.bf16.msra.mxu0 %v4253
  %4411 = vmatpush.bf16.msra.mxu0 %v4252
  %4412 = vmatpush.bf16.msra.mxu0 %v4251
  %4413 = vmatpush.bf16.msra.mxu0 %v4250
  %4414 = vmatmul.bf16.gmra.mxu0 %v3965
  %v4415 = vpop.f32.mrf.mxu0
  %v4416 = vadd.f32 %v4389, %v4415
  %v4417 = vpop.f32.mrf.mxu0
  %4418 = vmatmul.bf16.gmra.mxu0 %v3967
  %v4419 = vpop.f32.mrf.mxu0
  %v4420 = vpop.f32.mrf.mxu0
  %4421 = vmatmul.bf16.gmra.mxu0 %v3969
  %v4422 = vpop.f32.mrf.mxu0
  %v4423 = vadd.f32 %v4396, %v4422
  %v4424 = vpop.f32.mrf.mxu0
  %v4425 = vadd.f32 %v4398, %v4424
  %4426 = vmatmul.bf16.gmra.mxu0 %v3971
  %v4427 = vpop.f32.mrf.mxu0
  %v4428 = vpop.f32.mrf.mxu0
  %4429 = vmatmul.bf16.gmra.mxu0 %v3970
  %v4430 = vpop.f32.mrf.mxu0
  %v4431 = vpop.f32.mrf.mxu0
  %4432 = vdwg.mxu0
  %v4433 = vadd.f32 %v3811, %v4416
  %v4434 = vadd.f32 %v3812, %v4423
  %v4435 = vadd.f32 %v3813, %v4425
  %v4437 = vrot.slane %v4433, 4
  %v4440 = vrot.slane %v4435, 4
  %vm4442 = vcmask 1041408
  %v4443 = vsel %vm4442, %v4433, %v4437
  %v4444 = vsel %vm1228, %v4443, %v4434
  %vm4445 = vcmask 1045504
  %v4446 = vsel %vm4445, %v4444, %v4440
  %v4447 = vrot.slane %v4446, 4
  %v4448 = vadd.f32 %v4446, %v4447
  %v4449 = vrot.slane %v4448, 2
  %v4450 = vadd.f32 %v4448, %v4449
  %v4451 = vrot.slane %v4450, 1
  %v4452 = vadd.f32 %v4450, %v4451
  %v4453 = vmul.f32 %v4452, 0.125
  %v4454 = vsub.f32 %v4446, %v4453
  %v4455 = vmul.f32 %v4454, %v4454
  %v4456 = vrot.slane %v4455, 4
  %v4457 = vadd.f32 %v4455, %v4456
  %v4458 = vrot.slane %v4457, 2
  %v4459 = vadd.f32 %v4457, %v4458
  %v4460 = vrot.slane %v4459, 1
  %v4461 = vadd.f32 %v4459, %v4460
  %v4462 = vmul.f32 %v4461, 0.125
  %v4463 = vadd.f32 %v4462, 1e-05
  %v4464 = vrsqrt.pop %v4463
  %v4465 = vmul.f32 %v4464, %v4463
  %v4466 = vmul.f32 %v4465, %v4464
  %v4467 = vmul.f32 0.5, %v4466
  %v4468 = vsub.f32 1.5, %v4467
  %v4469 = vmul.f32 %v4464, %v4468
  %vm4470 = vweird.f32 %v4463
  %vm4471 = vweird.f32 %v4464
  %vm4472 = vmor %vm4470, %vm4471
  %v4473 = vsel %vm4472, %v4464, %v4469
  %v4474 = vmul.f32 %v4454, %v4473
  %v4475 = vld [vmem:[%s5] sm:$0x1]
  %v4477 = vperm.slane %v4475, 0
  %v4479 = vmul.f32 %v4474, %v4477
  %v4480 = vld [vmem:[%s6] sm:$0x1]
  %v4482 = vperm.slane %v4480, 0
  %v4484 = vadd.f32 %v4479, %v4482
  %v4485 = vmax.f32 %v4484, 0.0
  %v4486 = vsel %vm1228, %v4485, -inf
  %v4487 = vrot.slane %v4486, 4
  %v4488 = vmax.f32 %v4486, %v4487
  %v4489 = vrot.slane %v4488, 2
  %v4490 = vmax.f32 %v4488, %v4489
  %v4491 = vrot.slane %v4490, 1
  %v4492 = vmax.f32 %v4490, %v4491
  %vm4493 = vcmask 1047556
  %v4494 = vsel %vm4493, %v4485, -inf
  %v4495 = vrot.slane %v4494, 4
  %v4496 = vmax.f32 %v4494, %v4495
  %v4497 = vrot.slane %v4496, 2
  %v4498 = vmax.f32 %v4496, %v4497
  %v4499 = vrot.slane %v4498, 1
  %v4500 = vmax.f32 %v4498, %v4499
  %vm4501 = vcmask 1040384
  %v4502 = vsel %vm4501, %v4492, %v4500
  %v4503 = vsel %vm4442, %v4502, 0.0
  %s4504 = smul.u32 4, 16
  %s4505 = smul.u32 %s4504, 2
  %s4506 = sshll.u32 %s4505, 4
  %4507 = dma.done %s449, %s4506
  %v4508 = vpack.c.bf16 %v4503, %v4503
  %v4509 = vld [vmem:[#allocation3] sm:$0xff]
  %v4510 = vld [vmem:[#allocation3 + $0x8] sm:$0xff]
  %v4511 = vld [vmem:[#allocation3 + $0x10] sm:$0xff]
  %v4512 = vld [vmem:[#allocation3 + $0x18] sm:$0xff]
  %v4513 = vld [vmem:[#allocation3 + $0x20] sm:$0xff]
  %v4514 = vld [vmem:[#allocation3 + $0x28] sm:$0xff]
  %v4515 = vld [vmem:[#allocation3 + $0x30] sm:$0xff]
  %v4516 = vld [vmem:[#allocation3 + $0x38] sm:$0xff]
  %v4517 = vld [vmem:[#allocation3 + $0x40] sm:$0xff]
  %v4518 = vld [vmem:[#allocation3 + $0x48] sm:$0xff]
  %v4519 = vld [vmem:[#allocation3 + $0x50] sm:$0xff]
  %v4520 = vld [vmem:[#allocation3 + $0x58] sm:$0xff]
  %v4521 = vld [vmem:[#allocation3 + $0x60] sm:$0xff]
  %v4522 = vld [vmem:[#allocation3 + $0x68] sm:$0xff]
  %v4523 = vld [vmem:[#allocation3 + $0x70] sm:$0xff]
  %v4524 = vld [vmem:[#allocation3 + $0x78] sm:$0xff]
  %v4525 = vld [vmem:[%s8] sm:$0x3]
  %v4527 = vperm.slane %v4525, 0
  %v4528 = vperm.slane %v4525, 1
  %v4547 = vunpack.c.l.b16 %v4509
  %v4548 = vunpack.c.h.b16 %v4509
  %v4549 = vunpack.c.l.b16 %v4510
  %v4550 = vunpack.c.h.b16 %v4510
  %v4551 = vunpack.c.l.b16 %v4511
  %v4552 = vunpack.c.h.b16 %v4511
  %v4553 = vunpack.c.l.b16 %v4512
  %v4554 = vunpack.c.h.b16 %v4512
  %v4555 = vunpack.c.l.b16 %v4513
  %v4556 = vunpack.c.h.b16 %v4513
  %v4557 = vunpack.c.l.b16 %v4514
  %v4558 = vunpack.c.h.b16 %v4514
  %v4559 = vunpack.c.l.b16 %v4515
  %v4560 = vunpack.c.h.b16 %v4515
  %v4561 = vunpack.c.l.b16 %v4516
  %v4562 = vunpack.c.h.b16 %v4516
  %v4563 = vunpack.c.l.b16 %v4517
  %v4564 = vunpack.c.h.b16 %v4517
  %v4565 = vunpack.c.l.b16 %v4518
  %v4566 = vunpack.c.h.b16 %v4518
  %v4567 = vunpack.c.l.b16 %v4519
  %v4568 = vunpack.c.h.b16 %v4519
  %v4569 = vunpack.c.l.b16 %v4520
  %v4570 = vunpack.c.h.b16 %v4520
  %v4571 = vunpack.c.l.b16 %v4521
  %v4572 = vunpack.c.h.b16 %v4521
  %v4573 = vunpack.c.l.b16 %v4522
  %v4574 = vunpack.c.h.b16 %v4522
  %v4575 = vunpack.c.l.b16 %v4523
  %v4576 = vunpack.c.h.b16 %v4523
  %v4577 = vunpack.c.l.b16 %v4524
  %v4578 = vunpack.c.h.b16 %v4524
  %v4579 = vpack.c.b16 %v4549, %v4547
  %v4580 = vpack.c.b16 %v4550, %v4548
  %v4581 = vpack.c.b16 %v4553, %v4551
  %v4582 = vpack.c.b16 %v4554, %v4552
  %v4583 = vpack.c.b16 %v4557, %v4555
  %v4584 = vpack.c.b16 %v4558, %v4556
  %v4585 = vpack.c.b16 %v4561, %v4559
  %v4586 = vpack.c.b16 %v4562, %v4560
  %v4587 = vpack.c.b16 %v4565, %v4563
  %v4588 = vpack.c.b16 %v4566, %v4564
  %v4589 = vpack.c.b16 %v4569, %v4567
  %v4590 = vpack.c.b16 %v4570, %v4568
  %v4591 = vpack.c.b16 %v4573, %v4571
  %v4592 = vpack.c.b16 %v4574, %v4572
  %v4593 = vpack.c.b16 %v4577, %v4575
  %v4594 = vpack.c.b16 %v4578, %v4576
  %4611 = vmatpush.bf16.msra.mxu0 %v4593
  %4612 = vmatpush.bf16.msra.mxu0 %v4591
  %4613 = vmatpush.bf16.msra.mxu0 %v4589
  %4614 = vmatpush.bf16.msra.mxu0 %v4587
  %4615 = vmatpush.bf16.msra.mxu0 %v4585
  %4616 = vmatpush.bf16.msra.mxu0 %v4583
  %4617 = vmatpush.bf16.msra.mxu0 %v4581
  %4618 = vmatpush.bf16.msra.mxu0 %v4579
  %4619 = vmatmul.bf16.gmra.mxu0 %v4508
  %v4620 = vpop.f32.mrf.mxu0
  %v4621 = vadd.f32 %v4527, %v4620
  %v4622 = vpop.f32.mrf.mxu0
  %4623 = vdwg.mxu0
  %4624 = vmatpush.bf16.msra.mxu0 %v4594
  %4625 = vmatpush.bf16.msra.mxu0 %v4592
  %4626 = vmatpush.bf16.msra.mxu0 %v4590
  %4627 = vmatpush.bf16.msra.mxu0 %v4588
  %4628 = vmatpush.bf16.msra.mxu0 %v4586
  %4629 = vmatpush.bf16.msra.mxu0 %v4584
  %4630 = vmatpush.bf16.msra.mxu0 %v4582
  %4631 = vmatpush.bf16.msra.mxu0 %v4580
  %4632 = vmatmul.bf16.gmra.mxu0 %v4508
  %v4633 = vpop.f32.mrf.mxu0
  %v4634 = vadd.f32 %v4528, %v4633
  %v4635 = vpop.f32.mrf.mxu0
  %4636 = vdwg.mxu0
  %v4637 = vmax.f32 %v4621, 0.0
  %v4638 = vmax.f32 %v4634, 0.0
  %s4639 = smul.u32 4, 32
  %s4640 = smul.u32 %s4639, 1
  %s4641 = sshll.u32 %s4640, 4
  %4642 = dma.done %s498, %s4641
  %v4643 = vpack.c.bf16 %v4637, %v4637
  %v4644 = vpack.c.bf16 %v4638, %v4638
  %v4645 = vld [vmem:[#allocation4] sm:$0xf]
  %v4646 = vld [vmem:[#allocation4 + $0x4] sm:$0xf]
  %v4647 = vld [vmem:[#allocation4 + $0x8] sm:$0xf]
  %v4648 = vld [vmem:[#allocation4 + $0xc] sm:$0xf]
  %v4649 = vld [vmem:[#allocation4 + $0x10] sm:$0xf]
  %v4650 = vld [vmem:[#allocation4 + $0x14] sm:$0xf]
  %v4651 = vld [vmem:[#allocation4 + $0x18] sm:$0xf]
  %v4652 = vld [vmem:[#allocation4 + $0x1c] sm:$0xf]
  %v4653 = vld [vmem:[#allocation4 + $0x20] sm:$0xf]
  %v4654 = vld [vmem:[#allocation4 + $0x24] sm:$0xf]
  %v4655 = vld [vmem:[#allocation4 + $0x28] sm:$0xf]
  %v4656 = vld [vmem:[#allocation4 + $0x2c] sm:$0xf]
  %v4657 = vld [vmem:[#allocation4 + $0x30] sm:$0xf]
  %v4658 = vld [vmem:[#allocation4 + $0x34] sm:$0xf]
  %v4659 = vld [vmem:[#allocation4 + $0x38] sm:$0xf]
  %v4660 = vld [vmem:[#allocation4 + $0x3c] sm:$0xf]
  %v4661 = vld [vmem:[#allocation4 + $0x40] sm:$0xf]
  %v4662 = vld [vmem:[#allocation4 + $0x44] sm:$0xf]
  %v4663 = vld [vmem:[#allocation4 + $0x48] sm:$0xf]
  %v4664 = vld [vmem:[#allocation4 + $0x4c] sm:$0xf]
  %v4665 = vld [vmem:[#allocation4 + $0x50] sm:$0xf]
  %v4666 = vld [vmem:[#allocation4 + $0x54] sm:$0xf]
  %v4667 = vld [vmem:[#allocation4 + $0x58] sm:$0xf]
  %v4668 = vld [vmem:[#allocation4 + $0x5c] sm:$0xf]
  %v4669 = vld [vmem:[#allocation4 + $0x60] sm:$0xf]
  %v4670 = vld [vmem:[#allocation4 + $0x64] sm:$0xf]
  %v4671 = vld [vmem:[#allocation4 + $0x68] sm:$0xf]
  %v4672 = vld [vmem:[#allocation4 + $0x6c] sm:$0xf]
  %v4673 = vld [vmem:[#allocation4 + $0x70] sm:$0xf]
  %v4674 = vld [vmem:[#allocation4 + $0x74] sm:$0xf]
  %v4675 = vld [vmem:[#allocation4 + $0x78] sm:$0xf]
  %v4676 = vld [vmem:[#allocation4 + $0x7c] sm:$0xf]
  %v4677 = vld [vmem:[%s10] sm:$0x1]
  %v4679 = vperm.slane %v4677, 0
  %v4713 = vunpack.c.l.b16 %v4645
  %v4714 = vunpack.c.l.b16 %v4646
  %v4715 = vunpack.c.l.b16 %v4647
  %v4716 = vunpack.c.l.b16 %v4648
  %v4717 = vunpack.c.l.b16 %v4649
  %v4718 = vunpack.c.l.b16 %v4650
  %v4719 = vunpack.c.l.b16 %v4651
  %v4720 = vunpack.c.l.b16 %v4652
  %v4721 = vunpack.c.l.b16 %v4653
  %v4722 = vunpack.c.l.b16 %v4654
  %v4723 = vunpack.c.l.b16 %v4655
  %v4724 = vunpack.c.l.b16 %v4656
  %v4725 = vunpack.c.l.b16 %v4657
  %v4726 = vunpack.c.l.b16 %v4658
  %v4727 = vunpack.c.l.b16 %v4659
  %v4728 = vunpack.c.l.b16 %v4660
  %v4729 = vunpack.c.l.b16 %v4661
  %v4730 = vunpack.c.l.b16 %v4662
  %v4731 = vunpack.c.l.b16 %v4663
  %v4732 = vunpack.c.l.b16 %v4664
  %v4733 = vunpack.c.l.b16 %v4665
  %v4734 = vunpack.c.l.b16 %v4666
  %v4735 = vunpack.c.l.b16 %v4667
  %v4736 = vunpack.c.l.b16 %v4668
  %v4737 = vunpack.c.l.b16 %v4669
  %v4738 = vunpack.c.l.b16 %v4670
  %v4739 = vunpack.c.l.b16 %v4671
  %v4740 = vunpack.c.l.b16 %v4672
  %v4741 = vunpack.c.l.b16 %v4673
  %v4742 = vunpack.c.l.b16 %v4674
  %v4743 = vunpack.c.l.b16 %v4675
  %v4744 = vunpack.c.l.b16 %v4676
  %v4745 = vpack.c.b16 %v4714, %v4713
  %v4746 = vpack.c.b16 %v4716, %v4715
  %v4747 = vpack.c.b16 %v4718, %v4717
  %v4748 = vpack.c.b16 %v4720, %v4719
  %v4749 = vpack.c.b16 %v4722, %v4721
  %v4750 = vpack.c.b16 %v4724, %v4723
  %v4751 = vpack.c.b16 %v4726, %v4725
  %v4752 = vpack.c.b16 %v4728, %v4727
  %v4753 = vpack.c.b16 %v4730, %v4729
  %v4754 = vpack.c.b16 %v4732, %v4731
  %v4755 = vpack.c.b16 %v4734, %v4733
  %v4756 = vpack.c.b16 %v4736, %v4735
  %v4757 = vpack.c.b16 %v4738, %v4737
  %v4758 = vpack.c.b16 %v4740, %v4739
  %v4759 = vpack.c.b16 %v4742, %v4741
  %v4760 = vpack.c.b16 %v4744, %v4743
  %4777 = vmatpush.bf16.msra.mxu0 %v4752
  %4778 = vmatpush.bf16.msra.mxu0 %v4751
  %4779 = vmatpush.bf16.msra.mxu0 %v4750
  %4780 = vmatpush.bf16.msra.mxu0 %v4749
  %4781 = vmatpush.bf16.msra.mxu0 %v4748
  %4782 = vmatpush.bf16.msra.mxu0 %v4747
  %4783 = vmatpush.bf16.msra.mxu0 %v4746
  %4784 = vmatpush.bf16.msra.mxu0 %v4745
  %4785 = vmatmul.bf16.gmra.mxu0 %v4643
  %v4786 = vpop.f32.mrf.mxu0
  %v4787 = vadd.f32 %v4679, %v4786
  %v4788 = vpop.f32.mrf.mxu0
  %4789 = vdwg.mxu0
  %4790 = vmatpush.bf16.msra.mxu0 %v4760
  %4791 = vmatpush.bf16.msra.mxu0 %v4759
  %4792 = vmatpush.bf16.msra.mxu0 %v4758
  %4793 = vmatpush.bf16.msra.mxu0 %v4757
  %4794 = vmatpush.bf16.msra.mxu0 %v4756
  %4795 = vmatpush.bf16.msra.mxu0 %v4755
  %4796 = vmatpush.bf16.msra.mxu0 %v4754
  %4797 = vmatpush.bf16.msra.mxu0 %v4753
  %4798 = vmatmul.bf16.gmra.mxu0 %v4644
  %v4799 = vpop.f32.mrf.mxu0
  %v4800 = vadd.f32 %v4787, %v4799
  %v4801 = vpop.f32.mrf.mxu0
  %4802 = vdwg.mxu0
  %4803 = vst [vmem:[%s11] sm:$0xff] %v4800
  // Predicated region
  $region91: #{mconvnet3_forward.1} parent=0 // pred_check
    _
  $region92: #{mconvnet3_forward.1} parent=0 // pred_check_branch
    %4805 = sbr.rel (0) target = $region94
  $region93: #{mconvnet3_forward.1} parent=0 // pred_region
    _
  $region94: #{mconvnet3_forward.1} parent=0 // pred_fallthru
    _
  // Predicated region
  $region95: #{mconvnet3_forward.1} parent=0 // pred_check
    _
  $region96: #{mconvnet3_forward.1} parent=0 // pred_check_branch
    %4807 = sbr.rel (0) target = $region98
  $region97: #{mconvnet3_forward.1} parent=0 // pred_region
    _
  $region98: #{mconvnet3_forward.1} parent=0 // pred_fallthru
    _
  %4808 = vsyncmov [#allocation6]
  %s4809 = vpop.sfrf %4808
  %p4810 = scmp.eq.s32.totalorder %s4809, 0
  %p4811 = pneg %p4810
  %4813 = shalt.err (%p4811)
  %s4814 = scalar_lea.sflag [#allocation6], 1
  %4815 = vsyncmov %s4814
  %s4816 = vpop.sfrf %4815
  %p4817 = scmp.eq.s32.totalorder %s4816, 0
  %p4818 = pneg %p4817
  %4820 = shalt.err (%p4818)
  %s4821 = scalar_lea.sflag [#allocation6], 2
  %4822 = vsyncmov %s4821
  %s4823 = vpop.sfrf %4822
  %p4824 = scmp.eq.s32.totalorder %s4823, 0
  %p4825 = pneg %p4824
  %4827 = shalt.err (%p4825)

</llo_original>
